<compile_context>
chip_gen: v7x
topology: tpu7x:2x2x1
jax: 0.10.0
libtpu: 0.0.40
codegen_flags: <defaults>
</compile_context>

<pallas_src>
import numpy as np
import jax
import jax.numpy as jnp
from jax.experimental import pallas as pl
from jax.experimental.pallas import tpu as pltpu


def _round_up(x, m):
    return (x + m - 1) // m * m


def _pad2(a, rows, cols):
    return jnp.pad(a, ((0, rows - a.shape[0]), (0, cols - a.shape[1])))


def _pick_tile_m(M, N, target_rows=1024):
    """Context-token tile: ~target_rows pair rows per tile, multiple of 8 sublanes."""
    tm = max(8, _round_up(max(1, target_rows // max(N, 1)), 8))
    return min(tm, _round_up(M, 8))


def _vmem_limit_bytes():
    try:
        cap = int(pltpu.get_tpu_info().vmem_capacity_bytes)
    except Exception:
        cap = 64 * 1024 * 1024
    # leave headroom; caps at ~96 MiB on 128 MiB parts and ~48 MiB on 64 MiB (v7x) parts
    return min(cap * 3 // 4, 100 * 1024 * 1024)


def rn_forward(x, context, params):
    """x, context: (B, ..., D) with feature dim last. Returns (B, output_dim) float32."""
    B = x.shape[0]
    x_tok = x.reshape(B, -1, x.shape[-1])
    c_tok = context.reshape(B, -1, context.shape[-1])
    N, D = x_tok.shape[1], x_tok.shape[2]
    M, Dc = c_tok.shape[1], c_tok.shape[2]

    H = params['b0'].shape[-1]
    O = params['d2'].shape[-1]
    H_pad = _round_up(H, 128)
    O_pad = _round_up(O, 128)

    # Zero-pad hidden/output channels (exact: relu(0)=0, zero rows/cols contribute nothing).
    w0 = params['w0']
    w0x = _pad2(w0[:D], D, H_pad).astype(jnp.bfloat16)      # x-half of inner layer 0
    w0c = _pad2(w0[D:], Dc, H_pad).astype(jnp.bfloat16)     # ctx-half of inner layer 0
    b0 = _pad2(params['b0'], 1, H_pad)
    w1 = _pad2(params['w1'], H_pad, H_pad).astype(jnp.bfloat16)
    b1 = _pad2(params['b1'], 1, H_pad)
    w2 = _pad2(params['w2'], H_pad, H_pad).astype(jnp.bfloat16)
    b2 = _pad2(params['b2'], 1, H_pad)
    w3 = _pad2(params['w3'], H_pad, H_pad)
    b3 = _pad2(params['b3'], 1, H_pad)
    v0 = _pad2(params['v0'], H_pad, H_pad)
    d0 = _pad2(params['d0'], 1, H_pad)
    v1 = _pad2(params['v1'], H_pad, H_pad)
    d1 = _pad2(params['d1'], 1, H_pad)
    v2 = _pad2(params['v2'], H_pad, O_pad)
    d2 = _pad2(params['d2'], 1, O_pad)

    # Tile the pair dimension over context tokens.
    tile_m = _pick_tile_m(M, N)
    M_pad = _round_up(M, tile_m)
    if M_pad != M:
        c_tok = jnp.pad(c_tok, ((0, 0), (0, M_pad - M), (0, 0)))
    MT = M_pad // tile_m
    R = tile_m * N                        # pair rows per tile

    xb = x_tok.astype(jnp.bfloat16)
    cb = c_tok.astype(jnp.bfloat16)

    vmem_limit = _vmem_limit_bytes()

    # ---- kernel 1: pairwise inner MLP (layers 0..2) + running pair-sum --------------------
    def inner_kernel(x_ref, c_ref, w0x_ref, w0c_ref, b0_ref, w1_ref, b1_ref, w2_ref, b2_ref,
                     out_ref, hx_scr):
        mi = pl.program_id(1)

        @pl.when(mi == 0)
        def _():
            # x-half of layer 0 is shared by every context tile of this batch element.
            hx_scr[...] = jnp.dot(x_ref[0], w0x_ref[...],
                                  preferred_element_type=jnp.float32)
            out_ref[...] = jnp.zeros_like(out_ref)

        # cat([x, ctx]) @ W0 == x @ W0[:D] + ctx @ W0[D:]
        hc = jnp.dot(c_ref[0], w0c_ref[...], preferred_element_type=jnp.float32)  # (tile_m, H)
        pre = hc[:, None, :] + hx_scr[...][None, :, :] + b0_ref[...]              # (tile_m, N, H)
        h = jnp.maximum(pre, 0.0).reshape(R, H_pad).astype(jnp.bfloat16)

        h = jnp.maximum(jnp.dot(h, w1_ref[...], preferred_element_type=jnp.float32)
                        + b1_ref[...], 0.0).astype(jnp.bfloat16)
        h = jnp.maximum(jnp.dot(h, w2_ref[...], preferred_element_type=jnp.float32)
                        + b2_ref[...], 0.0).astype(jnp.bfloat16)

        # Pair-sum on the MXU; the mask also zeroes padded context rows (if any).
        if M_pad == M:
            mask = jnp.ones((1, R), jnp.bfloat16)
        else:
            ctx_idx = mi * tile_m + jax.lax.broadcasted_iota(jnp.int32, (1, R), 1) // N
            mask = (ctx_idx < M).astype(jnp.bfloat16)
        partial = jnp.dot(mask, h, preferred_element_type=jnp.float32)            # (1, H)
        out_ref[...] = out_ref[...] + partial[None]

    def _full2(a):
        nd = a.ndim
        return pl.BlockSpec(a.shape, lambda b, m: (0,) * nd)

    relsum = pl.pallas_call(
        inner_kernel,
        out_shape=jax.ShapeDtypeStruct((B, 1, H_pad), jnp.float32),
        grid=(B, MT),
        in_specs=[pl.BlockSpec((1, N, D), lambda b, m: (b, 0, 0)),
                  pl.BlockSpec((1, tile_m, Dc), lambda b, m: (b, m, 0)),
                  _full2(w0x), _full2(w0c), _full2(b0),
                  _full2(w1), _full2(b1), _full2(w2), _full2(b2)],
        out_specs=pl.BlockSpec((1, 1, H_pad), lambda b, m: (b, 0, 0)),
        scratch_shapes=[pltpu.VMEM((N, H_pad), jnp.float32)],
        compiler_params=pltpu.CompilerParams(
            dimension_semantics=("parallel", "arbitrary"),
            vmem_limit_bytes=vmem_limit),
    )(xb, cb, w0x, w0c, b0, w1, b1, w2, b2)

    relsum = relsum.reshape(B, H_pad)

    # ---- kernel 2: hoisted last inner Linear + outer MLP, batched over all B --------------
    pair_count = float(M * N)

    def tail_kernel(rel_ref, w3_ref, b3_ref, v0_ref, d0_ref, v1_ref, d1_ref, v2_ref, d2_ref,
                    out_ref):
        # sum_pairs(relu(h2) @ w3 + b3) == sum_pairs(relu(h2)) @ w3 + (M*N) * b3
        mid = (jnp.dot(rel_ref[...], w3_ref[...], preferred_element_type=jnp.float32)
               + pair_count * b3_ref[...])
        m = jnp.maximum(jnp.dot(mid, v0_ref[...], preferred_element_type=jnp.float32)
                        + d0_ref[...], 0.0)
        m = jnp.maximum(jnp.dot(m, v1_ref[...], preferred_element_type=jnp.float32)
                        + d1_ref[...], 0.0)
        out_ref[...] = (jnp.dot(m, v2_ref[...], preferred_element_type=jnp.float32)
                        + d2_ref[...])

    def _full1(a):
        nd = a.ndim
        return pl.BlockSpec(a.shape, lambda i: (0,) * nd)

    out = pl.pallas_call(
        tail_kernel,
        out_shape=jax.ShapeDtypeStruct((B, O_pad), jnp.float32),
        grid=(1,),
        in_specs=[_full1(relsum), _full1(w3), _full1(b3), _full1(v0), _full1(d0),
                  _full1(v1), _full1(d1), _full1(v2), _full1(d2)],
        out_specs=pl.BlockSpec((B, O_pad), lambda i: (0, 0)),
        compiler_params=pltpu.CompilerParams(
            dimension_semantics=("arbitrary",),
            vmem_limit_bytes=vmem_limit),
    )(relsum, w3, b3, v0, d0, v1, d1, v2, d2)

    return out[:, :O]


# --- pure-JAX reference (mirrors the PyTorch forward exactly, all f32) -------------------------
def _mlp_ref(h, layers):
    n = len(layers)
    for i, (W, b) in enumerate(layers):
        h = h @ W + b
        if i < n - 1:
            h = jnp.maximum(h, 0.0)
    return h


def rn_reference(x, context, params):
    B = x.shape[0]
    xt = x.reshape(B, -1, x.shape[-1])
    ct = context.reshape(B, -1, context.shape[-1])
    N, M = xt.shape[1], ct.shape[1]
    xe = jnp.broadcast_to(xt[:, None], (B, M, N, xt.shape[-1]))
    ce = jnp.broadcast_to(ct[:, :, None], (B, M, N, ct.shape[-1]))
    pair = jnp.concatenate([xe, ce], -1)
    rel = _mlp_ref(pair, [(params['w0'], params['b0']), (params['w1'], params['b1']),
                          (params['w2'], params['b2']), (params['w3'], params['b3'])])
    mid = rel.sum(1).sum(1)
    return _mlp_ref(mid, [(params['v0'], params['d0']), (params['v1'], params['d1']),
                          (params['v2'], params['d2'])])


if __name__ == "__main__":
    key = jax.random.PRNGKey(0)
    B, Himg, Wimg, C = 2, 8, 8, 4          # 64 tokens per image -> exercises multi-tile pair sum
    dim = C
    context_dim = dim                      # context=None -> context_dim = dim
    hidden = dim * 4                       # hidden_dim default
    output_dim = dim                       # output_dim default

    keys = jax.random.split(key, 8)

    def lin(k, fin, fout):
        k1, k2 = jax.random.split(k)
        bound = 1.0 / np.sqrt(fin)
        W = jax.random.uniform(k1, (fin, fout), jnp.float32, -bound, bound)
        b = jax.random.uniform(k2, (1, fout), jnp.float32, -bound, bound)
        return W, b

    params = {}
    params['w0'], params['b0'] = lin(keys[0], dim + context_dim, hidden)   # inner layer 0
    params['w1'], params['b1'] = lin(keys[1], hidden, hidden)              # inner layer 1
    params['w2'], params['b2'] = lin(keys[2], hidden, hidden)              # inner layer 2
    params['w3'], params['b3'] = lin(keys[3], hidden, hidden)              # inner layer 3 (out)
    params['v0'], params['d0'] = lin(keys[4], hidden, hidden)              # outer layer 0
    params['v1'], params['d1'] = lin(keys[5], hidden, hidden)              # outer layer 1
    params['v2'], params['d2'] = lin(keys[6], hidden, output_dim)          # outer layer 2 (out)

    x = jax.random.normal(keys[7], (B, Himg, Wimg, C), jnp.float32)

    out = jax.block_until_ready(rn_forward(x, x, params))
    ref = np.asarray(rn_reference(x, x, params))

    # bf16 matmul operands -> loosen tolerance relative to the f32 reference's scale.
    scale = float(np.max(np.abs(ref))) + 1e-6
    np.testing.assert_allclose(np.asarray(out), ref, rtol=5e-2, atol=7.5e-2 * scale)
    print("KERNEL_OK")
</pallas_src>

<mosaic_0001>
module attributes {stable_mosaic.version = 11 : i64} {
  func.func @inner_kernel(%arg0: i32, %arg1: i32, %arg2: memref<1x64x4xbf16, #tpu.memory_space<vmem>>, %arg3: memref<1x16x4xbf16, #tpu.memory_space<vmem>>, %arg4: memref<4x128xbf16, #tpu.memory_space<vmem>>, %arg5: memref<4x128xbf16, #tpu.memory_space<vmem>>, %arg6: memref<1x128xf32, #tpu.memory_space<vmem>>, %arg7: memref<128x128xbf16, #tpu.memory_space<vmem>>, %arg8: memref<1x128xf32, #tpu.memory_space<vmem>>, %arg9: memref<128x128xbf16, #tpu.memory_space<vmem>>, %arg10: memref<1x128xf32, #tpu.memory_space<vmem>>, %arg11: memref<1x1x128xf32, #tpu.memory_space<vmem>>, %arg12: memref<64x128xf32, #tpu.memory_space<vmem>>) attributes {dimension_semantics = [#tpu.dimension_semantics<parallel>, #tpu.dimension_semantics<arbitrary>], iteration_bounds = array<i64: 2, 4>, scalar_prefetch = 0 : i64, scratch_operands = 1 : i64, tpu.core_type = #tpu.core_type<tc>, window_params = [{transform_indices = @transform_0, window_bounds = array<i64: 1, 64, 4>}, {transform_indices = @transform_1, window_bounds = array<i64: 1, 16, 4>}, {pipeline_mode = #tpu.pipeline_mode<synchronous>, transform_indices = @transform_2, window_bounds = array<i64: 4, 128>}, {pipeline_mode = #tpu.pipeline_mode<synchronous>, transform_indices = @transform_3, window_bounds = array<i64: 4, 128>}, {pipeline_mode = #tpu.pipeline_mode<synchronous>, transform_indices = @transform_4, window_bounds = array<i64: 1, 128>}, {pipeline_mode = #tpu.pipeline_mode<synchronous>, transform_indices = @transform_5, window_bounds = array<i64: 128, 128>}, {pipeline_mode = #tpu.pipeline_mode<synchronous>, transform_indices = @transform_6, window_bounds = array<i64: 1, 128>}, {pipeline_mode = #tpu.pipeline_mode<synchronous>, transform_indices = @transform_7, window_bounds = array<i64: 128, 128>}, {pipeline_mode = #tpu.pipeline_mode<synchronous>, transform_indices = @transform_8, window_bounds = array<i64: 1, 128>}, {transform_indices = @transform_9, window_bounds = array<i64: 1, 1, 128>}]} {
    %c0_i32 = arith.constant 0 : i32
    %0 = arith.cmpi eq, %arg1, %c0_i32 : i32
    %1 = arith.extui %0 : i1 to i32
    %c0_i32_0 = arith.constant 0 : i32
    %2 = arith.cmpi ne, %1, %c0_i32_0 : i32
    scf.if %2 {
      %c0_30 = arith.constant 0 : index
      %c0_31 = arith.constant 0 : index
      %c0_32 = arith.constant 0 : index
      %43 = vector.load %arg2[%c0_30, %c0_31, %c0_32] : memref<1x64x4xbf16, #tpu.memory_space<vmem>>, vector<1x64x4xbf16>
      %44 = vector.shape_cast %43 : vector<1x64x4xbf16> to vector<64x4xbf16>
      %c0_33 = arith.constant 0 : index
      %c0_34 = arith.constant 0 : index
      %45 = vector.load %arg4[%c0_33, %c0_34] : memref<4x128xbf16, #tpu.memory_space<vmem>>, vector<4x128xbf16>
      %cst_35 = arith.constant dense<0.000000e+00> : vector<64x128xf32>
      %46 = tpu.matmul %44, %45, %cst_35 {dimension_numbers = #tpu.dot_dimension_numbers<[1], [0], [0], [1], [0, 0, 1, 1], [], []>} : vector<64x4xbf16>, vector<4x128xbf16>, vector<64x128xf32> -> vector<64x128xf32>
      %c0_36 = arith.constant 0 : index
      %c0_37 = arith.constant 0 : index
      %47 = vector.load %arg12[%c0_36, %c0_37] : memref<64x128xf32, #tpu.memory_space<vmem>>, vector<64x128xf32>
      tpu.vector_store %arg12[%c0_36, %c0_37], %46 {strides = array<i32>} : memref<64x128xf32, #tpu.memory_space<vmem>>, vector<64x128xf32>,
      %cst_38 = arith.constant 0.000000e+00 : f32
      %48 = vector.broadcast %cst_38 : f32 to vector<1x1x128xf32>
      %c0_39 = arith.constant 0 : index
      %c0_40 = arith.constant 0 : index
      %c0_41 = arith.constant 0 : index
      %49 = vector.load %arg11[%c0_39, %c0_40, %c0_41] : memref<1x1x128xf32, #tpu.memory_space<vmem>>, vector<1x1x128xf32>
      tpu.vector_store %arg11[%c0_39, %c0_40, %c0_41], %48 {strides = array<i32>} : memref<1x1x128xf32, #tpu.memory_space<vmem>>, vector<1x1x128xf32>,
    } else {
    }
    %c0 = arith.constant 0 : index
    %c0_1 = arith.constant 0 : index
    %c0_2 = arith.constant 0 : index
    %3 = vector.load %arg3[%c0, %c0_1, %c0_2] : memref<1x16x4xbf16, #tpu.memory_space<vmem>>, vector<1x16x4xbf16>
    %4 = vector.shape_cast %3 : vector<1x16x4xbf16> to vector<16x4xbf16>
    %c0_3 = arith.constant 0 : index
    %c0_4 = arith.constant 0 : index
    %5 = vector.load %arg5[%c0_3, %c0_4] : memref<4x128xbf16, #tpu.memory_space<vmem>>, vector<4x128xbf16>
    %cst = arith.constant dense<0.000000e+00> : vector<16x128xf32>
    %6 = tpu.matmul %4, %5, %cst {dimension_numbers = #tpu.dot_dimension_numbers<[1], [0], [0], [1], [0, 0, 1, 1], [], []>} : vector<16x4xbf16>, vector<4x128xbf16>, vector<16x128xf32> -> vector<16x128xf32>
    %7 = vector.shape_cast %6 : vector<16x128xf32> to vector<16x1x128xf32>
    %c0_5 = arith.constant 0 : index
    %c0_6 = arith.constant 0 : index
    %8 = vector.load %arg12[%c0_5, %c0_6] : memref<64x128xf32, #tpu.memory_space<vmem>>, vector<64x128xf32>
    %9 = vector.shape_cast %8 : vector<64x128xf32> to vector<1x64x128xf32>
    %10 = vector.broadcast %7 : vector<16x1x128xf32> to vector<16x64x128xf32>
    %11 = vector.broadcast %9 : vector<1x64x128xf32> to vector<16x64x128xf32>
    %12 = arith.addf %10, %11 : vector<16x64x128xf32>
    %c0_7 = arith.constant 0 : index
    %c0_8 = arith.constant 0 : index
    %13 = vector.load %arg6[%c0_7, %c0_8] : memref<1x128xf32, #tpu.memory_space<vmem>>, vector<1x128xf32>
    %14 = vector.shape_cast %13 : vector<1x128xf32> to vector<1x1x128xf32>
    %15 = vector.broadcast %14 : vector<1x1x128xf32> to vector<16x64x128xf32>
    %16 = arith.addf %12, %15 : vector<16x64x128xf32>
    %cst_9 = arith.constant 0.000000e+00 : f32
    %17 = vector.broadcast %cst_9 : f32 to vector<16x64x128xf32>
    %18 = arith.maximumf %16, %17 : vector<16x64x128xf32>
    %19 = vector.shape_cast %18 : vector<16x64x128xf32> to vector<1024x128xf32>
    %20 = arith.truncf %19 : vector<1024x128xf32> to vector<1024x128xbf16>
    %c0_10 = arith.constant 0 : index
    %c0_11 = arith.constant 0 : index
    %21 = vector.load %arg7[%c0_10, %c0_11] : memref<128x128xbf16, #tpu.memory_space<vmem>>, vector<128x128xbf16>
    %cst_12 = arith.constant dense<0.000000e+00> : vector<1024x128xf32>
    %22 = tpu.matmul %20, %21, %cst_12 {dimension_numbers = #tpu.dot_dimension_numbers<[1], [0], [0], [1], [0, 0, 1, 1], [], []>} : vector<1024x128xbf16>, vector<128x128xbf16>, vector<1024x128xf32> -> vector<1024x128xf32>
    %c0_13 = arith.constant 0 : index
    %c0_14 = arith.constant 0 : index
    %23 = vector.load %arg8[%c0_13, %c0_14] : memref<1x128xf32, #tpu.memory_space<vmem>>, vector<1x128xf32>
    %24 = vector.broadcast %23 : vector<1x128xf32> to vector<1024x128xf32>
    %25 = arith.addf %22, %24 : vector<1024x128xf32>
    %cst_15 = arith.constant 0.000000e+00 : f32
    %26 = vector.broadcast %cst_15 : f32 to vector<1024x128xf32>
    %27 = arith.maximumf %25, %26 : vector<1024x128xf32>
    %28 = arith.truncf %27 : vector<1024x128xf32> to vector<1024x128xbf16>
    %c0_16 = arith.constant 0 : index
    %c0_17 = arith.constant 0 : index
    %29 = vector.load %arg9[%c0_16, %c0_17] : memref<128x128xbf16, #tpu.memory_space<vmem>>, vector<128x128xbf16>
    %cst_18 = arith.constant dense<0.000000e+00> : vector<1024x128xf32>
    %30 = tpu.matmul %28, %29, %cst_18 {dimension_numbers = #tpu.dot_dimension_numbers<[1], [0], [0], [1], [0, 0, 1, 1], [], []>} : vector<1024x128xbf16>, vector<128x128xbf16>, vector<1024x128xf32> -> vector<1024x128xf32>
    %c0_19 = arith.constant 0 : index
    %c0_20 = arith.constant 0 : index
    %31 = vector.load %arg10[%c0_19, %c0_20] : memref<1x128xf32, #tpu.memory_space<vmem>>, vector<1x128xf32>
    %32 = vector.broadcast %31 : vector<1x128xf32> to vector<1024x128xf32>
    %33 = arith.addf %30, %32 : vector<1024x128xf32>
    %cst_21 = arith.constant 0.000000e+00 : f32
    %34 = vector.broadcast %cst_21 : f32 to vector<1024x128xf32>
    %35 = arith.maximumf %33, %34 : vector<1024x128xf32>
    %36 = arith.truncf %35 : vector<1024x128xf32> to vector<1024x128xbf16>
    %cst_22 = arith.constant 1.000000e+00 : bf16
    %37 = vector.broadcast %cst_22 : bf16 to vector<1x1024xbf16>
    %cst_23 = arith.constant dense<0.000000e+00> : vector<1x128xf32>
    %38 = tpu.matmul %37, %36, %cst_23 {dimension_numbers = #tpu.dot_dimension_numbers<[1], [0], [0], [1], [0, 0, 1, 1], [], []>} : vector<1x1024xbf16>, vector<1024x128xbf16>, vector<1x128xf32> -> vector<1x128xf32>
    %c0_24 = arith.constant 0 : index
    %c0_25 = arith.constant 0 : index
    %c0_26 = arith.constant 0 : index
    %39 = vector.load %arg11[%c0_24, %c0_25, %c0_26] : memref<1x1x128xf32, #tpu.memory_space<vmem>>, vector<1x1x128xf32>
    %40 = vector.shape_cast %38 : vector<1x128xf32> to vector<1x1x128xf32>
    %41 = arith.addf %39, %40 : vector<1x1x128xf32>
    %c0_27 = arith.constant 0 : index
    %c0_28 = arith.constant 0 : index
    %c0_29 = arith.constant 0 : index
    %42 = vector.load %arg11[%c0_27, %c0_28, %c0_29] : memref<1x1x128xf32, #tpu.memory_space<vmem>>, vector<1x1x128xf32>
    tpu.vector_store %arg11[%c0_27, %c0_28, %c0_29], %41 {strides = array<i32>} : memref<1x1x128xf32, #tpu.memory_space<vmem>>, vector<1x1x128xf32>,
    return
  }
  func.func @transform_0(%arg0: i32, %arg1: i32) -> (i32, i32, i32) {
    %c0_i32 = arith.constant 0 : i32
    %c0_i32_0 = arith.constant 0 : i32
    %c0_i32_1 = arith.constant 0 : i32
    return %arg0, %c0_i32, %c0_i32_0 : i32, i32, i32
  }
  func.func @transform_1(%arg0: i32, %arg1: i32) -> (i32, i32, i32) {
    %c0_i32 = arith.constant 0 : i32
    %c0_i32_0 = arith.constant 0 : i32
    return %arg0, %arg1, %c0_i32 : i32, i32, i32
  }
  func.func @transform_2(%arg0: i32, %arg1: i32) -> (i32, i32) {
    %c0_i32 = arith.constant 0 : i32
    %c0_i32_0 = arith.constant 0 : i32
    %c0_i32_1 = arith.constant 0 : i32
    return %c0_i32, %c0_i32_0 : i32, i32
  }
  func.func @transform_3(%arg0: i32, %arg1: i32) -> (i32, i32) {
    %c0_i32 = arith.constant 0 : i32
    %c0_i32_0 = arith.constant 0 : i32
    %c0_i32_1 = arith.constant 0 : i32
    return %c0_i32, %c0_i32_0 : i32, i32
  }
  func.func @transform_4(%arg0: i32, %arg1: i32) -> (i32, i32) {
    %c0_i32 = arith.constant 0 : i32
    %c0_i32_0 = arith.constant 0 : i32
    %c0_i32_1 = arith.constant 0 : i32
    return %c0_i32, %c0_i32_0 : i32, i32
  }
  func.func @transform_5(%arg0: i32, %arg1: i32) -> (i32, i32) {
    %c0_i32 = arith.constant 0 : i32
    %c0_i32_0 = arith.constant 0 : i32
    %c0_i32_1 = arith.constant 0 : i32
    return %c0_i32, %c0_i32_0 : i32, i32
  }
  func.func @transform_6(%arg0: i32, %arg1: i32) -> (i32, i32) {
    %c0_i32 = arith.constant 0 : i32
    %c0_i32_0 = arith.constant 0 : i32
    %c0_i32_1 = arith.constant 0 : i32
    return %c0_i32, %c0_i32_0 : i32, i32
  }
  func.func @transform_7(%arg0: i32, %arg1: i32) -> (i32, i32) {
    %c0_i32 = arith.constant 0 : i32
    %c0_i32_0 = arith.constant 0 : i32
    %c0_i32_1 = arith.constant 0 : i32
    return %c0_i32, %c0_i32_0 : i32, i32
  }
  func.func @transform_8(%arg0: i32, %arg1: i32) -> (i32, i32) {
    %c0_i32 = arith.constant 0 : i32
    %c0_i32_0 = arith.constant 0 : i32
    %c0_i32_1 = arith.constant 0 : i32
    return %c0_i32, %c0_i32_0 : i32, i32
  }
  func.func @transform_9(%arg0: i32, %arg1: i32) -> (i32, i32, i32) {
    %c0_i32 = arith.constant 0 : i32
    %c0_i32_0 = arith.constant 0 : i32
    %c0_i32_1 = arith.constant 0 : i32
    return %arg0, %c0_i32, %c0_i32_0 : i32, i32, i32
  }
}

</mosaic_0001>

<llo_original>
// kernel: tpu_custom_call.1
$region0: #{tpu_custom_call.1}
  #allocation0 [shape = 'u32[]', space=smem, size = 0x4, offset = 0x4, fixed_abs, tag = 'smem constant byte address 0x4 - core index']
  #allocation1 [shape = 'u32[144,128]{1,0:T(1,128)}', space=vmem, size = 0x12000, scoped, tag = 'internal scratch']
  #allocation2 [shape = 'f32[64,128]{1,0:T(8,128)}', space=vmem, size = 0x8000, scoped, tag = 'scratch operand']
  %s0 = inlined_call_operand.vmem [shape: bf16[2,64,4], index: 0, kind: input, shape index: {}]
  %s1 = inlined_call_operand.vmem [shape: bf16[2,64,4], index: 1, kind: input, shape index: {}]
  %s2 = inlined_call_operand.vmem [shape: bf16[4,128], index: 2, kind: input, shape index: {}]
  %s3 = inlined_call_operand.vmem [shape: bf16[4,128], index: 3, kind: input, shape index: {}]
  %s4 = inlined_call_operand.vmem [shape: f32[1,128], index: 4, kind: input, shape index: {}]
  %s5 = inlined_call_operand.vmem [shape: bf16[128,128], index: 5, kind: input, shape index: {}]
  %s6 = inlined_call_operand.vmem [shape: f32[1,128], index: 6, kind: input, shape index: {}]
  %s7 = inlined_call_operand.vmem [shape: bf16[128,128], index: 7, kind: input, shape index: {}]
  %s8 = inlined_call_operand.vmem [shape: f32[1,128], index: 8, kind: input, shape index: {}]
  %s9 = inlined_call_operand.hbm [shape: f32[2,1,128], index: 9, kind: output, shape index: {}]
  %s10 = sld [smem:[#allocation0]]
  $region73: #{tpu_custom_call.1} parent=0
    _
  %s12 = ssub.s32 1, %s10
  %s13 = scalar_select 0, %s12, %s10
  $region1: #{tpu_custom_call.1} parent=0
    #allocation3 [shape = 'u8[1024]{0}', space=vmem, size = 0x400, scoped, tag = 'output window, operand 0']
    #allocation4 [shape = 's32[2]{0}', space=sflag, size = 0x8, scoped, tag = 'scoped memory for tpu_custom_call.1']
    %14 = vsyncpa [#allocation4], 0
    %s15 = scalar_lea.sflag [#allocation4], 1
    %16 = vsyncpa %s15, 0
    loop: start=0, step=1, limit=10
    $region2: #{tpu_custom_call.1} parent=1 // loop_pre_header
      _
    $region3: #{tpu_custom_call.1} parent=1 // loop_header
      %s18 = sphi 0, %s22
      %p19 = scmp.ge.s32.totalorder %s18, 10
      %s25 = sphi 0, %s37
      %s26 = sphi 0, %s33
      %s27 = sphi 0, %s25
      %s28 = sphi 0, %s26
      %s29 = sphi 0, %s27
      %s30 = sphi 0, %s28
      %s40 = sphi 0, %s42
      %s43 = sphi 0, %s40
      %s44 = sphi 0, %s43
      %s60 = sphi 0, %s44
      %s68 = sphi 0, %s70
      %s71 = sphi 0, %s68
      %s72 = sphi 0, %s71
      %s88 = sphi 0, %s72
      %s92 = sphi 0, %s92
      %s94 = sphi 0, %s92
      %s95 = sphi 0, %s94
      %s109 = sphi 0, %s95
      %s113 = sphi 0, %s113
      %s115 = sphi 0, %s113
      %s116 = sphi 0, %s115
      %s130 = sphi 0, %s116
      %s134 = sphi 0, %s134
      %s136 = sphi 0, %s134
      %s137 = sphi 0, %s136
      %s151 = sphi 0, %s137
      %s155 = sphi 0, %s155
      %s157 = sphi 0, %s155
      %s158 = sphi 0, %s157
      %s172 = sphi 0, %s158
      %s176 = sphi 0, %s176
      %s178 = sphi 0, %s176
      %s179 = sphi 0, %s178
      %s193 = sphi 0, %s179
      %s197 = sphi 0, %s197
      %s199 = sphi 0, %s197
      %s200 = sphi 0, %s199
      %s214 = sphi 0, %s200
      %s218 = sphi 0, %s218
      %s220 = sphi 0, %s218
      %s221 = sphi 0, %s220
      %s235 = sphi 0, %s221
      %s241 = sphi 0, %s243
      %s244 = sphi 0, %s241
      %s245 = sphi 0, %s244
      %s261 = sphi 0, %s245
    $region4: #{tpu_custom_call.1} parent=1 // loop_header_branch
      %21 = sbr.rel (%p19) target = $region8
    $region5: #{tpu_custom_call.1} parent=1 // loop_body
      %s23 = ssub.s32 %s18, 1
      %s24 = ssub.s32 %s18, 2
      %s31 = sadd.s32 1, %s26
      %p32 = scmp.ge.s32.totalorder %s31, 4
      %s33 = scalar_select %p32, 0, %s31
      %s34 = sadd.s32 1, %s25
      %s35 = scalar_select %p32, %s34, %s25
      %p36 = scmp.ge.s32.totalorder %s35, 2
      %s37 = scalar_select %p36, 0, %s35
      %s38 = ssub.s32 %s25, %s37
      %p39 = scmp.eq.s32.totalorder %s38, 0
      %s41 = sadd.s32 %s40, 1
      %s42 = scalar_select %p39, %s40, %s41
      %p45 = pneg %p39
      %p46 = scmp.eq.s32.totalorder %s18, 7
      %p47 = por %p45, %p46
      %p48 = scmp.ne.s32.totalorder %s40, %s43
      %p49 = scmp.eq.s32.totalorder %s18, 0
      %p50 = por %p48, %p49
      %p51 = scmp.ne.s32.totalorder %s40, %s43
      %p52 = scmp.eq.s32.totalorder %s23, 7
      %p53 = por %p51, %p52
      %p54 = scmp.ne.s32.totalorder %s43, %s44
      %p55 = scmp.eq.s32.totalorder %s23, 0
      %p56 = por %p54, %p55
      %p57 = scmp.ne.s32.totalorder %s43, %s44
      %p58 = scmp.eq.s32.totalorder %s24, 7
      %p59 = por %p57, %p58
      %p61 = scmp.ne.s32.totalorder %s44, %s60
      %p62 = scmp.eq.s32.totalorder %s24, 0
      %p63 = por %p61, %p62
      %s64 = ssub.s32 %s25, %s37
      %s65 = ssub.s32 %s26, %s33
      %s66 = sor.u32 %s64, %s65
      %p67 = scmp.eq.s32.totalorder %s66, 0
      %s69 = sadd.s32 %s68, 1
      %s70 = scalar_select %p67, %s68, %s69
      %p73 = pneg %p67
      %p74 = scmp.eq.s32.totalorder %s18, 7
      %p75 = por %p73, %p74
      %p76 = scmp.ne.s32.totalorder %s68, %s71
      %p77 = scmp.eq.s32.totalorder %s18, 0
      %p78 = por %p76, %p77
      %p79 = scmp.ne.s32.totalorder %s68, %s71
      %p80 = scmp.eq.s32.totalorder %s23, 7
      %p81 = por %p79, %p80
      %p82 = scmp.ne.s32.totalorder %s71, %s72
      %p83 = scmp.eq.s32.totalorder %s23, 0
      %p84 = por %p82, %p83
      %p85 = scmp.ne.s32.totalorder %s71, %s72
      %p86 = scmp.eq.s32.totalorder %s24, 7
      %p87 = por %p85, %p86
      %p89 = scmp.ne.s32.totalorder %s72, %s88
      %p90 = scmp.eq.s32.totalorder %s24, 0
      %p91 = por %p89, %p90
      %s93 = sadd.s32 %s92, 1
      %p96 = scmp.eq.s32.totalorder %s18, 7
      %p97 = scmp.ne.s32.totalorder %s92, %s94
      %p98 = scmp.eq.s32.totalorder %s18, 0
      %p99 = por %p97, %p98
      %p100 = scmp.ne.s32.totalorder %s92, %s94
      %p101 = scmp.eq.s32.totalorder %s23, 7
      %p102 = por %p100, %p101
      %p103 = scmp.ne.s32.totalorder %s94, %s95
      %p104 = scmp.eq.s32.totalorder %s23, 0
      %p105 = por %p103, %p104
      %p106 = scmp.ne.s32.totalorder %s94, %s95
      %p107 = scmp.eq.s32.totalorder %s24, 7
      %p108 = por %p106, %p107
      %p110 = scmp.ne.s32.totalorder %s95, %s109
      %p111 = scmp.eq.s32.totalorder %s24, 0
      %p112 = por %p110, %p111
      %s114 = sadd.s32 %s113, 1
      %p117 = scmp.eq.s32.totalorder %s18, 7
      %p118 = scmp.ne.s32.totalorder %s113, %s115
      %p119 = scmp.eq.s32.totalorder %s18, 0
      %p120 = por %p118, %p119
      %p121 = scmp.ne.s32.totalorder %s113, %s115
      %p122 = scmp.eq.s32.totalorder %s23, 7
      %p123 = por %p121, %p122
      %p124 = scmp.ne.s32.totalorder %s115, %s116
      %p125 = scmp.eq.s32.totalorder %s23, 0
      %p126 = por %p124, %p125
      %p127 = scmp.ne.s32.totalorder %s115, %s116
      %p128 = scmp.eq.s32.totalorder %s24, 7
      %p129 = por %p127, %p128
      %p131 = scmp.ne.s32.totalorder %s116, %s130
      %p132 = scmp.eq.s32.totalorder %s24, 0
      %p133 = por %p131, %p132
      %s135 = sadd.s32 %s134, 1
      %p138 = scmp.eq.s32.totalorder %s18, 7
      %p139 = scmp.ne.s32.totalorder %s134, %s136
      %p140 = scmp.eq.s32.totalorder %s18, 0
      %p141 = por %p139, %p140
      %p142 = scmp.ne.s32.totalorder %s134, %s136
      %p143 = scmp.eq.s32.totalorder %s23, 7
      %p144 = por %p142, %p143
      %p145 = scmp.ne.s32.totalorder %s136, %s137
      %p146 = scmp.eq.s32.totalorder %s23, 0
      %p147 = por %p145, %p146
      %p148 = scmp.ne.s32.totalorder %s136, %s137
      %p149 = scmp.eq.s32.totalorder %s24, 7
      %p150 = por %p148, %p149
      %p152 = scmp.ne.s32.totalorder %s137, %s151
      %p153 = scmp.eq.s32.totalorder %s24, 0
      %p154 = por %p152, %p153
      %s156 = sadd.s32 %s155, 1
      %p159 = scmp.eq.s32.totalorder %s18, 7
      %p160 = scmp.ne.s32.totalorder %s155, %s157
      %p161 = scmp.eq.s32.totalorder %s18, 0
      %p162 = por %p160, %p161
      %p163 = scmp.ne.s32.totalorder %s155, %s157
      %p164 = scmp.eq.s32.totalorder %s23, 7
      %p165 = por %p163, %p164
      %p166 = scmp.ne.s32.totalorder %s157, %s158
      %p167 = scmp.eq.s32.totalorder %s23, 0
      %p168 = por %p166, %p167
      %p169 = scmp.ne.s32.totalorder %s157, %s158
      %p170 = scmp.eq.s32.totalorder %s24, 7
      %p171 = por %p169, %p170
      %p173 = scmp.ne.s32.totalorder %s158, %s172
      %p174 = scmp.eq.s32.totalorder %s24, 0
      %p175 = por %p173, %p174
      %s177 = sadd.s32 %s176, 1
      %p180 = scmp.eq.s32.totalorder %s18, 7
      %p181 = scmp.ne.s32.totalorder %s176, %s178
      %p182 = scmp.eq.s32.totalorder %s18, 0
      %p183 = por %p181, %p182
      %p184 = scmp.ne.s32.totalorder %s176, %s178
      %p185 = scmp.eq.s32.totalorder %s23, 7
      %p186 = por %p184, %p185
      %p187 = scmp.ne.s32.totalorder %s178, %s179
      %p188 = scmp.eq.s32.totalorder %s23, 0
      %p189 = por %p187, %p188
      %p190 = scmp.ne.s32.totalorder %s178, %s179
      %p191 = scmp.eq.s32.totalorder %s24, 7
      %p192 = por %p190, %p191
      %p194 = scmp.ne.s32.totalorder %s179, %s193
      %p195 = scmp.eq.s32.totalorder %s24, 0
      %p196 = por %p194, %p195
      %s198 = sadd.s32 %s197, 1
      %p201 = scmp.eq.s32.totalorder %s18, 7
      %p202 = scmp.ne.s32.totalorder %s197, %s199
      %p203 = scmp.eq.s32.totalorder %s18, 0
      %p204 = por %p202, %p203
      %p205 = scmp.ne.s32.totalorder %s197, %s199
      %p206 = scmp.eq.s32.totalorder %s23, 7
      %p207 = por %p205, %p206
      %p208 = scmp.ne.s32.totalorder %s199, %s200
      %p209 = scmp.eq.s32.totalorder %s23, 0
      %p210 = por %p208, %p209
      %p211 = scmp.ne.s32.totalorder %s199, %s200
      %p212 = scmp.eq.s32.totalorder %s24, 7
      %p213 = por %p211, %p212
      %p215 = scmp.ne.s32.totalorder %s200, %s214
      %p216 = scmp.eq.s32.totalorder %s24, 0
      %p217 = por %p215, %p216
      %s219 = sadd.s32 %s218, 1
      %p222 = scmp.eq.s32.totalorder %s18, 7
      %p223 = scmp.ne.s32.totalorder %s218, %s220
      %p224 = scmp.eq.s32.totalorder %s18, 0
      %p225 = por %p223, %p224
      %p226 = scmp.ne.s32.totalorder %s218, %s220
      %p227 = scmp.eq.s32.totalorder %s23, 7
      %p228 = por %p226, %p227
      %p229 = scmp.ne.s32.totalorder %s220, %s221
      %p230 = scmp.eq.s32.totalorder %s23, 0
      %p231 = por %p229, %p230
      %p232 = scmp.ne.s32.totalorder %s220, %s221
      %p233 = scmp.eq.s32.totalorder %s24, 7
      %p234 = por %p232, %p233
      %p236 = scmp.ne.s32.totalorder %s221, %s235
      %p237 = scmp.eq.s32.totalorder %s24, 0
      %p238 = por %p236, %p237
      %s239 = ssub.s32 %s25, %s37
      %p240 = scmp.eq.s32.totalorder %s239, 0
      %s242 = sadd.s32 %s241, 1
      %s243 = scalar_select %p240, %s241, %s242
      %p246 = pneg %p240
      %p247 = scmp.eq.s32.totalorder %s18, 7
      %p248 = por %p246, %p247
      %p249 = scmp.ne.s32.totalorder %s241, %s244
      %p250 = scmp.eq.s32.totalorder %s18, 0
      %p251 = por %p249, %p250
      %p252 = scmp.ne.s32.totalorder %s241, %s244
      %p253 = scmp.eq.s32.totalorder %s23, 7
      %p254 = por %p252, %p253
      %p255 = scmp.ne.s32.totalorder %s244, %s245
      %p256 = scmp.eq.s32.totalorder %s23, 0
      %p257 = por %p255, %p256
      %p258 = scmp.ne.s32.totalorder %s244, %s245
      %p259 = scmp.eq.s32.totalorder %s24, 7
      %p260 = por %p258, %p259
      %p262 = scmp.ne.s32.totalorder %s245, %s261
      %p263 = scmp.eq.s32.totalorder %s24, 0
      %p264 = por %p262, %p263
      %p265 = scmp.le.s32.totalorder 1, %s18
      %p266 = scmp.lt.s32.totalorder %s18, 9
      %p267 = pnand %p265, %p266
      %p268 = pneg %p267
      // Predicated region
      $region9: #{tpu_custom_call.1} parent=5 // pred_check
        _
      $region10: #{tpu_custom_call.1} parent=5 // pred_check_branch
        %270 = sbr.rel (%p267) target = $region12
      $region11: #{tpu_custom_call.1} parent=5 // pred_region
        %s271 = ssub.s32 %s18, 1
        // Predicated region
        $region13: #{tpu_custom_call.1} parent=11 // pred_check
          %p272 = pneg %p105
        $region14: #{tpu_custom_call.1} parent=11 // pred_check_branch
          %274 = sbr.rel (%p272) target = $region16
        $region15: #{tpu_custom_call.1} parent=11 // pred_region
          _
        $region16: #{tpu_custom_call.1} parent=11 // pred_fallthru
          _
        // Predicated region
        $region17: #{tpu_custom_call.1} parent=11 // pred_check
          %p275 = pneg %p126
        $region18: #{tpu_custom_call.1} parent=11 // pred_check_branch
          %277 = sbr.rel (%p275) target = $region20
        $region19: #{tpu_custom_call.1} parent=11 // pred_region
          _
        $region20: #{tpu_custom_call.1} parent=11 // pred_fallthru
          _
        // Predicated region
        $region21: #{tpu_custom_call.1} parent=11 // pred_check
          %p278 = pneg %p147
        $region22: #{tpu_custom_call.1} parent=11 // pred_check_branch
          %280 = sbr.rel (%p278) target = $region24
        $region23: #{tpu_custom_call.1} parent=11 // pred_region
          _
        $region24: #{tpu_custom_call.1} parent=11 // pred_fallthru
          _
        // Predicated region
        $region25: #{tpu_custom_call.1} parent=11 // pred_check
          %p281 = pneg %p168
        $region26: #{tpu_custom_call.1} parent=11 // pred_check_branch
          %283 = sbr.rel (%p281) target = $region28
        $region27: #{tpu_custom_call.1} parent=11 // pred_region
          _
        $region28: #{tpu_custom_call.1} parent=11 // pred_fallthru
          _
        // Predicated region
        $region29: #{tpu_custom_call.1} parent=11 // pred_check
          %p284 = pneg %p189
        $region30: #{tpu_custom_call.1} parent=11 // pred_check_branch
          %286 = sbr.rel (%p284) target = $region32
        $region31: #{tpu_custom_call.1} parent=11 // pred_region
          _
        $region32: #{tpu_custom_call.1} parent=11 // pred_fallthru
          _
        // Predicated region
        $region33: #{tpu_custom_call.1} parent=11 // pred_check
          %p287 = pneg %p210
        $region34: #{tpu_custom_call.1} parent=11 // pred_check_branch
          %289 = sbr.rel (%p287) target = $region36
        $region35: #{tpu_custom_call.1} parent=11 // pred_region
          _
        $region36: #{tpu_custom_call.1} parent=11 // pred_fallthru
          _
        // Predicated region
        $region37: #{tpu_custom_call.1} parent=11 // pred_check
          %p290 = pneg %p231
        $region38: #{tpu_custom_call.1} parent=11 // pred_check_branch
          %292 = sbr.rel (%p290) target = $region40
        $region39: #{tpu_custom_call.1} parent=11 // pred_region
          _
        $region40: #{tpu_custom_call.1} parent=11 // pred_fallthru
          _
      $region12: #{tpu_custom_call.1} parent=5 // pred_fallthru
        _
      %p293 = scmp.lt.s32.totalorder %s18, 8
      // Predicated region
      $region41: #{tpu_custom_call.1} parent=5 // pred_check
        %p294 = pneg %p293
      $region42: #{tpu_custom_call.1} parent=5 // pred_check_branch
        %296 = sbr.rel (%p294) target = $region44
      $region43: #{tpu_custom_call.1} parent=5 // pred_region
        // Predicated region
        $region45: #{tpu_custom_call.1} parent=43 // pred_check
          %p297 = pneg %p50
        $region46: #{tpu_custom_call.1} parent=43 // pred_check_branch
          %299 = sbr.rel (%p297) target = $region48
        $region47: #{tpu_custom_call.1} parent=43 // pred_region
          %p300 = scmp.lt.s32.totalorder %s25, 1
          %s301 = scalar_select %p300, %s25, 1
          %s302 = smul.addr %s301, 8
          %s303 = smul.addr %s302, 4
          %s304 = scalar_lea.vmem %s0, %s303
        $region48: #{tpu_custom_call.1} parent=43 // pred_fallthru
          _
        // Predicated region
        $region49: #{tpu_custom_call.1} parent=43 // pred_check
          %p305 = pneg %p78
        $region50: #{tpu_custom_call.1} parent=43 // pred_check_branch
          %307 = sbr.rel (%p305) target = $region52
        $region51: #{tpu_custom_call.1} parent=43 // pred_region
          %s308 = smul.u32 2, %s26
          %p309 = scmp.lt.s32.totalorder %s25, 1
          %s310 = scalar_select %p309, %s25, 1
          %p311 = scmp.lt.s32.totalorder %s308, 7
          %s312 = scalar_select %p311, %s308, 7
          %s313 = smul.addr %s310, 8
          %s314 = sadd.s32 %s312, %s313
          %s315 = smul.addr %s314, 4
          %s316 = scalar_lea.vmem %s1, %s315
          %s317 = smul.u32 2, %s26
        $region52: #{tpu_custom_call.1} parent=43 // pred_fallthru
          _
      $region44: #{tpu_custom_call.1} parent=5 // pred_fallthru
        _
      %p318 = scmp.le.s32.totalorder 1, %s18
      %p319 = scmp.lt.s32.totalorder %s18, 9
      %p320 = pnand %p318, %p319
      %p321 = pneg %p320
      // Predicated region
      $region53: #{tpu_custom_call.1} parent=5 // pred_check
        _
      $region54: #{tpu_custom_call.1} parent=5 // pred_check_branch
        %323 = sbr.rel (%p320) target = $region56
      $region55: #{tpu_custom_call.1} parent=5 // pred_region
        %s324 = ssub.s32 %s18, 1
        %p325 = scmp.lt.s32.totalorder %s27, 1
        %s326 = scalar_select %p325, %s27, 1
        %s327 = smul.addr %s326, 8
        %s328 = smul.addr %s327, 4
        %s329 = scalar_lea.vmem %s0, %s328
        %p330 = pneg %p56
        %p331 = pneg %p53
        %s332 = smul.u32 2, %s28
        %p333 = scmp.lt.s32.totalorder %s27, 1
        %s334 = scalar_select %p333, %s27, 1
        %p335 = scmp.lt.s32.totalorder %s332, 7
        %s336 = scalar_select %p335, %s332, 7
        %s337 = smul.addr %s334, 8
        %s338 = sadd.s32 %s336, %s337
        %s339 = smul.addr %s338, 4
        %s340 = scalar_lea.vmem %s1, %s339
        %p341 = pneg %p84
        %p342 = pneg %p81
        %p343 = pneg %p105
        %p344 = pneg %p102
        %p345 = pneg %p126
        %p346 = pneg %p123
        %p347 = pneg %p147
        %p348 = pneg %p144
        %p349 = pneg %p168
        %p350 = pneg %p165
        %p351 = pneg %p189
        %p352 = pneg %p186
        %p353 = pneg %p210
        %p354 = pneg %p207
        %p355 = pneg %p231
        %p356 = pneg %p228
        %p357 = pneg %p257
        %p358 = pneg %p254
        %s359 = sand.u32 %s244, 1
        %s360 = scalar_lea.sflag [#allocation4], %s359
        %s361 = sand.u32 %s244, 1
        %s362 = scalar_lea.vmem [#allocation3], %s361
        %p363 = scmp.lt.s32.totalorder %s27, 1
        %s364 = scalar_select %p363, %s27, 1
        %s365 = smul.addr %s364, 8
        %s366 = smul.addr %s365, 4
        %s367 = scalar_lea.vmem %s0, %s366
        %s368 = smul.u32 2, %s28
        %p369 = scmp.lt.s32.totalorder %s27, 1
        %s370 = scalar_select %p369, %s27, 1
        %p371 = scmp.lt.s32.totalorder %s368, 7
        %s372 = scalar_select %p371, %s368, 7
        %s373 = smul.addr %s370, 8
        %s374 = sadd.s32 %s372, %s373
        %s375 = smul.addr %s374, 4
        %s376 = scalar_lea.vmem %s1, %s375
        %s377 = smul.u32 2, %s28
        %p380 = scmp.eq.s32.totalorder %s28, 0
        // Predicated region
        $region57: #{tpu_custom_call.1} parent=55 // pred_check
          %p381 = pneg %p380
        $region58: #{tpu_custom_call.1} parent=55 // pred_check_branch
          %383 = sbr.rel (%p381) target = $region60
        $region59: #{tpu_custom_call.1} parent=55 // pred_region
          %v384 = vld [vmem:[%s367] sm:$0xf]
          %v385 = vld [vmem:[%s367 + $0x4] sm:$0xf]
          %v386 = vld [vmem:[%s367 + $0x8] sm:$0xf]
          %v387 = vld [vmem:[%s367 + $0xc] sm:$0xf]
          %v388 = vld [vmem:[%s367 + $0x10] sm:$0xf]
          %v389 = vld [vmem:[%s367 + $0x14] sm:$0xf]
          %v390 = vld [vmem:[%s367 + $0x18] sm:$0xf]
          %v391 = vld [vmem:[%s367 + $0x1c] sm:$0xf]
          %v392 = vld [vmem:[%s2] sm:$0x3]
          %v401 = vunpack.c.l.b16 %v384
          %v402 = vunpack.c.l.b16 %v385
          %v403 = vunpack.c.l.b16 %v386
          %v404 = vunpack.c.l.b16 %v387
          %v405 = vunpack.c.l.b16 %v388
          %v406 = vunpack.c.l.b16 %v389
          %v407 = vunpack.c.l.b16 %v390
          %v408 = vunpack.c.l.b16 %v391
          %v409 = vpack.c.b16 %v402, %v401
          %v410 = vpack.c.b16 %v404, %v403
          %v411 = vpack.c.b16 %v406, %v405
          %v412 = vpack.c.b16 %v408, %v407
          %vm413 = vcmask 31744
          %v415 = vsel %vm413, %v409, 0
          %v418 = vsel %vm413, %v410, 0
          %v421 = vsel %vm413, %v411, 0
          %v424 = vsel %vm413, %v412, 0
          %vm426 = vcmask 1041408
          %v428 = vsel %vm426, %v392, 0
          %430 = vmatprep.subr.bf16.mxu0 0
          %431 = vmatpush1.bf16.msra.mxu0 %v428
          %432 = vmatprep.subr.bf16.mxu0 0
          %433 = vmatpush1.bf16.msra.mxu0 0
          %434 = vmatprep.subr.bf16.mxu0 0
          %435 = vmatpush1.bf16.msra.mxu0 0
          %436 = vmatprep.subr.bf16.mxu0 0
          %437 = vmatpush1.bf16.msra.mxu0 0
          %438 = vmatprep.subr.bf16.mxu0 0
          %439 = vmatpush1.bf16.msra.mxu0 0
          %440 = vmatprep.subr.bf16.mxu0 0
          %441 = vmatpush1.bf16.msra.mxu0 0
          %442 = vmatprep.subr.bf16.mxu0 0
          %443 = vmatpush1.bf16.msra.mxu0 0
          %444 = vmatprep.subr.bf16.mxu0 0
          %445 = vmatpush1.bf16.msra.mxu0 0
          %446 = vmatprep.subr.bf16.mxu0 0
          %447 = vmatpush1.bf16.msra.mxu0 0
          %448 = vmatprep.subr.bf16.mxu0 0
          %449 = vmatpush1.bf16.msra.mxu0 0
          %450 = vmatprep.subr.bf16.mxu0 0
          %451 = vmatpush1.bf16.msra.mxu0 0
          %452 = vmatprep.subr.bf16.mxu0 0
          %453 = vmatpush1.bf16.msra.mxu0 0
          %454 = vmatprep.subr.bf16.mxu0 0
          %455 = vmatpush1.bf16.msra.mxu0 0
          %456 = vmatprep.subr.bf16.mxu0 0
          %457 = vmatpush1.bf16.msra.mxu0 0
          %458 = vmatprep.subr.bf16.mxu0 0
          %459 = vmatpush1.bf16.msra.mxu0 0
          %460 = vmatprep.subr.bf16.mxu0 0
          %461 = vmatpush1.bf16.msra.mxu0 0
          %462 = vmatprep.mubr.bf16.mxu0 0
          %463 = vmatmul.mubr.bf16.gmra.mrb[0].mxu0 %v415
          %v464 = vpop.f32.mrb[0].mxu0
          %v465 = vadd.f32 0.0, %v464
          %v466 = vpop.f32.mrb[0].mxu0
          %v467 = vpop.f32.mrb[0].mxu0
          %v468 = vadd.f32 0.0, %v467
          %v469 = vpop.f32.mrb[0].mxu0
          %470 = vmatprep.mubr.bf16.mxu0 0
          %471 = vmatmul.mubr.bf16.gmra.mrb[0].mxu0 %v418
          %v472 = vpop.f32.mrb[0].mxu0
          %v473 = vadd.f32 0.0, %v472
          %v474 = vpop.f32.mrb[0].mxu0
          %v475 = vpop.f32.mrb[0].mxu0
          %v476 = vadd.f32 0.0, %v475
          %v477 = vpop.f32.mrb[0].mxu0
          %478 = vmatprep.mubr.bf16.mxu0 0
          %479 = vmatmul.mubr.bf16.gmra.mrb[0].mxu0 %v421
          %v480 = vpop.f32.mrb[0].mxu0
          %v481 = vadd.f32 0.0, %v480
          %v482 = vpop.f32.mrb[0].mxu0
          %v483 = vpop.f32.mrb[0].mxu0
          %v484 = vadd.f32 0.0, %v483
          %v485 = vpop.f32.mrb[0].mxu0
          %486 = vmatprep.mubr.bf16.mxu0 0
          %487 = vmatmul.mubr.bf16.gmra.mrb[0].mxu0 %v424
          %v488 = vpop.f32.mrb[0].mxu0
          %v489 = vadd.f32 0.0, %v488
          %v490 = vpop.f32.mrb[0].mxu0
          %v491 = vpop.f32.mrb[0].mxu0
          %v492 = vadd.f32 0.0, %v491
          %v493 = vpop.f32.mrb[0].mxu0
          %494 = vdwg.mxu0
          %495 = vst [vmem:[#allocation2] sm:$0xff] %v465
          %496 = vst [vmem:[#allocation2 + $0x8] sm:$0xff] %v468
          %497 = vst [vmem:[#allocation2 + $0x10] sm:$0xff] %v473
          %498 = vst [vmem:[#allocation2 + $0x18] sm:$0xff] %v476
          %499 = vst [vmem:[#allocation2 + $0x20] sm:$0xff] %v481
          %500 = vst [vmem:[#allocation2 + $0x28] sm:$0xff] %v484
          %501 = vst [vmem:[#allocation2 + $0x30] sm:$0xff] %v489
          %502 = vst [vmem:[#allocation2 + $0x38] sm:$0xff] %v492
          %503 = vst [vmem:[%s362] sm:$0x1] 0.0
        $region60: #{tpu_custom_call.1} parent=55 // pred_fallthru
          _
        %v504 = vld [vmem:[%s376] sm:$0xf]
        %v505 = vld [vmem:[%s376 + $0x4] sm:$0xf]
        %v506 = vld [vmem:[%s3] sm:$0x3]
        %v509 = vunpack.c.l.b16 %v504
        %v510 = vunpack.c.l.b16 %v505
        %v511 = vpack.c.b16 %v510, %v509
        %vm512 = vcmask 31744
        %v514 = vsel %vm512, %v511, 0
        %vm516 = vcmask 1041408
        %v518 = vsel %vm516, %v506, 0
        %520 = vmatprep.subr.bf16.mxu0 0
        %521 = vmatpush1.bf16.msra.mxu0 %v518
        %522 = vmatprep.subr.bf16.mxu0 0
        %523 = vmatpush1.bf16.msra.mxu0 0
        %524 = vmatprep.subr.bf16.mxu0 0
        %525 = vmatpush1.bf16.msra.mxu0 0
        %526 = vmatprep.subr.bf16.mxu0 0
        %527 = vmatpush1.bf16.msra.mxu0 0
        %528 = vmatprep.subr.bf16.mxu0 0
        %529 = vmatpush1.bf16.msra.mxu0 0
        %530 = vmatprep.subr.bf16.mxu0 0
        %531 = vmatpush1.bf16.msra.mxu0 0
        %532 = vmatprep.subr.bf16.mxu0 0
        %533 = vmatpush1.bf16.msra.mxu0 0
        %534 = vmatprep.subr.bf16.mxu0 0
        %535 = vmatpush1.bf16.msra.mxu0 0
        %536 = vmatprep.subr.bf16.mxu0 0
        %537 = vmatpush1.bf16.msra.mxu0 0
        %538 = vmatprep.subr.bf16.mxu0 0
        %539 = vmatpush1.bf16.msra.mxu0 0
        %540 = vmatprep.subr.bf16.mxu0 0
        %541 = vmatpush1.bf16.msra.mxu0 0
        %542 = vmatprep.subr.bf16.mxu0 0
        %543 = vmatpush1.bf16.msra.mxu0 0
        %544 = vmatprep.subr.bf16.mxu0 0
        %545 = vmatpush1.bf16.msra.mxu0 0
        %546 = vmatprep.subr.bf16.mxu0 0
        %547 = vmatpush1.bf16.msra.mxu0 0
        %548 = vmatprep.subr.bf16.mxu0 0
        %549 = vmatpush1.bf16.msra.mxu0 0
        %550 = vmatprep.subr.bf16.mxu0 0
        %551 = vmatpush1.bf16.msra.mxu0 0
        %552 = vmatprep.mubr.bf16.mxu0 0
        %553 = vmatmul.mubr.bf16.gmra.mrb[0].mxu0 %v514
        %v554 = vpop.f32.mrb[0].mxu0
        %v555 = vadd.f32 0.0, %v554
        %v556 = vpop.f32.mrb[0].mxu0
        %v557 = vpop.f32.mrb[0].mxu0
        %v558 = vadd.f32 0.0, %v557
        %v559 = vpop.f32.mrb[0].mxu0
        %560 = vdwg.mxu0
        %v563 = vcombine.high %v555, %v555
        %v565 = vunpack.c.l.s4 1966171168
        %v566 = vunpack.c.0.s8 %v565
        %v567 = vlaneseq
        %v568 = vshrl.u32 %v567, 7
        %v569 = vsub.s32 %v566, %v568
        %v570 = vrot.slane %v555, %v569
        %v572 = vunpack.c.l.s4 1966171168
        %v573 = vunpack.c.0.s8 %v572
        %v574 = vlaneseq
        %v575 = vshrl.u32 %v574, 7
        %v576 = vsub.s32 %v573, %v575
        %v577 = vrot.slane %v563, %v576
        %v578 = vcombine.high %v570, %v570
        %v579 = vcombine.high %v577, %v577
        %v581 = vunpack.c.l.s4 1966171168
        %v582 = vunpack.c.0.s8 %v581
        %v583 = vlaneseq
        %v584 = vshrl.u32 %v583, 7
        %v585 = vsub.s32 %v582, %v584
        %v586 = vrot.slane %v570, %v585
        %v588 = vunpack.c.l.s4 1966171168
        %v589 = vunpack.c.0.s8 %v588
        %v590 = vlaneseq
        %v591 = vshrl.u32 %v590, 7
        %v592 = vsub.s32 %v589, %v591
        %v593 = vrot.slane %v577, %v592
        %v595 = vunpack.c.l.s4 1966171168
        %v596 = vunpack.c.0.s8 %v595
        %v597 = vlaneseq
        %v598 = vshrl.u32 %v597, 7
        %v599 = vsub.s32 %v596, %v598
        %v600 = vrot.slane %v578, %v599
        %v602 = vunpack.c.l.s4 1966171168
        %v603 = vunpack.c.0.s8 %v602
        %v604 = vlaneseq
        %v605 = vshrl.u32 %v604, 7
        %v606 = vsub.s32 %v603, %v605
        %v607 = vrot.slane %v579, %v606
        %v608 = vcombine.high %v586, %v586
        %v609 = vcombine.high %v593, %v593
        %v610 = vcombine.high %v600, %v600
        %v611 = vcombine.high %v607, %v607
        %v612 = vcombine.high %v558, %v558
        %v614 = vunpack.c.l.s4 1966171168
        %v615 = vunpack.c.0.s8 %v614
        %v616 = vlaneseq
        %v617 = vshrl.u32 %v616, 7
        %v618 = vsub.s32 %v615, %v617
        %v619 = vrot.slane %v558, %v618
        %v621 = vunpack.c.l.s4 1966171168
        %v622 = vunpack.c.0.s8 %v621
        %v623 = vlaneseq
        %v624 = vshrl.u32 %v623, 7
        %v625 = vsub.s32 %v622, %v624
        %v626 = vrot.slane %v612, %v625
        %v627 = vcombine.high %v619, %v619
        %v628 = vcombine.high %v626, %v626
        %v630 = vunpack.c.l.s4 1966171168
        %v631 = vunpack.c.0.s8 %v630
        %v632 = vlaneseq
        %v633 = vshrl.u32 %v632, 7
        %v634 = vsub.s32 %v631, %v633
        %v635 = vrot.slane %v619, %v634
        %v637 = vunpack.c.l.s4 1966171168
        %v638 = vunpack.c.0.s8 %v637
        %v639 = vlaneseq
        %v640 = vshrl.u32 %v639, 7
        %v641 = vsub.s32 %v638, %v640
        %v642 = vrot.slane %v626, %v641
        %v644 = vunpack.c.l.s4 1966171168
        %v645 = vunpack.c.0.s8 %v644
        %v646 = vlaneseq
        %v647 = vshrl.u32 %v646, 7
        %v648 = vsub.s32 %v645, %v647
        %v649 = vrot.slane %v627, %v648
        %v651 = vunpack.c.l.s4 1966171168
        %v652 = vunpack.c.0.s8 %v651
        %v653 = vlaneseq
        %v654 = vshrl.u32 %v653, 7
        %v655 = vsub.s32 %v652, %v654
        %v656 = vrot.slane %v628, %v655
        %v657 = vcombine.high %v635, %v635
        %v658 = vcombine.high %v642, %v642
        %v659 = vcombine.high %v649, %v649
        %v660 = vcombine.high %v656, %v656
        %v661 = vld [vmem:[#allocation2] sm:$0xff]
        %v662 = vld [vmem:[#allocation2 + $0x8] sm:$0xff]
        %v663 = vld [vmem:[#allocation2 + $0x10] sm:$0xff]
        %v664 = vld [vmem:[#allocation2 + $0x18] sm:$0xff]
        %v665 = vld [vmem:[#allocation2 + $0x20] sm:$0xff]
        %v666 = vld [vmem:[#allocation2 + $0x28] sm:$0xff]
        %v667 = vld [vmem:[#allocation2 + $0x30] sm:$0xff]
        %v668 = vld [vmem:[#allocation2 + $0x38] sm:$0xff]
        %v669 = vlaneseq
        %v670 = vshrl.u32 %v669, 7
        %v671 = vsub.s32 0, %v670
        %v672 = vrot.slane %v586, %v671
        %v673 = vlaneseq
        %v674 = vshrl.u32 %v673, 7
        %v675 = vsub.s32 0, %v674
        %v676 = vrot.slane %v600, %v675
        %v677 = vlaneseq
        %v678 = vshrl.u32 %v677, 7
        %v679 = vsub.s32 0, %v678
        %v680 = vrot.slane %v608, %v679
        %v681 = vlaneseq
        %v682 = vshrl.u32 %v681, 7
        %v683 = vsub.s32 0, %v682
        %v684 = vrot.slane %v610, %v683
        %v685 = vlaneseq
        %v686 = vshrl.u32 %v685, 7
        %v687 = vsub.s32 0, %v686
        %v688 = vrot.slane %v593, %v687
        %v689 = vlaneseq
        %v690 = vshrl.u32 %v689, 7
        %v691 = vsub.s32 0, %v690
        %v692 = vrot.slane %v607, %v691
        %v693 = vlaneseq
        %v694 = vshrl.u32 %v693, 7
        %v695 = vsub.s32 0, %v694
        %v696 = vrot.slane %v609, %v695
        %v697 = vlaneseq
        %v698 = vshrl.u32 %v697, 7
        %v699 = vsub.s32 0, %v698
        %v700 = vrot.slane %v611, %v699
        %v701 = vlaneseq
        %v702 = vshrl.u32 %v701, 7
        %v703 = vsub.s32 0, %v702
        %v704 = vrot.slane %v635, %v703
        %v705 = vlaneseq
        %v706 = vshrl.u32 %v705, 7
        %v707 = vsub.s32 0, %v706
        %v708 = vrot.slane %v649, %v707
        %v709 = vlaneseq
        %v710 = vshrl.u32 %v709, 7
        %v711 = vsub.s32 0, %v710
        %v712 = vrot.slane %v657, %v711
        %v713 = vlaneseq
        %v714 = vshrl.u32 %v713, 7
        %v715 = vsub.s32 0, %v714
        %v716 = vrot.slane %v659, %v715
        %v717 = vlaneseq
        %v718 = vshrl.u32 %v717, 7
        %v719 = vsub.s32 0, %v718
        %v720 = vrot.slane %v642, %v719
        %v721 = vlaneseq
        %v722 = vshrl.u32 %v721, 7
        %v723 = vsub.s32 0, %v722
        %v724 = vrot.slane %v656, %v723
        %v725 = vlaneseq
        %v726 = vshrl.u32 %v725, 7
        %v727 = vsub.s32 0, %v726
        %v728 = vrot.slane %v658, %v727
        %v729 = vlaneseq
        %v730 = vshrl.u32 %v729, 7
        %v731 = vsub.s32 0, %v730
        %v732 = vrot.slane %v660, %v731
        %v749 = vadd.f32 %v672, %v661
        %v750 = vadd.f32 %v672, %v662
        %v751 = vadd.f32 %v672, %v663
        %v752 = vadd.f32 %v672, %v664
        %v753 = vadd.f32 %v672, %v665
        %v754 = vadd.f32 %v672, %v666
        %v755 = vadd.f32 %v672, %v667
        %v756 = vadd.f32 %v672, %v668
        %v757 = vadd.f32 %v676, %v661
        %v758 = vadd.f32 %v676, %v662
        %v759 = vadd.f32 %v676, %v663
        %v760 = vadd.f32 %v676, %v664
        %v761 = vadd.f32 %v676, %v665
        %v762 = vadd.f32 %v676, %v666
        %v763 = vadd.f32 %v676, %v667
        %v764 = vadd.f32 %v676, %v668
        %v765 = vadd.f32 %v680, %v661
        %v766 = vadd.f32 %v680, %v662
        %v767 = vadd.f32 %v680, %v663
        %v768 = vadd.f32 %v680, %v664
        %v769 = vadd.f32 %v680, %v665
        %v770 = vadd.f32 %v680, %v666
        %v771 = vadd.f32 %v680, %v667
        %v772 = vadd.f32 %v680, %v668
        %v773 = vadd.f32 %v684, %v661
        %v774 = vadd.f32 %v684, %v662
        %v775 = vadd.f32 %v684, %v663
        %v776 = vadd.f32 %v684, %v664
        %v777 = vadd.f32 %v684, %v665
        %v778 = vadd.f32 %v684, %v666
        %v779 = vadd.f32 %v684, %v667
        %v780 = vadd.f32 %v684, %v668
        %v781 = vadd.f32 %v688, %v661
        %v782 = vadd.f32 %v688, %v662
        %v783 = vadd.f32 %v688, %v663
        %v784 = vadd.f32 %v688, %v664
        %v785 = vadd.f32 %v688, %v665
        %v786 = vadd.f32 %v688, %v666
        %v787 = vadd.f32 %v688, %v667
        %v788 = vadd.f32 %v688, %v668
        %v789 = vadd.f32 %v692, %v661
        %v790 = vadd.f32 %v692, %v662
        %v791 = vadd.f32 %v692, %v663
        %v792 = vadd.f32 %v692, %v664
        %v793 = vadd.f32 %v692, %v665
        %v794 = vadd.f32 %v692, %v666
        %v795 = vadd.f32 %v692, %v667
        %v796 = vadd.f32 %v692, %v668
        %v797 = vadd.f32 %v696, %v661
        %v798 = vadd.f32 %v696, %v662
        %v799 = vadd.f32 %v696, %v663
        %v800 = vadd.f32 %v696, %v664
        %v801 = vadd.f32 %v696, %v665
        %v802 = vadd.f32 %v696, %v666
        %v803 = vadd.f32 %v696, %v667
        %v804 = vadd.f32 %v696, %v668
        %v805 = vadd.f32 %v700, %v661
        %v806 = vadd.f32 %v700, %v662
        %v807 = vadd.f32 %v700, %v663
        %v808 = vadd.f32 %v700, %v664
        %v809 = vadd.f32 %v700, %v665
        %v810 = vadd.f32 %v700, %v666
        %v811 = vadd.f32 %v700, %v667
        %v812 = vadd.f32 %v700, %v668
        %v813 = vadd.f32 %v704, %v661
        %v814 = vadd.f32 %v704, %v662
        %v815 = vadd.f32 %v704, %v663
        %v816 = vadd.f32 %v704, %v664
        %v817 = vadd.f32 %v704, %v665
        %v818 = vadd.f32 %v704, %v666
        %v819 = vadd.f32 %v704, %v667
        %v820 = vadd.f32 %v704, %v668
        %v821 = vadd.f32 %v708, %v661
        %v822 = vadd.f32 %v708, %v662
        %v823 = vadd.f32 %v708, %v663
        %v824 = vadd.f32 %v708, %v664
        %v825 = vadd.f32 %v708, %v665
        %v826 = vadd.f32 %v708, %v666
        %v827 = vadd.f32 %v708, %v667
        %v828 = vadd.f32 %v708, %v668
        %v829 = vadd.f32 %v712, %v661
        %v830 = vadd.f32 %v712, %v662
        %v831 = vadd.f32 %v712, %v663
        %v832 = vadd.f32 %v712, %v664
        %v833 = vadd.f32 %v712, %v665
        %v834 = vadd.f32 %v712, %v666
        %v835 = vadd.f32 %v712, %v667
        %v836 = vadd.f32 %v712, %v668
        %v837 = vadd.f32 %v716, %v661
        %v838 = vadd.f32 %v716, %v662
        %v839 = vadd.f32 %v716, %v663
        %v840 = vadd.f32 %v716, %v664
        %v841 = vadd.f32 %v716, %v665
        %v842 = vadd.f32 %v716, %v666
        %v843 = vadd.f32 %v716, %v667
        %v844 = vadd.f32 %v716, %v668
        %v845 = vadd.f32 %v720, %v661
        %v846 = vadd.f32 %v720, %v662
        %v847 = vadd.f32 %v720, %v663
        %v848 = vadd.f32 %v720, %v664
        %v849 = vadd.f32 %v720, %v665
        %v850 = vadd.f32 %v720, %v666
        %v851 = vadd.f32 %v720, %v667
        %v852 = vadd.f32 %v720, %v668
        %v853 = vadd.f32 %v724, %v661
        %v854 = vadd.f32 %v724, %v662
        %v855 = vadd.f32 %v724, %v663
        %v856 = vadd.f32 %v724, %v664
        %v857 = vadd.f32 %v724, %v665
        %v858 = vadd.f32 %v724, %v666
        %v859 = vadd.f32 %v724, %v667
        %v860 = vadd.f32 %v724, %v668
        %v861 = vadd.f32 %v728, %v661
        %v862 = vadd.f32 %v728, %v662
        %v863 = vadd.f32 %v728, %v663
        %v864 = vadd.f32 %v728, %v664
        %v865 = vadd.f32 %v728, %v665
        %v866 = vadd.f32 %v728, %v666
        %v867 = vadd.f32 %v728, %v667
        %v868 = vadd.f32 %v728, %v668
        %v869 = vadd.f32 %v732, %v661
        %v870 = vadd.f32 %v732, %v662
        %v871 = vadd.f32 %v732, %v663
        %v872 = vadd.f32 %v732, %v664
        %v873 = vadd.f32 %v732, %v665
        %v874 = vadd.f32 %v732, %v666
        %v875 = vadd.f32 %v732, %v667
        %v876 = vadd.f32 %v732, %v668
        %v877 = vld [vmem:[%s4] sm:$0x1]
        %v879 = vlaneseq
        %v880 = vshrl.u32 %v879, 7
        %v881 = vsub.s32 0, %v880
        %v882 = vrot.slane %v877, %v881
        %v884 = vadd.f32 %v749, %v882
        %v885 = vadd.f32 %v750, %v882
        %v886 = vadd.f32 %v751, %v882
        %v887 = vadd.f32 %v752, %v882
        %v888 = vadd.f32 %v753, %v882
        %v889 = vadd.f32 %v754, %v882
        %v890 = vadd.f32 %v755, %v882
        %v891 = vadd.f32 %v756, %v882
        %v892 = vadd.f32 %v757, %v882
        %v893 = vadd.f32 %v758, %v882
        %v894 = vadd.f32 %v759, %v882
        %v895 = vadd.f32 %v760, %v882
        %v896 = vadd.f32 %v761, %v882
        %v897 = vadd.f32 %v762, %v882
        %v898 = vadd.f32 %v763, %v882
        %v899 = vadd.f32 %v764, %v882
        %v900 = vadd.f32 %v765, %v882
        %v901 = vadd.f32 %v766, %v882
        %v902 = vadd.f32 %v767, %v882
        %v903 = vadd.f32 %v768, %v882
        %v904 = vadd.f32 %v769, %v882
        %v905 = vadd.f32 %v770, %v882
        %v906 = vadd.f32 %v771, %v882
        %v907 = vadd.f32 %v772, %v882
        %v908 = vadd.f32 %v773, %v882
        %v909 = vadd.f32 %v774, %v882
        %v910 = vadd.f32 %v775, %v882
        %v911 = vadd.f32 %v776, %v882
        %v912 = vadd.f32 %v777, %v882
        %v913 = vadd.f32 %v778, %v882
        %v914 = vadd.f32 %v779, %v882
        %v915 = vadd.f32 %v780, %v882
        %v916 = vadd.f32 %v781, %v882
        %v917 = vadd.f32 %v782, %v882
        %v918 = vadd.f32 %v783, %v882
        %v919 = vadd.f32 %v784, %v882
        %v920 = vadd.f32 %v785, %v882
        %v921 = vadd.f32 %v786, %v882
        %v922 = vadd.f32 %v787, %v882
        %v923 = vadd.f32 %v788, %v882
        %v924 = vadd.f32 %v789, %v882
        %v925 = vadd.f32 %v790, %v882
        %v926 = vadd.f32 %v791, %v882
        %v927 = vadd.f32 %v792, %v882
        %v928 = vadd.f32 %v793, %v882
        %v929 = vadd.f32 %v794, %v882
        %v930 = vadd.f32 %v795, %v882
        %v931 = vadd.f32 %v796, %v882
        %v932 = vadd.f32 %v797, %v882
        %v933 = vadd.f32 %v798, %v882
        %v934 = vadd.f32 %v799, %v882
        %v935 = vadd.f32 %v800, %v882
        %v936 = vadd.f32 %v801, %v882
        %v937 = vadd.f32 %v802, %v882
        %v938 = vadd.f32 %v803, %v882
        %v939 = vadd.f32 %v804, %v882
        %v940 = vadd.f32 %v805, %v882
        %v941 = vadd.f32 %v806, %v882
        %v942 = vadd.f32 %v807, %v882
        %v943 = vadd.f32 %v808, %v882
        %v944 = vadd.f32 %v809, %v882
        %v945 = vadd.f32 %v810, %v882
        %v946 = vadd.f32 %v811, %v882
        %v947 = vadd.f32 %v812, %v882
        %v948 = vadd.f32 %v813, %v882
        %v949 = vadd.f32 %v814, %v882
        %v950 = vadd.f32 %v815, %v882
        %v951 = vadd.f32 %v816, %v882
        %v952 = vadd.f32 %v817, %v882
        %v953 = vadd.f32 %v818, %v882
        %v954 = vadd.f32 %v819, %v882
        %v955 = vadd.f32 %v820, %v882
        %v956 = vadd.f32 %v821, %v882
        %v957 = vadd.f32 %v822, %v882
        %v958 = vadd.f32 %v823, %v882
        %v959 = vadd.f32 %v824, %v882
        %v960 = vadd.f32 %v825, %v882
        %v961 = vadd.f32 %v826, %v882
        %v962 = vadd.f32 %v827, %v882
        %v963 = vadd.f32 %v828, %v882
        %v964 = vadd.f32 %v829, %v882
        %v965 = vadd.f32 %v830, %v882
        %v966 = vadd.f32 %v831, %v882
        %v967 = vadd.f32 %v832, %v882
        %v968 = vadd.f32 %v833, %v882
        %v969 = vadd.f32 %v834, %v882
        %v970 = vadd.f32 %v835, %v882
        %v971 = vadd.f32 %v836, %v882
        %v972 = vadd.f32 %v837, %v882
        %v973 = vadd.f32 %v838, %v882
        %v974 = vadd.f32 %v839, %v882
        %v975 = vadd.f32 %v840, %v882
        %v976 = vadd.f32 %v841, %v882
        %v977 = vadd.f32 %v842, %v882
        %v978 = vadd.f32 %v843, %v882
        %v979 = vadd.f32 %v844, %v882
        %v980 = vadd.f32 %v845, %v882
        %v981 = vadd.f32 %v846, %v882
        %v982 = vadd.f32 %v847, %v882
        %v983 = vadd.f32 %v848, %v882
        %v984 = vadd.f32 %v849, %v882
        %v985 = vadd.f32 %v850, %v882
        %v986 = vadd.f32 %v851, %v882
        %v987 = vadd.f32 %v852, %v882
        %v988 = vadd.f32 %v853, %v882
        %v989 = vadd.f32 %v854, %v882
        %v990 = vadd.f32 %v855, %v882
        %v991 = vadd.f32 %v856, %v882
        %v992 = vadd.f32 %v857, %v882
        %v993 = vadd.f32 %v858, %v882
        %v994 = vadd.f32 %v859, %v882
        %v995 = vadd.f32 %v860, %v882
        %v996 = vadd.f32 %v861, %v882
        %v997 = vadd.f32 %v862, %v882
        %v998 = vadd.f32 %v863, %v882
        %v999 = vadd.f32 %v864, %v882
        %v1000 = vadd.f32 %v865, %v882
        %v1001 = vadd.f32 %v866, %v882
        %v1002 = vadd.f32 %v867, %v882
        %v1003 = vadd.f32 %v868, %v882
        %v1004 = vadd.f32 %v869, %v882
        %v1005 = vadd.f32 %v870, %v882
        %v1006 = vadd.f32 %v871, %v882
        %v1007 = vadd.f32 %v872, %v882
        %v1008 = vadd.f32 %v873, %v882
        %v1009 = vadd.f32 %v874, %v882
        %v1010 = vadd.f32 %v875, %v882
        %v1011 = vadd.f32 %v876, %v882
        %v1012 = vmax.f32 %v884, 0.0
        %v1013 = vmax.f32 %v885, 0.0
        %v1014 = vmax.f32 %v886, 0.0
        %v1015 = vmax.f32 %v887, 0.0
        %v1016 = vmax.f32 %v888, 0.0
        %v1017 = vmax.f32 %v889, 0.0
        %v1018 = vmax.f32 %v890, 0.0
        %v1019 = vmax.f32 %v891, 0.0
        %v1020 = vmax.f32 %v892, 0.0
        %v1021 = vmax.f32 %v893, 0.0
        %v1022 = vmax.f32 %v894, 0.0
        %v1023 = vmax.f32 %v895, 0.0
        %v1024 = vmax.f32 %v896, 0.0
        %v1025 = vmax.f32 %v897, 0.0
        %v1026 = vmax.f32 %v898, 0.0
        %v1027 = vmax.f32 %v899, 0.0
        %v1028 = vmax.f32 %v900, 0.0
        %v1029 = vmax.f32 %v901, 0.0
        %v1030 = vmax.f32 %v902, 0.0
        %v1031 = vmax.f32 %v903, 0.0
        %v1032 = vmax.f32 %v904, 0.0
        %v1033 = vmax.f32 %v905, 0.0
        %v1034 = vmax.f32 %v906, 0.0
        %v1035 = vmax.f32 %v907, 0.0
        %v1036 = vmax.f32 %v908, 0.0
        %v1037 = vmax.f32 %v909, 0.0
        %v1038 = vmax.f32 %v910, 0.0
        %v1039 = vmax.f32 %v911, 0.0
        %v1040 = vmax.f32 %v912, 0.0
        %v1041 = vmax.f32 %v913, 0.0
        %v1042 = vmax.f32 %v914, 0.0
        %v1043 = vmax.f32 %v915, 0.0
        %v1044 = vmax.f32 %v916, 0.0
        %v1045 = vmax.f32 %v917, 0.0
        %v1046 = vmax.f32 %v918, 0.0
        %v1047 = vmax.f32 %v919, 0.0
        %v1048 = vmax.f32 %v920, 0.0
        %v1049 = vmax.f32 %v921, 0.0
        %v1050 = vmax.f32 %v922, 0.0
        %v1051 = vmax.f32 %v923, 0.0
        %v1052 = vmax.f32 %v924, 0.0
        %v1053 = vmax.f32 %v925, 0.0
        %v1054 = vmax.f32 %v926, 0.0
        %v1055 = vmax.f32 %v927, 0.0
        %v1056 = vmax.f32 %v928, 0.0
        %v1057 = vmax.f32 %v929, 0.0
        %v1058 = vmax.f32 %v930, 0.0
        %v1059 = vmax.f32 %v931, 0.0
        %v1060 = vmax.f32 %v932, 0.0
        %v1061 = vmax.f32 %v933, 0.0
        %v1062 = vmax.f32 %v934, 0.0
        %v1063 = vmax.f32 %v935, 0.0
        %v1064 = vmax.f32 %v936, 0.0
        %v1065 = vmax.f32 %v937, 0.0
        %v1066 = vmax.f32 %v938, 0.0
        %v1067 = vmax.f32 %v939, 0.0
        %v1068 = vmax.f32 %v940, 0.0
        %v1069 = vmax.f32 %v941, 0.0
        %v1070 = vmax.f32 %v942, 0.0
        %v1071 = vmax.f32 %v943, 0.0
        %v1072 = vmax.f32 %v944, 0.0
        %v1073 = vmax.f32 %v945, 0.0
        %v1074 = vmax.f32 %v946, 0.0
        %v1075 = vmax.f32 %v947, 0.0
        %v1076 = vmax.f32 %v948, 0.0
        %v1077 = vmax.f32 %v949, 0.0
        %v1078 = vmax.f32 %v950, 0.0
        %v1079 = vmax.f32 %v951, 0.0
        %v1080 = vmax.f32 %v952, 0.0
        %v1081 = vmax.f32 %v953, 0.0
        %v1082 = vmax.f32 %v954, 0.0
        %v1083 = vmax.f32 %v955, 0.0
        %v1084 = vmax.f32 %v956, 0.0
        %v1085 = vmax.f32 %v957, 0.0
        %v1086 = vmax.f32 %v958, 0.0
        %v1087 = vmax.f32 %v959, 0.0
        %v1088 = vmax.f32 %v960, 0.0
        %v1089 = vmax.f32 %v961, 0.0
        %v1090 = vmax.f32 %v962, 0.0
        %v1091 = vmax.f32 %v963, 0.0
        %v1092 = vmax.f32 %v964, 0.0
        %v1093 = vmax.f32 %v965, 0.0
        %v1094 = vmax.f32 %v966, 0.0
        %v1095 = vmax.f32 %v967, 0.0
        %v1096 = vmax.f32 %v968, 0.0
        %v1097 = vmax.f32 %v969, 0.0
        %v1098 = vmax.f32 %v970, 0.0
        %v1099 = vmax.f32 %v971, 0.0
        %v1100 = vmax.f32 %v972, 0.0
        %v1101 = vmax.f32 %v973, 0.0
        %v1102 = vmax.f32 %v974, 0.0
        %v1103 = vmax.f32 %v975, 0.0
        %v1104 = vmax.f32 %v976, 0.0
        %v1105 = vmax.f32 %v977, 0.0
        %v1106 = vmax.f32 %v978, 0.0
        %v1107 = vmax.f32 %v979, 0.0
        %v1108 = vmax.f32 %v980, 0.0
        %v1109 = vmax.f32 %v981, 0.0
        %v1110 = vmax.f32 %v982, 0.0
        %v1111 = vmax.f32 %v983, 0.0
        %v1112 = vmax.f32 %v984, 0.0
        %v1113 = vmax.f32 %v985, 0.0
        %v1114 = vmax.f32 %v986, 0.0
        %v1115 = vmax.f32 %v987, 0.0
        %v1116 = vmax.f32 %v988, 0.0
        %v1117 = vmax.f32 %v989, 0.0
        %v1118 = vmax.f32 %v990, 0.0
        %v1119 = vmax.f32 %v991, 0.0
        %v1120 = vmax.f32 %v992, 0.0
        %v1121 = vmax.f32 %v993, 0.0
        %v1122 = vmax.f32 %v994, 0.0
        %v1123 = vmax.f32 %v995, 0.0
        %v1124 = vmax.f32 %v996, 0.0
        %v1125 = vmax.f32 %v997, 0.0
        %v1126 = vmax.f32 %v998, 0.0
        %v1127 = vmax.f32 %v999, 0.0
        %v1128 = vmax.f32 %v1000, 0.0
        %v1129 = vmax.f32 %v1001, 0.0
        %v1130 = vmax.f32 %v1002, 0.0
        %v1131 = vmax.f32 %v1003, 0.0
        %v1132 = vmax.f32 %v1004, 0.0
        %v1133 = vmax.f32 %v1005, 0.0
        %v1134 = vmax.f32 %v1006, 0.0
        %v1135 = vmax.f32 %v1007, 0.0
        %v1136 = vmax.f32 %v1008, 0.0
        %v1137 = vmax.f32 %v1009, 0.0
        %v1138 = vmax.f32 %v1010, 0.0
        %v1139 = vmax.f32 %v1011, 0.0
        %v1140 = vpack.c.bf16 %v1013, %v1012
        %v1141 = vpack.c.bf16 %v1015, %v1014
        %v1142 = vpack.c.bf16 %v1017, %v1016
        %v1143 = vpack.c.bf16 %v1019, %v1018
        %v1144 = vpack.c.bf16 %v1021, %v1020
        %v1145 = vpack.c.bf16 %v1023, %v1022
        %v1146 = vpack.c.bf16 %v1025, %v1024
        %v1147 = vpack.c.bf16 %v1027, %v1026
        %v1148 = vpack.c.bf16 %v1029, %v1028
        %v1149 = vpack.c.bf16 %v1031, %v1030
        %v1150 = vpack.c.bf16 %v1033, %v1032
        %v1151 = vpack.c.bf16 %v1035, %v1034
        %v1152 = vpack.c.bf16 %v1037, %v1036
        %v1153 = vpack.c.bf16 %v1039, %v1038
        %v1154 = vpack.c.bf16 %v1041, %v1040
        %v1155 = vpack.c.bf16 %v1043, %v1042
        %v1156 = vpack.c.bf16 %v1045, %v1044
        %v1157 = vpack.c.bf16 %v1047, %v1046
        %v1158 = vpack.c.bf16 %v1049, %v1048
        %v1159 = vpack.c.bf16 %v1051, %v1050
        %v1160 = vpack.c.bf16 %v1053, %v1052
        %v1161 = vpack.c.bf16 %v1055, %v1054
        %v1162 = vpack.c.bf16 %v1057, %v1056
        %v1163 = vpack.c.bf16 %v1059, %v1058
        %v1164 = vpack.c.bf16 %v1061, %v1060
        %v1165 = vpack.c.bf16 %v1063, %v1062
        %v1166 = vpack.c.bf16 %v1065, %v1064
        %v1167 = vpack.c.bf16 %v1067, %v1066
        %v1168 = vpack.c.bf16 %v1069, %v1068
        %v1169 = vpack.c.bf16 %v1071, %v1070
        %v1170 = vpack.c.bf16 %v1073, %v1072
        %v1171 = vpack.c.bf16 %v1075, %v1074
        %v1172 = vpack.c.bf16 %v1077, %v1076
        %v1173 = vpack.c.bf16 %v1079, %v1078
        %v1174 = vpack.c.bf16 %v1081, %v1080
        %v1175 = vpack.c.bf16 %v1083, %v1082
        %v1176 = vpack.c.bf16 %v1085, %v1084
        %v1177 = vpack.c.bf16 %v1087, %v1086
        %v1178 = vpack.c.bf16 %v1089, %v1088
        %v1179 = vpack.c.bf16 %v1091, %v1090
        %v1180 = vpack.c.bf16 %v1093, %v1092
        %v1181 = vpack.c.bf16 %v1095, %v1094
        %v1182 = vpack.c.bf16 %v1097, %v1096
        %v1183 = vpack.c.bf16 %v1099, %v1098
        %v1184 = vpack.c.bf16 %v1101, %v1100
        %v1185 = vpack.c.bf16 %v1103, %v1102
        %v1186 = vpack.c.bf16 %v1105, %v1104
        %v1187 = vpack.c.bf16 %v1107, %v1106
        %v1188 = vpack.c.bf16 %v1109, %v1108
        %v1189 = vpack.c.bf16 %v1111, %v1110
        %v1190 = vpack.c.bf16 %v1113, %v1112
        %v1191 = vpack.c.bf16 %v1115, %v1114
        %v1192 = vpack.c.bf16 %v1117, %v1116
        %v1193 = vpack.c.bf16 %v1119, %v1118
        %v1194 = vpack.c.bf16 %v1121, %v1120
        %v1195 = vpack.c.bf16 %v1123, %v1122
        %v1196 = vpack.c.bf16 %v1125, %v1124
        %v1197 = vpack.c.bf16 %v1127, %v1126
        %v1198 = vpack.c.bf16 %v1129, %v1128
        %v1199 = vpack.c.bf16 %v1131, %v1130
        %v1200 = vpack.c.bf16 %v1133, %v1132
        %v1201 = vpack.c.bf16 %v1135, %v1134
        %v1202 = vpack.c.bf16 %v1137, %v1136
        %v1203 = vpack.c.bf16 %v1139, %v1138
        %v1204 = vld [vmem:[%s5] sm:$0xf]
        %v1205 = vld [vmem:[%s5 + $0x4] sm:$0xf]
        %v1206 = vld [vmem:[%s5 + $0x8] sm:$0xf]
        %v1207 = vld [vmem:[%s5 + $0xc] sm:$0xf]
        %v1208 = vld [vmem:[%s5 + $0x10] sm:$0xf]
        %v1209 = vld [vmem:[%s5 + $0x14] sm:$0xf]
        %v1210 = vld [vmem:[%s5 + $0x18] sm:$0xf]
        %v1211 = vld [vmem:[%s5 + $0x1c] sm:$0xf]
        %v1212 = vld [vmem:[%s5 + $0x20] sm:$0xf]
        %v1213 = vld [vmem:[%s5 + $0x24] sm:$0xf]
        %v1214 = vld [vmem:[%s5 + $0x28] sm:$0xf]
        %v1215 = vld [vmem:[%s5 + $0x2c] sm:$0xf]
        %v1216 = vld [vmem:[%s5 + $0x30] sm:$0xf]
        %v1217 = vld [vmem:[%s5 + $0x34] sm:$0xf]
        %v1218 = vld [vmem:[%s5 + $0x38] sm:$0xf]
        %v1219 = vld [vmem:[%s5 + $0x3c] sm:$0xf]
        %v1220 = vld [vmem:[%s6] sm:$0x1]
        %v1222 = vlaneseq
        %v1223 = vshrl.u32 %v1222, 7
        %v1224 = vsub.s32 0, %v1223
        %v1225 = vrot.slane %v1220, %v1224
        %v1243 = vunpack.c.l.b16 %v1204
        %v1244 = vunpack.c.l.b16 %v1205
        %v1245 = vunpack.c.l.b16 %v1206
        %v1246 = vunpack.c.l.b16 %v1207
        %v1247 = vunpack.c.l.b16 %v1208
        %v1248 = vunpack.c.l.b16 %v1209
        %v1249 = vunpack.c.l.b16 %v1210
        %v1250 = vunpack.c.l.b16 %v1211
        %v1251 = vunpack.c.l.b16 %v1212
        %v1252 = vunpack.c.l.b16 %v1213
        %v1253 = vunpack.c.l.b16 %v1214
        %v1254 = vunpack.c.l.b16 %v1215
        %v1255 = vunpack.c.l.b16 %v1216
        %v1256 = vunpack.c.l.b16 %v1217
        %v1257 = vunpack.c.l.b16 %v1218
        %v1258 = vunpack.c.l.b16 %v1219
        %v1259 = vpack.c.b16 %v1244, %v1243
        %v1260 = vpack.c.b16 %v1246, %v1245
        %v1261 = vpack.c.b16 %v1248, %v1247
        %v1262 = vpack.c.b16 %v1250, %v1249
        %v1263 = vpack.c.b16 %v1252, %v1251
        %v1264 = vpack.c.b16 %v1254, %v1253
        %v1265 = vpack.c.b16 %v1256, %v1255
        %v1266 = vpack.c.b16 %v1258, %v1257
        %1275 = vmatprep.subr.bf16.mxu0 0
        %1276 = vmatpush1.bf16.msra.mxu0 %v1259
        %1277 = vmatprep.subr.bf16.mxu0 0
        %1278 = vmatpush1.bf16.msra.mxu0 %v1260
        %1279 = vmatprep.subr.bf16.mxu0 0
        %1280 = vmatpush1.bf16.msra.mxu0 %v1261
        %1281 = vmatprep.subr.bf16.mxu0 0
        %1282 = vmatpush1.bf16.msra.mxu0 %v1262
        %1283 = vmatprep.subr.bf16.mxu0 0
        %1284 = vmatpush1.bf16.msra.mxu0 %v1263
        %1285 = vmatprep.subr.bf16.mxu0 0
        %1286 = vmatpush1.bf16.msra.mxu0 %v1264
        %1287 = vmatprep.subr.bf16.mxu0 0
        %1288 = vmatpush1.bf16.msra.mxu0 %v1265
        %1289 = vmatprep.subr.bf16.mxu0 0
        %1290 = vmatpush1.bf16.msra.mxu0 %v1266
        %1291 = vmatprep.subr.bf16.mxu0 0
        %1292 = vmatpush1.bf16.msra.mxu0 0
        %1293 = vmatprep.subr.bf16.mxu0 0
        %1294 = vmatpush1.bf16.msra.mxu0 0
        %1295 = vmatprep.subr.bf16.mxu0 0
        %1296 = vmatpush1.bf16.msra.mxu0 0
        %1297 = vmatprep.subr.bf16.mxu0 0
        %1298 = vmatpush1.bf16.msra.mxu0 0
        %1299 = vmatprep.subr.bf16.mxu0 0
        %1300 = vmatpush1.bf16.msra.mxu0 0
        %1301 = vmatprep.subr.bf16.mxu0 0
        %1302 = vmatpush1.bf16.msra.mxu0 0
        %1303 = vmatprep.subr.bf16.mxu0 0
        %1304 = vmatpush1.bf16.msra.mxu0 0
        %1305 = vmatprep.subr.bf16.mxu0 0
        %1306 = vmatpush1.bf16.msra.mxu0 0
        %1307 = vmatprep.mubr.bf16.mxu0 0
        %1308 = vmatmul.mubr.bf16.gmra.mrb[0].mxu0 %v1140
        %v1309 = vpop.f32.mrb[0].mxu0
        %v1310 = vadd.f32 %v1225, %v1309
        %v1311 = vpop.f32.mrb[0].mxu0
        %v1312 = vpop.f32.mrb[0].mxu0
        %v1313 = vadd.f32 %v1225, %v1312
        %v1314 = vpop.f32.mrb[0].mxu0
        %1315 = vmatprep.mubr.bf16.mxu0 0
        %1316 = vmatmul.mubr.bf16.gmra.mrb[0].mxu0 %v1141
        %v1317 = vpop.f32.mrb[0].mxu0
        %v1318 = vadd.f32 %v1225, %v1317
        %v1319 = vpop.f32.mrb[0].mxu0
        %v1320 = vpop.f32.mrb[0].mxu0
        %v1321 = vadd.f32 %v1225, %v1320
        %v1322 = vpop.f32.mrb[0].mxu0
        %1323 = vmatprep.mubr.bf16.mxu0 0
        %1324 = vmatmul.mubr.bf16.gmra.mrb[0].mxu0 %v1142
        %v1325 = vpop.f32.mrb[0].mxu0
        %v1326 = vadd.f32 %v1225, %v1325
        %v1327 = vpop.f32.mrb[0].mxu0
        %v1328 = vpop.f32.mrb[0].mxu0
        %v1329 = vadd.f32 %v1225, %v1328
        %v1330 = vpop.f32.mrb[0].mxu0
        %1331 = vmatprep.mubr.bf16.mxu0 0
        %1332 = vmatmul.mubr.bf16.gmra.mrb[0].mxu0 %v1143
        %v1333 = vpop.f32.mrb[0].mxu0
        %v1334 = vadd.f32 %v1225, %v1333
        %v1335 = vpop.f32.mrb[0].mxu0
        %v1336 = vpop.f32.mrb[0].mxu0
        %v1337 = vadd.f32 %v1225, %v1336
        %v1338 = vpop.f32.mrb[0].mxu0
        %1339 = vmatprep.mubr.bf16.mxu0 0
        %1340 = vmatmul.mubr.bf16.gmra.mrb[0].mxu0 %v1144
        %v1341 = vpop.f32.mrb[0].mxu0
        %v1342 = vadd.f32 %v1225, %v1341
        %v1343 = vpop.f32.mrb[0].mxu0
        %v1344 = vpop.f32.mrb[0].mxu0
        %v1345 = vadd.f32 %v1225, %v1344
        %v1346 = vpop.f32.mrb[0].mxu0
        %1347 = vmatprep.mubr.bf16.mxu0 0
        %1348 = vmatmul.mubr.bf16.gmra.mrb[0].mxu0 %v1145
        %v1349 = vpop.f32.mrb[0].mxu0
        %v1350 = vadd.f32 %v1225, %v1349
        %v1351 = vpop.f32.mrb[0].mxu0
        %v1352 = vpop.f32.mrb[0].mxu0
        %v1353 = vadd.f32 %v1225, %v1352
        %v1354 = vpop.f32.mrb[0].mxu0
        %1355 = vmatprep.mubr.bf16.mxu0 0
        %1356 = vmatmul.mubr.bf16.gmra.mrb[0].mxu0 %v1146
        %v1357 = vpop.f32.mrb[0].mxu0
        %v1358 = vadd.f32 %v1225, %v1357
        %v1359 = vpop.f32.mrb[0].mxu0
        %v1360 = vpop.f32.mrb[0].mxu0
        %v1361 = vadd.f32 %v1225, %v1360
        %v1362 = vpop.f32.mrb[0].mxu0
        %1363 = vmatprep.mubr.bf16.mxu0 0
        %1364 = vmatmul.mubr.bf16.gmra.mrb[0].mxu0 %v1147
        %v1365 = vpop.f32.mrb[0].mxu0
        %v1366 = vadd.f32 %v1225, %v1365
        %v1367 = vpop.f32.mrb[0].mxu0
        %v1368 = vpop.f32.mrb[0].mxu0
        %v1369 = vadd.f32 %v1225, %v1368
        %v1370 = vpop.f32.mrb[0].mxu0
        %1371 = vmatprep.mubr.bf16.mxu0 0
        %1372 = vmatmul.mubr.bf16.gmra.mrb[0].mxu0 %v1148
        %v1373 = vpop.f32.mrb[0].mxu0
        %v1374 = vadd.f32 %v1225, %v1373
        %v1375 = vpop.f32.mrb[0].mxu0
        %v1376 = vpop.f32.mrb[0].mxu0
        %v1377 = vadd.f32 %v1225, %v1376
        %v1378 = vpop.f32.mrb[0].mxu0
        %1379 = vmatprep.mubr.bf16.mxu0 0
        %1380 = vmatmul.mubr.bf16.gmra.mrb[0].mxu0 %v1149
        %v1381 = vpop.f32.mrb[0].mxu0
        %v1382 = vadd.f32 %v1225, %v1381
        %v1383 = vpop.f32.mrb[0].mxu0
        %v1384 = vpop.f32.mrb[0].mxu0
        %v1385 = vadd.f32 %v1225, %v1384
        %v1386 = vpop.f32.mrb[0].mxu0
        %1387 = vmatprep.mubr.bf16.mxu0 0
        %1388 = vmatmul.mubr.bf16.gmra.mrb[0].mxu0 %v1150
        %v1389 = vpop.f32.mrb[0].mxu0
        %v1390 = vadd.f32 %v1225, %v1389
        %v1391 = vpop.f32.mrb[0].mxu0
        %v1392 = vpop.f32.mrb[0].mxu0
        %v1393 = vadd.f32 %v1225, %v1392
        %v1394 = vpop.f32.mrb[0].mxu0
        %1395 = vmatprep.mubr.bf16.mxu0 0
        %1396 = vmatmul.mubr.bf16.gmra.mrb[0].mxu0 %v1151
        %v1397 = vpop.f32.mrb[0].mxu0
        %v1398 = vadd.f32 %v1225, %v1397
        %v1399 = vpop.f32.mrb[0].mxu0
        %v1400 = vpop.f32.mrb[0].mxu0
        %v1401 = vadd.f32 %v1225, %v1400
        %v1402 = vpop.f32.mrb[0].mxu0
        %1403 = vmatprep.mubr.bf16.mxu0 0
        %1404 = vmatmul.mubr.bf16.gmra.mrb[0].mxu0 %v1152
        %v1405 = vpop.f32.mrb[0].mxu0
        %v1406 = vadd.f32 %v1225, %v1405
        %v1407 = vpop.f32.mrb[0].mxu0
        %v1408 = vpop.f32.mrb[0].mxu0
        %v1409 = vadd.f32 %v1225, %v1408
        %v1410 = vpop.f32.mrb[0].mxu0
        %1411 = vmatprep.mubr.bf16.mxu0 0
        %1412 = vmatmul.mubr.bf16.gmra.mrb[0].mxu0 %v1153
        %v1413 = vpop.f32.mrb[0].mxu0
        %v1414 = vadd.f32 %v1225, %v1413
        %v1415 = vpop.f32.mrb[0].mxu0
        %v1416 = vpop.f32.mrb[0].mxu0
        %v1417 = vadd.f32 %v1225, %v1416
        %v1418 = vpop.f32.mrb[0].mxu0
        %1419 = vmatprep.mubr.bf16.mxu0 0
        %1420 = vmatmul.mubr.bf16.gmra.mrb[0].mxu0 %v1154
        %v1421 = vpop.f32.mrb[0].mxu0
        %v1422 = vadd.f32 %v1225, %v1421
        %v1423 = vpop.f32.mrb[0].mxu0
        %v1424 = vpop.f32.mrb[0].mxu0
        %v1425 = vadd.f32 %v1225, %v1424
        %v1426 = vpop.f32.mrb[0].mxu0
        %1427 = vmatprep.mubr.bf16.mxu0 0
        %1428 = vmatmul.mubr.bf16.gmra.mrb[0].mxu0 %v1155
        %v1429 = vpop.f32.mrb[0].mxu0
        %v1430 = vadd.f32 %v1225, %v1429
        %v1431 = vpop.f32.mrb[0].mxu0
        %v1432 = vpop.f32.mrb[0].mxu0
        %v1433 = vadd.f32 %v1225, %v1432
        %v1434 = vpop.f32.mrb[0].mxu0
        %1435 = vmatprep.mubr.bf16.mxu0 0
        %1436 = vmatmul.mubr.bf16.gmra.mrb[0].mxu0 %v1156
        %v1437 = vpop.f32.mrb[0].mxu0
        %v1438 = vadd.f32 %v1225, %v1437
        %v1439 = vpop.f32.mrb[0].mxu0
        %v1440 = vpop.f32.mrb[0].mxu0
        %v1441 = vadd.f32 %v1225, %v1440
        %v1442 = vpop.f32.mrb[0].mxu0
        %1443 = vmatprep.mubr.bf16.mxu0 0
        %1444 = vmatmul.mubr.bf16.gmra.mrb[0].mxu0 %v1157
        %v1445 = vpop.f32.mrb[0].mxu0
        %v1446 = vadd.f32 %v1225, %v1445
        %v1447 = vpop.f32.mrb[0].mxu0
        %v1448 = vpop.f32.mrb[0].mxu0
        %v1449 = vadd.f32 %v1225, %v1448
        %v1450 = vpop.f32.mrb[0].mxu0
        %1451 = vmatprep.mubr.bf16.mxu0 0
        %1452 = vmatmul.mubr.bf16.gmra.mrb[0].mxu0 %v1158
        %v1453 = vpop.f32.mrb[0].mxu0
        %v1454 = vadd.f32 %v1225, %v1453
        %v1455 = vpop.f32.mrb[0].mxu0
        %v1456 = vpop.f32.mrb[0].mxu0
        %v1457 = vadd.f32 %v1225, %v1456
        %v1458 = vpop.f32.mrb[0].mxu0
        %1459 = vmatprep.mubr.bf16.mxu0 0
        %1460 = vmatmul.mubr.bf16.gmra.mrb[0].mxu0 %v1159
        %v1461 = vpop.f32.mrb[0].mxu0
        %v1462 = vadd.f32 %v1225, %v1461
        %v1463 = vpop.f32.mrb[0].mxu0
        %v1464 = vpop.f32.mrb[0].mxu0
        %v1465 = vadd.f32 %v1225, %v1464
        %v1466 = vpop.f32.mrb[0].mxu0
        %1467 = vmatprep.mubr.bf16.mxu0 0
        %1468 = vmatmul.mubr.bf16.gmra.mrb[0].mxu0 %v1160
        %v1469 = vpop.f32.mrb[0].mxu0
        %v1470 = vadd.f32 %v1225, %v1469
        %v1471 = vpop.f32.mrb[0].mxu0
        %v1472 = vpop.f32.mrb[0].mxu0
        %v1473 = vadd.f32 %v1225, %v1472
        %v1474 = vpop.f32.mrb[0].mxu0
        %1475 = vmatprep.mubr.bf16.mxu0 0
        %1476 = vmatmul.mubr.bf16.gmra.mrb[0].mxu0 %v1161
        %v1477 = vpop.f32.mrb[0].mxu0
        %v1478 = vadd.f32 %v1225, %v1477
        %v1479 = vpop.f32.mrb[0].mxu0
        %v1480 = vpop.f32.mrb[0].mxu0
        %v1481 = vadd.f32 %v1225, %v1480
        %v1482 = vpop.f32.mrb[0].mxu0
        %1483 = vmatprep.mubr.bf16.mxu0 0
        %1484 = vmatmul.mubr.bf16.gmra.mrb[0].mxu0 %v1162
        %v1485 = vpop.f32.mrb[0].mxu0
        %v1486 = vadd.f32 %v1225, %v1485
        %v1487 = vpop.f32.mrb[0].mxu0
        %v1488 = vpop.f32.mrb[0].mxu0
        %v1489 = vadd.f32 %v1225, %v1488
        %v1490 = vpop.f32.mrb[0].mxu0
        %1491 = vmatprep.mubr.bf16.mxu0 0
        %1492 = vmatmul.mubr.bf16.gmra.mrb[0].mxu0 %v1163
        %v1493 = vpop.f32.mrb[0].mxu0
        %v1494 = vadd.f32 %v1225, %v1493
        %v1495 = vpop.f32.mrb[0].mxu0
        %v1496 = vpop.f32.mrb[0].mxu0
        %v1497 = vadd.f32 %v1225, %v1496
        %v1498 = vpop.f32.mrb[0].mxu0
        %1499 = vmatprep.mubr.bf16.mxu0 0
        %1500 = vmatmul.mubr.bf16.gmra.mrb[0].mxu0 %v1164
        %v1501 = vpop.f32.mrb[0].mxu0
        %v1502 = vadd.f32 %v1225, %v1501
        %v1503 = vpop.f32.mrb[0].mxu0
        %v1504 = vpop.f32.mrb[0].mxu0
        %v1505 = vadd.f32 %v1225, %v1504
        %v1506 = vpop.f32.mrb[0].mxu0
        %1507 = vmatprep.mubr.bf16.mxu0 0
        %1508 = vmatmul.mubr.bf16.gmra.mrb[0].mxu0 %v1165
        %v1509 = vpop.f32.mrb[0].mxu0
        %v1510 = vadd.f32 %v1225, %v1509
        %v1511 = vpop.f32.mrb[0].mxu0
        %v1512 = vpop.f32.mrb[0].mxu0
        %v1513 = vadd.f32 %v1225, %v1512
        %v1514 = vpop.f32.mrb[0].mxu0
        %1515 = vmatprep.mubr.bf16.mxu0 0
        %1516 = vmatmul.mubr.bf16.gmra.mrb[0].mxu0 %v1166
        %v1517 = vpop.f32.mrb[0].mxu0
        %v1518 = vadd.f32 %v1225, %v1517
        %v1519 = vpop.f32.mrb[0].mxu0
        %v1520 = vpop.f32.mrb[0].mxu0
        %v1521 = vadd.f32 %v1225, %v1520
        %v1522 = vpop.f32.mrb[0].mxu0
        %1523 = vmatprep.mubr.bf16.mxu0 0
        %1524 = vmatmul.mubr.bf16.gmra.mrb[0].mxu0 %v1167
        %v1525 = vpop.f32.mrb[0].mxu0
        %v1526 = vadd.f32 %v1225, %v1525
        %v1527 = vpop.f32.mrb[0].mxu0
        %v1528 = vpop.f32.mrb[0].mxu0
        %v1529 = vadd.f32 %v1225, %v1528
        %v1530 = vpop.f32.mrb[0].mxu0
        %1531 = vmatprep.mubr.bf16.mxu0 0
        %1532 = vmatmul.mubr.bf16.gmra.mrb[0].mxu0 %v1168
        %v1533 = vpop.f32.mrb[0].mxu0
        %v1534 = vadd.f32 %v1225, %v1533
        %v1535 = vpop.f32.mrb[0].mxu0
        %v1536 = vpop.f32.mrb[0].mxu0
        %v1537 = vadd.f32 %v1225, %v1536
        %v1538 = vpop.f32.mrb[0].mxu0
        %1539 = vmatprep.mubr.bf16.mxu0 0
        %1540 = vmatmul.mubr.bf16.gmra.mrb[0].mxu0 %v1169
        %v1541 = vpop.f32.mrb[0].mxu0
        %v1542 = vadd.f32 %v1225, %v1541
        %v1543 = vpop.f32.mrb[0].mxu0
        %v1544 = vpop.f32.mrb[0].mxu0
        %v1545 = vadd.f32 %v1225, %v1544
        %v1546 = vpop.f32.mrb[0].mxu0
        %1547 = vmatprep.mubr.bf16.mxu0 0
        %1548 = vmatmul.mubr.bf16.gmra.mrb[0].mxu0 %v1170
        %v1549 = vpop.f32.mrb[0].mxu0
        %v1550 = vadd.f32 %v1225, %v1549
        %v1551 = vpop.f32.mrb[0].mxu0
        %v1552 = vpop.f32.mrb[0].mxu0
        %v1553 = vadd.f32 %v1225, %v1552
        %v1554 = vpop.f32.mrb[0].mxu0
        %1555 = vmatprep.mubr.bf16.mxu0 0
        %1556 = vmatmul.mubr.bf16.gmra.mrb[0].mxu0 %v1171
        %v1557 = vpop.f32.mrb[0].mxu0
        %v1558 = vadd.f32 %v1225, %v1557
        %v1559 = vpop.f32.mrb[0].mxu0
        %v1560 = vpop.f32.mrb[0].mxu0
        %v1561 = vadd.f32 %v1225, %v1560
        %v1562 = vpop.f32.mrb[0].mxu0
        %1563 = vmatprep.mubr.bf16.mxu0 0
        %1564 = vmatmul.mubr.bf16.gmra.mrb[0].mxu0 %v1172
        %v1565 = vpop.f32.mrb[0].mxu0
        %v1566 = vadd.f32 %v1225, %v1565
        %v1567 = vpop.f32.mrb[0].mxu0
        %v1568 = vpop.f32.mrb[0].mxu0
        %v1569 = vadd.f32 %v1225, %v1568
        %v1570 = vpop.f32.mrb[0].mxu0
        %1571 = vmatprep.mubr.bf16.mxu0 0
        %1572 = vmatmul.mubr.bf16.gmra.mrb[0].mxu0 %v1173
        %v1573 = vpop.f32.mrb[0].mxu0
        %v1574 = vadd.f32 %v1225, %v1573
        %v1575 = vpop.f32.mrb[0].mxu0
        %v1576 = vpop.f32.mrb[0].mxu0
        %v1577 = vadd.f32 %v1225, %v1576
        %v1578 = vpop.f32.mrb[0].mxu0
        %1579 = vmatprep.mubr.bf16.mxu0 0
        %1580 = vmatmul.mubr.bf16.gmra.mrb[0].mxu0 %v1174
        %v1581 = vpop.f32.mrb[0].mxu0
        %v1582 = vadd.f32 %v1225, %v1581
        %v1583 = vpop.f32.mrb[0].mxu0
        %v1584 = vpop.f32.mrb[0].mxu0
        %v1585 = vadd.f32 %v1225, %v1584
        %v1586 = vpop.f32.mrb[0].mxu0
        %1587 = vmatprep.mubr.bf16.mxu0 0
        %1588 = vmatmul.mubr.bf16.gmra.mrb[0].mxu0 %v1175
        %v1589 = vpop.f32.mrb[0].mxu0
        %v1590 = vadd.f32 %v1225, %v1589
        %v1591 = vpop.f32.mrb[0].mxu0
        %v1592 = vpop.f32.mrb[0].mxu0
        %v1593 = vadd.f32 %v1225, %v1592
        %v1594 = vpop.f32.mrb[0].mxu0
        %1595 = vmatprep.mubr.bf16.mxu0 0
        %1596 = vmatmul.mubr.bf16.gmra.mrb[0].mxu0 %v1176
        %v1597 = vpop.f32.mrb[0].mxu0
        %v1598 = vadd.f32 %v1225, %v1597
        %v1599 = vpop.f32.mrb[0].mxu0
        %v1600 = vpop.f32.mrb[0].mxu0
        %v1601 = vadd.f32 %v1225, %v1600
        %v1602 = vpop.f32.mrb[0].mxu0
        %1603 = vmatprep.mubr.bf16.mxu0 0
        %1604 = vmatmul.mubr.bf16.gmra.mrb[0].mxu0 %v1177
        %v1605 = vpop.f32.mrb[0].mxu0
        %v1606 = vadd.f32 %v1225, %v1605
        %v1607 = vpop.f32.mrb[0].mxu0
        %v1608 = vpop.f32.mrb[0].mxu0
        %v1609 = vadd.f32 %v1225, %v1608
        %v1610 = vpop.f32.mrb[0].mxu0
        %1611 = vmatprep.mubr.bf16.mxu0 0
        %1612 = vmatmul.mubr.bf16.gmra.mrb[0].mxu0 %v1178
        %v1613 = vpop.f32.mrb[0].mxu0
        %v1614 = vadd.f32 %v1225, %v1613
        %v1615 = vpop.f32.mrb[0].mxu0
        %v1616 = vpop.f32.mrb[0].mxu0
        %v1617 = vadd.f32 %v1225, %v1616
        %v1618 = vpop.f32.mrb[0].mxu0
        %1619 = vmatprep.mubr.bf16.mxu0 0
        %1620 = vmatmul.mubr.bf16.gmra.mrb[0].mxu0 %v1179
        %v1621 = vpop.f32.mrb[0].mxu0
        %v1622 = vadd.f32 %v1225, %v1621
        %v1623 = vpop.f32.mrb[0].mxu0
        %v1624 = vpop.f32.mrb[0].mxu0
        %v1625 = vadd.f32 %v1225, %v1624
        %v1626 = vpop.f32.mrb[0].mxu0
        %1627 = vmatprep.mubr.bf16.mxu0 0
        %1628 = vmatmul.mubr.bf16.gmra.mrb[0].mxu0 %v1180
        %v1629 = vpop.f32.mrb[0].mxu0
        %v1630 = vadd.f32 %v1225, %v1629
        %v1631 = vpop.f32.mrb[0].mxu0
        %v1632 = vpop.f32.mrb[0].mxu0
        %v1633 = vadd.f32 %v1225, %v1632
        %v1634 = vpop.f32.mrb[0].mxu0
        %1635 = vmatprep.mubr.bf16.mxu0 0
        %1636 = vmatmul.mubr.bf16.gmra.mrb[0].mxu0 %v1181
        %v1637 = vpop.f32.mrb[0].mxu0
        %v1638 = vadd.f32 %v1225, %v1637
        %v1639 = vpop.f32.mrb[0].mxu0
        %v1640 = vpop.f32.mrb[0].mxu0
        %v1641 = vadd.f32 %v1225, %v1640
        %v1642 = vpop.f32.mrb[0].mxu0
        %1643 = vmatprep.mubr.bf16.mxu0 0
        %1644 = vmatmul.mubr.bf16.gmra.mrb[0].mxu0 %v1182
        %v1645 = vpop.f32.mrb[0].mxu0
        %v1646 = vadd.f32 %v1225, %v1645
        %v1647 = vpop.f32.mrb[0].mxu0
        %v1648 = vpop.f32.mrb[0].mxu0
        %v1649 = vadd.f32 %v1225, %v1648
        %v1650 = vpop.f32.mrb[0].mxu0
        %1651 = vmatprep.mubr.bf16.mxu0 0
        %1652 = vmatmul.mubr.bf16.gmra.mrb[0].mxu0 %v1183
        %v1653 = vpop.f32.mrb[0].mxu0
        %v1654 = vadd.f32 %v1225, %v1653
        %v1655 = vpop.f32.mrb[0].mxu0
        %v1656 = vpop.f32.mrb[0].mxu0
        %v1657 = vadd.f32 %v1225, %v1656
        %v1658 = vpop.f32.mrb[0].mxu0
        %1659 = vmatprep.mubr.bf16.mxu0 0
        %1660 = vmatmul.mubr.bf16.gmra.mrb[0].mxu0 %v1184
        %v1661 = vpop.f32.mrb[0].mxu0
        %v1662 = vadd.f32 %v1225, %v1661
        %v1663 = vpop.f32.mrb[0].mxu0
        %v1664 = vpop.f32.mrb[0].mxu0
        %v1665 = vadd.f32 %v1225, %v1664
        %v1666 = vpop.f32.mrb[0].mxu0
        %1667 = vmatprep.mubr.bf16.mxu0 0
        %1668 = vmatmul.mubr.bf16.gmra.mrb[0].mxu0 %v1185
        %v1669 = vpop.f32.mrb[0].mxu0
        %v1670 = vadd.f32 %v1225, %v1669
        %v1671 = vpop.f32.mrb[0].mxu0
        %v1672 = vpop.f32.mrb[0].mxu0
        %v1673 = vadd.f32 %v1225, %v1672
        %v1674 = vpop.f32.mrb[0].mxu0
        %1675 = vmatprep.mubr.bf16.mxu0 0
        %1676 = vmatmul.mubr.bf16.gmra.mrb[0].mxu0 %v1186
        %v1677 = vpop.f32.mrb[0].mxu0
        %v1678 = vadd.f32 %v1225, %v1677
        %v1679 = vpop.f32.mrb[0].mxu0
        %v1680 = vpop.f32.mrb[0].mxu0
        %v1681 = vadd.f32 %v1225, %v1680
        %v1682 = vpop.f32.mrb[0].mxu0
        %1683 = vmatprep.mubr.bf16.mxu0 0
        %1684 = vmatmul.mubr.bf16.gmra.mrb[0].mxu0 %v1187
        %v1685 = vpop.f32.mrb[0].mxu0
        %v1686 = vadd.f32 %v1225, %v1685
        %v1687 = vpop.f32.mrb[0].mxu0
        %v1688 = vpop.f32.mrb[0].mxu0
        %v1689 = vadd.f32 %v1225, %v1688
        %v1690 = vpop.f32.mrb[0].mxu0
        %1691 = vmatprep.mubr.bf16.mxu0 0
        %1692 = vmatmul.mubr.bf16.gmra.mrb[0].mxu0 %v1188
        %v1693 = vpop.f32.mrb[0].mxu0
        %v1694 = vadd.f32 %v1225, %v1693
        %v1695 = vpop.f32.mrb[0].mxu0
        %v1696 = vpop.f32.mrb[0].mxu0
        %v1697 = vadd.f32 %v1225, %v1696
        %v1698 = vpop.f32.mrb[0].mxu0
        %1699 = vmatprep.mubr.bf16.mxu0 0
        %1700 = vmatmul.mubr.bf16.gmra.mrb[0].mxu0 %v1189
        %v1701 = vpop.f32.mrb[0].mxu0
        %v1702 = vadd.f32 %v1225, %v1701
        %v1703 = vpop.f32.mrb[0].mxu0
        %v1704 = vpop.f32.mrb[0].mxu0
        %v1705 = vadd.f32 %v1225, %v1704
        %v1706 = vpop.f32.mrb[0].mxu0
        %1707 = vmatprep.mubr.bf16.mxu0 0
        %1708 = vmatmul.mubr.bf16.gmra.mrb[0].mxu0 %v1190
        %v1709 = vpop.f32.mrb[0].mxu0
        %v1710 = vadd.f32 %v1225, %v1709
        %v1711 = vpop.f32.mrb[0].mxu0
        %v1712 = vpop.f32.mrb[0].mxu0
        %v1713 = vadd.f32 %v1225, %v1712
        %v1714 = vpop.f32.mrb[0].mxu0
        %1715 = vmatprep.mubr.bf16.mxu0 0
        %1716 = vmatmul.mubr.bf16.gmra.mrb[0].mxu0 %v1191
        %v1717 = vpop.f32.mrb[0].mxu0
        %v1718 = vadd.f32 %v1225, %v1717
        %v1719 = vpop.f32.mrb[0].mxu0
        %v1720 = vpop.f32.mrb[0].mxu0
        %v1721 = vadd.f32 %v1225, %v1720
        %v1722 = vpop.f32.mrb[0].mxu0
        %1723 = vmatprep.mubr.bf16.mxu0 0
        %1724 = vmatmul.mubr.bf16.gmra.mrb[0].mxu0 %v1192
        %v1725 = vpop.f32.mrb[0].mxu0
        %v1726 = vadd.f32 %v1225, %v1725
        %v1727 = vpop.f32.mrb[0].mxu0
        %v1728 = vpop.f32.mrb[0].mxu0
        %v1729 = vadd.f32 %v1225, %v1728
        %v1730 = vpop.f32.mrb[0].mxu0
        %1731 = vmatprep.mubr.bf16.mxu0 0
        %1732 = vmatmul.mubr.bf16.gmra.mrb[0].mxu0 %v1193
        %v1733 = vpop.f32.mrb[0].mxu0
        %v1734 = vadd.f32 %v1225, %v1733
        %v1735 = vpop.f32.mrb[0].mxu0
        %v1736 = vpop.f32.mrb[0].mxu0
        %v1737 = vadd.f32 %v1225, %v1736
        %v1738 = vpop.f32.mrb[0].mxu0
        %1739 = vmatprep.mubr.bf16.mxu0 0
        %1740 = vmatmul.mubr.bf16.gmra.mrb[0].mxu0 %v1194
        %v1741 = vpop.f32.mrb[0].mxu0
        %v1742 = vadd.f32 %v1225, %v1741
        %v1743 = vpop.f32.mrb[0].mxu0
        %v1744 = vpop.f32.mrb[0].mxu0
        %v1745 = vadd.f32 %v1225, %v1744
        %v1746 = vpop.f32.mrb[0].mxu0
        %1747 = vmatprep.mubr.bf16.mxu0 0
        %1748 = vmatmul.mubr.bf16.gmra.mrb[0].mxu0 %v1195
        %v1749 = vpop.f32.mrb[0].mxu0
        %v1750 = vadd.f32 %v1225, %v1749
        %v1751 = vpop.f32.mrb[0].mxu0
        %v1752 = vpop.f32.mrb[0].mxu0
        %v1753 = vadd.f32 %v1225, %v1752
        %v1754 = vpop.f32.mrb[0].mxu0
        %1755 = vmatprep.mubr.bf16.mxu0 0
        %1756 = vmatmul.mubr.bf16.gmra.mrb[0].mxu0 %v1196
        %v1757 = vpop.f32.mrb[0].mxu0
        %v1758 = vadd.f32 %v1225, %v1757
        %v1759 = vpop.f32.mrb[0].mxu0
        %v1760 = vpop.f32.mrb[0].mxu0
        %v1761 = vadd.f32 %v1225, %v1760
        %v1762 = vpop.f32.mrb[0].mxu0
        %1763 = vmatprep.mubr.bf16.mxu0 0
        %1764 = vmatmul.mubr.bf16.gmra.mrb[0].mxu0 %v1197
        %v1765 = vpop.f32.mrb[0].mxu0
        %v1766 = vadd.f32 %v1225, %v1765
        %v1767 = vpop.f32.mrb[0].mxu0
        %v1768 = vpop.f32.mrb[0].mxu0
        %v1769 = vadd.f32 %v1225, %v1768
        %v1770 = vpop.f32.mrb[0].mxu0
        %1771 = vmatprep.mubr.bf16.mxu0 0
        %1772 = vmatmul.mubr.bf16.gmra.mrb[0].mxu0 %v1198
        %v1773 = vpop.f32.mrb[0].mxu0
        %v1774 = vadd.f32 %v1225, %v1773
        %v1775 = vpop.f32.mrb[0].mxu0
        %v1776 = vpop.f32.mrb[0].mxu0
        %v1777 = vadd.f32 %v1225, %v1776
        %v1778 = vpop.f32.mrb[0].mxu0
        %1779 = vmatprep.mubr.bf16.mxu0 0
        %1780 = vmatmul.mubr.bf16.gmra.mrb[0].mxu0 %v1199
        %v1781 = vpop.f32.mrb[0].mxu0
        %v1782 = vadd.f32 %v1225, %v1781
        %v1783 = vpop.f32.mrb[0].mxu0
        %v1784 = vpop.f32.mrb[0].mxu0
        %v1785 = vadd.f32 %v1225, %v1784
        %v1786 = vpop.f32.mrb[0].mxu0
        %1787 = vmatprep.mubr.bf16.mxu0 0
        %1788 = vmatmul.mubr.bf16.gmra.mrb[0].mxu0 %v1200
        %v1789 = vpop.f32.mrb[0].mxu0
        %v1790 = vadd.f32 %v1225, %v1789
        %v1791 = vpop.f32.mrb[0].mxu0
        %v1792 = vpop.f32.mrb[0].mxu0
        %v1793 = vadd.f32 %v1225, %v1792
        %v1794 = vpop.f32.mrb[0].mxu0
        %1795 = vmatprep.mubr.bf16.mxu0 0
        %1796 = vmatmul.mubr.bf16.gmra.mrb[0].mxu0 %v1201
        %v1797 = vpop.f32.mrb[0].mxu0
        %v1798 = vadd.f32 %v1225, %v1797
        %v1799 = vpop.f32.mrb[0].mxu0
        %v1800 = vpop.f32.mrb[0].mxu0
        %v1801 = vadd.f32 %v1225, %v1800
        %v1802 = vpop.f32.mrb[0].mxu0
        %1803 = vmatprep.mubr.bf16.mxu0 0
        %1804 = vmatmul.mubr.bf16.gmra.mrb[0].mxu0 %v1202
        %v1805 = vpop.f32.mrb[0].mxu0
        %v1806 = vadd.f32 %v1225, %v1805
        %v1807 = vpop.f32.mrb[0].mxu0
        %v1808 = vpop.f32.mrb[0].mxu0
        %v1809 = vadd.f32 %v1225, %v1808
        %v1810 = vpop.f32.mrb[0].mxu0
        %1811 = vmatprep.mubr.bf16.mxu0 0
        %1812 = vmatmul.mubr.bf16.gmra.mrb[0].mxu0 %v1203
        %v1813 = vpop.f32.mrb[0].mxu0
        %v1814 = vadd.f32 %v1225, %v1813
        %v1815 = vpop.f32.mrb[0].mxu0
        %v1816 = vpop.f32.mrb[0].mxu0
        %v1817 = vadd.f32 %v1225, %v1816
        %v1818 = vpop.f32.mrb[0].mxu0
        %1819 = vdwg.mxu0
        %v1820 = vmax.f32 %v1310, 0.0
        %v1821 = vmax.f32 %v1313, 0.0
        %v1822 = vmax.f32 %v1318, 0.0
        %v1823 = vmax.f32 %v1321, 0.0
        %v1824 = vmax.f32 %v1326, 0.0
        %v1825 = vmax.f32 %v1329, 0.0
        %v1826 = vmax.f32 %v1334, 0.0
        %v1827 = vmax.f32 %v1337, 0.0
        %v1828 = vmax.f32 %v1342, 0.0
        %v1829 = vmax.f32 %v1345, 0.0
        %v1830 = vmax.f32 %v1350, 0.0
        %v1831 = vmax.f32 %v1353, 0.0
        %v1832 = vmax.f32 %v1358, 0.0
        %v1833 = vmax.f32 %v1361, 0.0
        %v1834 = vmax.f32 %v1366, 0.0
        %v1835 = vmax.f32 %v1369, 0.0
        %v1836 = vmax.f32 %v1374, 0.0
        %v1837 = vmax.f32 %v1377, 0.0
        %v1838 = vmax.f32 %v1382, 0.0
        %v1839 = vmax.f32 %v1385, 0.0
        %v1840 = vmax.f32 %v1390, 0.0
        %v1841 = vmax.f32 %v1393, 0.0
        %v1842 = vmax.f32 %v1398, 0.0
        %v1843 = vmax.f32 %v1401, 0.0
        %v1844 = vmax.f32 %v1406, 0.0
        %v1845 = vmax.f32 %v1409, 0.0
        %v1846 = vmax.f32 %v1414, 0.0
        %v1847 = vmax.f32 %v1417, 0.0
        %v1848 = vmax.f32 %v1422, 0.0
        %v1849 = vmax.f32 %v1425, 0.0
        %v1850 = vmax.f32 %v1430, 0.0
        %v1851 = vmax.f32 %v1433, 0.0
        %v1852 = vmax.f32 %v1438, 0.0
        %v1853 = vmax.f32 %v1441, 0.0
        %v1854 = vmax.f32 %v1446, 0.0
        %v1855 = vmax.f32 %v1449, 0.0
        %v1856 = vmax.f32 %v1454, 0.0
        %v1857 = vmax.f32 %v1457, 0.0
        %v1858 = vmax.f32 %v1462, 0.0
        %v1859 = vmax.f32 %v1465, 0.0
        %v1860 = vmax.f32 %v1470, 0.0
        %v1861 = vmax.f32 %v1473, 0.0
        %v1862 = vmax.f32 %v1478, 0.0
        %v1863 = vmax.f32 %v1481, 0.0
        %v1864 = vmax.f32 %v1486, 0.0
        %v1865 = vmax.f32 %v1489, 0.0
        %v1866 = vmax.f32 %v1494, 0.0
        %v1867 = vmax.f32 %v1497, 0.0
        %v1868 = vmax.f32 %v1502, 0.0
        %v1869 = vmax.f32 %v1505, 0.0
        %v1870 = vmax.f32 %v1510, 0.0
        %v1871 = vmax.f32 %v1513, 0.0
        %v1872 = vmax.f32 %v1518, 0.0
        %v1873 = vmax.f32 %v1521, 0.0
        %v1874 = vmax.f32 %v1526, 0.0
        %v1875 = vmax.f32 %v1529, 0.0
        %v1876 = vmax.f32 %v1534, 0.0
        %v1877 = vmax.f32 %v1537, 0.0
        %v1878 = vmax.f32 %v1542, 0.0
        %v1879 = vmax.f32 %v1545, 0.0
        %v1880 = vmax.f32 %v1550, 0.0
        %v1881 = vmax.f32 %v1553, 0.0
        %v1882 = vmax.f32 %v1558, 0.0
        %v1883 = vmax.f32 %v1561, 0.0
        %v1884 = vmax.f32 %v1566, 0.0
        %v1885 = vmax.f32 %v1569, 0.0
        %v1886 = vmax.f32 %v1574, 0.0
        %v1887 = vmax.f32 %v1577, 0.0
        %v1888 = vmax.f32 %v1582, 0.0
        %v1889 = vmax.f32 %v1585, 0.0
        %v1890 = vmax.f32 %v1590, 0.0
        %v1891 = vmax.f32 %v1593, 0.0
        %v1892 = vmax.f32 %v1598, 0.0
        %v1893 = vmax.f32 %v1601, 0.0
        %v1894 = vmax.f32 %v1606, 0.0
        %v1895 = vmax.f32 %v1609, 0.0
        %v1896 = vmax.f32 %v1614, 0.0
        %v1897 = vmax.f32 %v1617, 0.0
        %v1898 = vmax.f32 %v1622, 0.0
        %v1899 = vmax.f32 %v1625, 0.0
        %v1900 = vmax.f32 %v1630, 0.0
        %v1901 = vmax.f32 %v1633, 0.0
        %v1902 = vmax.f32 %v1638, 0.0
        %v1903 = vmax.f32 %v1641, 0.0
        %v1904 = vmax.f32 %v1646, 0.0
        %v1905 = vmax.f32 %v1649, 0.0
        %v1906 = vmax.f32 %v1654, 0.0
        %v1907 = vmax.f32 %v1657, 0.0
        %v1908 = vmax.f32 %v1662, 0.0
        %v1909 = vmax.f32 %v1665, 0.0
        %v1910 = vmax.f32 %v1670, 0.0
        %v1911 = vmax.f32 %v1673, 0.0
        %v1912 = vmax.f32 %v1678, 0.0
        %v1913 = vmax.f32 %v1681, 0.0
        %v1914 = vmax.f32 %v1686, 0.0
        %v1915 = vmax.f32 %v1689, 0.0
        %v1916 = vmax.f32 %v1694, 0.0
        %v1917 = vmax.f32 %v1697, 0.0
        %v1918 = vmax.f32 %v1702, 0.0
        %v1919 = vmax.f32 %v1705, 0.0
        %v1920 = vmax.f32 %v1710, 0.0
        %v1921 = vmax.f32 %v1713, 0.0
        %v1922 = vmax.f32 %v1718, 0.0
        %v1923 = vmax.f32 %v1721, 0.0
        %v1924 = vmax.f32 %v1726, 0.0
        %v1925 = vmax.f32 %v1729, 0.0
        %v1926 = vmax.f32 %v1734, 0.0
        %v1927 = vmax.f32 %v1737, 0.0
        %v1928 = vmax.f32 %v1742, 0.0
        %v1929 = vmax.f32 %v1745, 0.0
        %v1930 = vmax.f32 %v1750, 0.0
        %v1931 = vmax.f32 %v1753, 0.0
        %v1932 = vmax.f32 %v1758, 0.0
        %v1933 = vmax.f32 %v1761, 0.0
        %v1934 = vmax.f32 %v1766, 0.0
        %v1935 = vmax.f32 %v1769, 0.0
        %v1936 = vmax.f32 %v1774, 0.0
        %v1937 = vmax.f32 %v1777, 0.0
        %v1938 = vmax.f32 %v1782, 0.0
        %v1939 = vmax.f32 %v1785, 0.0
        %v1940 = vmax.f32 %v1790, 0.0
        %v1941 = vmax.f32 %v1793, 0.0
        %v1942 = vmax.f32 %v1798, 0.0
        %v1943 = vmax.f32 %v1801, 0.0
        %v1944 = vmax.f32 %v1806, 0.0
        %v1945 = vmax.f32 %v1809, 0.0
        %v1946 = vmax.f32 %v1814, 0.0
        %v1947 = vmax.f32 %v1817, 0.0
        %v1948 = vpack.c.bf16 %v1821, %v1820
        %v1949 = vpack.c.bf16 %v1823, %v1822
        %v1950 = vpack.c.bf16 %v1825, %v1824
        %v1951 = vpack.c.bf16 %v1827, %v1826
        %v1952 = vpack.c.bf16 %v1829, %v1828
        %v1953 = vpack.c.bf16 %v1831, %v1830
        %v1954 = vpack.c.bf16 %v1833, %v1832
        %v1955 = vpack.c.bf16 %v1835, %v1834
        %v1956 = vpack.c.bf16 %v1837, %v1836
        %v1957 = vpack.c.bf16 %v1839, %v1838
        %v1958 = vpack.c.bf16 %v1841, %v1840
        %v1959 = vpack.c.bf16 %v1843, %v1842
        %v1960 = vpack.c.bf16 %v1845, %v1844
        %v1961 = vpack.c.bf16 %v1847, %v1846
        %v1962 = vpack.c.bf16 %v1849, %v1848
        %v1963 = vpack.c.bf16 %v1851, %v1850
        %v1964 = vpack.c.bf16 %v1853, %v1852
        %v1965 = vpack.c.bf16 %v1855, %v1854
        %v1966 = vpack.c.bf16 %v1857, %v1856
        %v1967 = vpack.c.bf16 %v1859, %v1858
        %v1968 = vpack.c.bf16 %v1861, %v1860
        %v1969 = vpack.c.bf16 %v1863, %v1862
        %v1970 = vpack.c.bf16 %v1865, %v1864
        %v1971 = vpack.c.bf16 %v1867, %v1866
        %v1972 = vpack.c.bf16 %v1869, %v1868
        %v1973 = vpack.c.bf16 %v1871, %v1870
        %v1974 = vpack.c.bf16 %v1873, %v1872
        %v1975 = vpack.c.bf16 %v1875, %v1874
        %v1976 = vpack.c.bf16 %v1877, %v1876
        %v1977 = vpack.c.bf16 %v1879, %v1878
        %v1978 = vpack.c.bf16 %v1881, %v1880
        %v1979 = vpack.c.bf16 %v1883, %v1882
        %v1980 = vpack.c.bf16 %v1885, %v1884
        %v1981 = vpack.c.bf16 %v1887, %v1886
        %v1982 = vpack.c.bf16 %v1889, %v1888
        %v1983 = vpack.c.bf16 %v1891, %v1890
        %v1984 = vpack.c.bf16 %v1893, %v1892
        %v1985 = vpack.c.bf16 %v1895, %v1894
        %v1986 = vpack.c.bf16 %v1897, %v1896
        %v1987 = vpack.c.bf16 %v1899, %v1898
        %v1988 = vpack.c.bf16 %v1901, %v1900
        %v1989 = vpack.c.bf16 %v1903, %v1902
        %v1990 = vpack.c.bf16 %v1905, %v1904
        %v1991 = vpack.c.bf16 %v1907, %v1906
        %v1992 = vpack.c.bf16 %v1909, %v1908
        %v1993 = vpack.c.bf16 %v1911, %v1910
        %v1994 = vpack.c.bf16 %v1913, %v1912
        %v1995 = vpack.c.bf16 %v1915, %v1914
        %v1996 = vpack.c.bf16 %v1917, %v1916
        %v1997 = vpack.c.bf16 %v1919, %v1918
        %v1998 = vpack.c.bf16 %v1921, %v1920
        %v1999 = vpack.c.bf16 %v1923, %v1922
        %v2000 = vpack.c.bf16 %v1925, %v1924
        %v2001 = vpack.c.bf16 %v1927, %v1926
        %v2002 = vpack.c.bf16 %v1929, %v1928
        %v2003 = vpack.c.bf16 %v1931, %v1930
        %v2004 = vpack.c.bf16 %v1933, %v1932
        %v2005 = vpack.c.bf16 %v1935, %v1934
        %v2006 = vpack.c.bf16 %v1937, %v1936
        %v2007 = vpack.c.bf16 %v1939, %v1938
        %v2008 = vpack.c.bf16 %v1941, %v1940
        %v2009 = vpack.c.bf16 %v1943, %v1942
        %v2010 = vpack.c.bf16 %v1945, %v1944
        %v2011 = vpack.c.bf16 %v1947, %v1946
        %v2012 = vld [vmem:[%s7] sm:$0xf]
        %v2013 = vld [vmem:[%s7 + $0x4] sm:$0xf]
        %v2014 = vld [vmem:[%s7 + $0x8] sm:$0xf]
        %v2015 = vld [vmem:[%s7 + $0xc] sm:$0xf]
        %v2016 = vld [vmem:[%s7 + $0x10] sm:$0xf]
        %v2017 = vld [vmem:[%s7 + $0x14] sm:$0xf]
        %v2018 = vld [vmem:[%s7 + $0x18] sm:$0xf]
        %v2019 = vld [vmem:[%s7 + $0x1c] sm:$0xf]
        %v2020 = vld [vmem:[%s7 + $0x20] sm:$0xf]
        %v2021 = vld [vmem:[%s7 + $0x24] sm:$0xf]
        %v2022 = vld [vmem:[%s7 + $0x28] sm:$0xf]
        %v2023 = vld [vmem:[%s7 + $0x2c] sm:$0xf]
        %v2024 = vld [vmem:[%s7 + $0x30] sm:$0xf]
        %v2025 = vld [vmem:[%s7 + $0x34] sm:$0xf]
        %v2026 = vld [vmem:[%s7 + $0x38] sm:$0xf]
        %v2027 = vld [vmem:[%s7 + $0x3c] sm:$0xf]
        %v2028 = vld [vmem:[%s8] sm:$0x1]
        %v2030 = vlaneseq
        %v2031 = vshrl.u32 %v2030, 7
        %v2032 = vsub.s32 0, %v2031
        %v2033 = vrot.slane %v2028, %v2032
        %v2051 = vunpack.c.l.b16 %v2012
        %v2052 = vunpack.c.l.b16 %v2013
        %v2053 = vunpack.c.l.b16 %v2014
        %v2054 = vunpack.c.l.b16 %v2015
        %v2055 = vunpack.c.l.b16 %v2016
        %v2056 = vunpack.c.l.b16 %v2017
        %v2057 = vunpack.c.l.b16 %v2018
        %v2058 = vunpack.c.l.b16 %v2019
        %v2059 = vunpack.c.l.b16 %v2020
        %v2060 = vunpack.c.l.b16 %v2021
        %v2061 = vunpack.c.l.b16 %v2022
        %v2062 = vunpack.c.l.b16 %v2023
        %v2063 = vunpack.c.l.b16 %v2024
        %v2064 = vunpack.c.l.b16 %v2025
        %v2065 = vunpack.c.l.b16 %v2026
        %v2066 = vunpack.c.l.b16 %v2027
        %v2067 = vpack.c.b16 %v2052, %v2051
        %v2068 = vpack.c.b16 %v2054, %v2053
        %v2069 = vpack.c.b16 %v2056, %v2055
        %v2070 = vpack.c.b16 %v2058, %v2057
        %v2071 = vpack.c.b16 %v2060, %v2059
        %v2072 = vpack.c.b16 %v2062, %v2061
        %v2073 = vpack.c.b16 %v2064, %v2063
        %v2074 = vpack.c.b16 %v2066, %v2065
        %2083 = vmatprep.subr.bf16.mxu0 0
        %2084 = vmatpush1.bf16.msra.mxu0 %v2067
        %2085 = vmatprep.subr.bf16.mxu0 0
        %2086 = vmatpush1.bf16.msra.mxu0 %v2068
        %2087 = vmatprep.subr.bf16.mxu0 0
        %2088 = vmatpush1.bf16.msra.mxu0 %v2069
        %2089 = vmatprep.subr.bf16.mxu0 0
        %2090 = vmatpush1.bf16.msra.mxu0 %v2070
        %2091 = vmatprep.subr.bf16.mxu0 0
        %2092 = vmatpush1.bf16.msra.mxu0 %v2071
        %2093 = vmatprep.subr.bf16.mxu0 0
        %2094 = vmatpush1.bf16.msra.mxu0 %v2072
        %2095 = vmatprep.subr.bf16.mxu0 0
        %2096 = vmatpush1.bf16.msra.mxu0 %v2073
        %2097 = vmatprep.subr.bf16.mxu0 0
        %2098 = vmatpush1.bf16.msra.mxu0 %v2074
        %2099 = vmatprep.subr.bf16.mxu0 0
        %2100 = vmatpush1.bf16.msra.mxu0 0
        %2101 = vmatprep.subr.bf16.mxu0 0
        %2102 = vmatpush1.bf16.msra.mxu0 0
        %2103 = vmatprep.subr.bf16.mxu0 0
        %2104 = vmatpush1.bf16.msra.mxu0 0
        %2105 = vmatprep.subr.bf16.mxu0 0
        %2106 = vmatpush1.bf16.msra.mxu0 0
        %2107 = vmatprep.subr.bf16.mxu0 0
        %2108 = vmatpush1.bf16.msra.mxu0 0
        %2109 = vmatprep.subr.bf16.mxu0 0
        %2110 = vmatpush1.bf16.msra.mxu0 0
        %2111 = vmatprep.subr.bf16.mxu0 0
        %2112 = vmatpush1.bf16.msra.mxu0 0
        %2113 = vmatprep.subr.bf16.mxu0 0
        %2114 = vmatpush1.bf16.msra.mxu0 0
        %2115 = vmatprep.mubr.bf16.mxu0 0
        %2116 = vmatmul.mubr.bf16.gmra.mrb[0].mxu0 %v1948
        %v2117 = vpop.f32.mrb[0].mxu0
        %v2118 = vadd.f32 %v2033, %v2117
        %v2119 = vpop.f32.mrb[0].mxu0
        %v2120 = vpop.f32.mrb[0].mxu0
        %v2121 = vadd.f32 %v2033, %v2120
        %v2122 = vpop.f32.mrb[0].mxu0
        %2123 = vmatprep.mubr.bf16.mxu0 0
        %2124 = vmatmul.mubr.bf16.gmra.mrb[0].mxu0 %v1949
        %v2125 = vpop.f32.mrb[0].mxu0
        %v2126 = vadd.f32 %v2033, %v2125
        %v2127 = vpop.f32.mrb[0].mxu0
        %v2128 = vpop.f32.mrb[0].mxu0
        %v2129 = vadd.f32 %v2033, %v2128
        %v2130 = vpop.f32.mrb[0].mxu0
        %2131 = vmatprep.mubr.bf16.mxu0 0
        %2132 = vmatmul.mubr.bf16.gmra.mrb[0].mxu0 %v1950
        %v2133 = vpop.f32.mrb[0].mxu0
        %v2134 = vadd.f32 %v2033, %v2133
        %v2135 = vpop.f32.mrb[0].mxu0
        %v2136 = vpop.f32.mrb[0].mxu0
        %v2137 = vadd.f32 %v2033, %v2136
        %v2138 = vpop.f32.mrb[0].mxu0
        %2139 = vmatprep.mubr.bf16.mxu0 0
        %2140 = vmatmul.mubr.bf16.gmra.mrb[0].mxu0 %v1951
        %v2141 = vpop.f32.mrb[0].mxu0
        %v2142 = vadd.f32 %v2033, %v2141
        %v2143 = vpop.f32.mrb[0].mxu0
        %v2144 = vpop.f32.mrb[0].mxu0
        %v2145 = vadd.f32 %v2033, %v2144
        %v2146 = vpop.f32.mrb[0].mxu0
        %2147 = vmatprep.mubr.bf16.mxu0 0
        %2148 = vmatmul.mubr.bf16.gmra.mrb[0].mxu0 %v1952
        %v2149 = vpop.f32.mrb[0].mxu0
        %v2150 = vadd.f32 %v2033, %v2149
        %v2151 = vpop.f32.mrb[0].mxu0
        %v2152 = vpop.f32.mrb[0].mxu0
        %v2153 = vadd.f32 %v2033, %v2152
        %v2154 = vpop.f32.mrb[0].mxu0
        %2155 = vmatprep.mubr.bf16.mxu0 0
        %2156 = vmatmul.mubr.bf16.gmra.mrb[0].mxu0 %v1953
        %v2157 = vpop.f32.mrb[0].mxu0
        %v2158 = vadd.f32 %v2033, %v2157
        %v2159 = vpop.f32.mrb[0].mxu0
        %v2160 = vpop.f32.mrb[0].mxu0
        %v2161 = vadd.f32 %v2033, %v2160
        %v2162 = vpop.f32.mrb[0].mxu0
        %2163 = vmatprep.mubr.bf16.mxu0 0
        %2164 = vmatmul.mubr.bf16.gmra.mrb[0].mxu0 %v1954
        %v2165 = vpop.f32.mrb[0].mxu0
        %v2166 = vadd.f32 %v2033, %v2165
        %v2167 = vpop.f32.mrb[0].mxu0
        %v2168 = vpop.f32.mrb[0].mxu0
        %v2169 = vadd.f32 %v2033, %v2168
        %v2170 = vpop.f32.mrb[0].mxu0
        %2171 = vmatprep.mubr.bf16.mxu0 0
        %2172 = vmatmul.mubr.bf16.gmra.mrb[0].mxu0 %v1955
        %v2173 = vpop.f32.mrb[0].mxu0
        %v2174 = vadd.f32 %v2033, %v2173
        %v2175 = vpop.f32.mrb[0].mxu0
        %v2176 = vpop.f32.mrb[0].mxu0
        %v2177 = vadd.f32 %v2033, %v2176
        %v2178 = vpop.f32.mrb[0].mxu0
        %2179 = vmatprep.mubr.bf16.mxu0 0
        %2180 = vmatmul.mubr.bf16.gmra.mrb[0].mxu0 %v1956
        %v2181 = vpop.f32.mrb[0].mxu0
        %v2182 = vadd.f32 %v2033, %v2181
        %v2183 = vpop.f32.mrb[0].mxu0
        %v2184 = vpop.f32.mrb[0].mxu0
        %v2185 = vadd.f32 %v2033, %v2184
        %v2186 = vpop.f32.mrb[0].mxu0
        %2187 = vmatprep.mubr.bf16.mxu0 0
        %2188 = vmatmul.mubr.bf16.gmra.mrb[0].mxu0 %v1957
        %v2189 = vpop.f32.mrb[0].mxu0
        %v2190 = vadd.f32 %v2033, %v2189
        %v2191 = vpop.f32.mrb[0].mxu0
        %v2192 = vpop.f32.mrb[0].mxu0
        %v2193 = vadd.f32 %v2033, %v2192
        %v2194 = vpop.f32.mrb[0].mxu0
        %2195 = vmatprep.mubr.bf16.mxu0 0
        %2196 = vmatmul.mubr.bf16.gmra.mrb[0].mxu0 %v1958
        %v2197 = vpop.f32.mrb[0].mxu0
        %v2198 = vadd.f32 %v2033, %v2197
        %v2199 = vpop.f32.mrb[0].mxu0
        %v2200 = vpop.f32.mrb[0].mxu0
        %v2201 = vadd.f32 %v2033, %v2200
        %v2202 = vpop.f32.mrb[0].mxu0
        %2203 = vmatprep.mubr.bf16.mxu0 0
        %2204 = vmatmul.mubr.bf16.gmra.mrb[0].mxu0 %v1959
        %v2205 = vpop.f32.mrb[0].mxu0
        %v2206 = vadd.f32 %v2033, %v2205
        %v2207 = vpop.f32.mrb[0].mxu0
        %v2208 = vpop.f32.mrb[0].mxu0
        %v2209 = vadd.f32 %v2033, %v2208
        %v2210 = vpop.f32.mrb[0].mxu0
        %2211 = vmatprep.mubr.bf16.mxu0 0
        %2212 = vmatmul.mubr.bf16.gmra.mrb[0].mxu0 %v1960
        %v2213 = vpop.f32.mrb[0].mxu0
        %v2214 = vadd.f32 %v2033, %v2213
        %v2215 = vpop.f32.mrb[0].mxu0
        %v2216 = vpop.f32.mrb[0].mxu0
        %v2217 = vadd.f32 %v2033, %v2216
        %v2218 = vpop.f32.mrb[0].mxu0
        %2219 = vmatprep.mubr.bf16.mxu0 0
        %2220 = vmatmul.mubr.bf16.gmra.mrb[0].mxu0 %v1961
        %v2221 = vpop.f32.mrb[0].mxu0
        %v2222 = vadd.f32 %v2033, %v2221
        %v2223 = vpop.f32.mrb[0].mxu0
        %v2224 = vpop.f32.mrb[0].mxu0
        %v2225 = vadd.f32 %v2033, %v2224
        %v2226 = vpop.f32.mrb[0].mxu0
        %2227 = vmatprep.mubr.bf16.mxu0 0
        %2228 = vmatmul.mubr.bf16.gmra.mrb[0].mxu0 %v1962
        %v2229 = vpop.f32.mrb[0].mxu0
        %v2230 = vadd.f32 %v2033, %v2229
        %v2231 = vpop.f32.mrb[0].mxu0
        %v2232 = vpop.f32.mrb[0].mxu0
        %v2233 = vadd.f32 %v2033, %v2232
        %v2234 = vpop.f32.mrb[0].mxu0
        %2235 = vmatprep.mubr.bf16.mxu0 0
        %2236 = vmatmul.mubr.bf16.gmra.mrb[0].mxu0 %v1963
        %v2237 = vpop.f32.mrb[0].mxu0
        %v2238 = vadd.f32 %v2033, %v2237
        %v2239 = vpop.f32.mrb[0].mxu0
        %v2240 = vpop.f32.mrb[0].mxu0
        %v2241 = vadd.f32 %v2033, %v2240
        %v2242 = vpop.f32.mrb[0].mxu0
        %2243 = vmatprep.mubr.bf16.mxu0 0
        %2244 = vmatmul.mubr.bf16.gmra.mrb[0].mxu0 %v1964
        %v2245 = vpop.f32.mrb[0].mxu0
        %v2246 = vadd.f32 %v2033, %v2245
        %v2247 = vpop.f32.mrb[0].mxu0
        %v2248 = vpop.f32.mrb[0].mxu0
        %v2249 = vadd.f32 %v2033, %v2248
        %v2250 = vpop.f32.mrb[0].mxu0
        %2251 = vmatprep.mubr.bf16.mxu0 0
        %2252 = vmatmul.mubr.bf16.gmra.mrb[0].mxu0 %v1965
        %v2253 = vpop.f32.mrb[0].mxu0
        %v2254 = vadd.f32 %v2033, %v2253
        %v2255 = vpop.f32.mrb[0].mxu0
        %v2256 = vpop.f32.mrb[0].mxu0
        %v2257 = vadd.f32 %v2033, %v2256
        %v2258 = vpop.f32.mrb[0].mxu0
        %2259 = vmatprep.mubr.bf16.mxu0 0
        %2260 = vmatmul.mubr.bf16.gmra.mrb[0].mxu0 %v1966
        %v2261 = vpop.f32.mrb[0].mxu0
        %v2262 = vadd.f32 %v2033, %v2261
        %v2263 = vpop.f32.mrb[0].mxu0
        %v2264 = vpop.f32.mrb[0].mxu0
        %v2265 = vadd.f32 %v2033, %v2264
        %v2266 = vpop.f32.mrb[0].mxu0
        %2267 = vmatprep.mubr.bf16.mxu0 0
        %2268 = vmatmul.mubr.bf16.gmra.mrb[0].mxu0 %v1967
        %v2269 = vpop.f32.mrb[0].mxu0
        %v2270 = vadd.f32 %v2033, %v2269
        %v2271 = vpop.f32.mrb[0].mxu0
        %v2272 = vpop.f32.mrb[0].mxu0
        %v2273 = vadd.f32 %v2033, %v2272
        %v2274 = vpop.f32.mrb[0].mxu0
        %2275 = vmatprep.mubr.bf16.mxu0 0
        %2276 = vmatmul.mubr.bf16.gmra.mrb[0].mxu0 %v1968
        %v2277 = vpop.f32.mrb[0].mxu0
        %v2278 = vadd.f32 %v2033, %v2277
        %v2279 = vpop.f32.mrb[0].mxu0
        %v2280 = vpop.f32.mrb[0].mxu0
        %v2281 = vadd.f32 %v2033, %v2280
        %v2282 = vpop.f32.mrb[0].mxu0
        %2283 = vmatprep.mubr.bf16.mxu0 0
        %2284 = vmatmul.mubr.bf16.gmra.mrb[0].mxu0 %v1969
        %v2285 = vpop.f32.mrb[0].mxu0
        %v2286 = vadd.f32 %v2033, %v2285
        %v2287 = vpop.f32.mrb[0].mxu0
        %v2288 = vpop.f32.mrb[0].mxu0
        %v2289 = vadd.f32 %v2033, %v2288
        %v2290 = vpop.f32.mrb[0].mxu0
        %2291 = vmatprep.mubr.bf16.mxu0 0
        %2292 = vmatmul.mubr.bf16.gmra.mrb[0].mxu0 %v1970
        %v2293 = vpop.f32.mrb[0].mxu0
        %v2294 = vadd.f32 %v2033, %v2293
        %v2295 = vpop.f32.mrb[0].mxu0
        %v2296 = vpop.f32.mrb[0].mxu0
        %v2297 = vadd.f32 %v2033, %v2296
        %v2298 = vpop.f32.mrb[0].mxu0
        %2299 = vmatprep.mubr.bf16.mxu0 0
        %2300 = vmatmul.mubr.bf16.gmra.mrb[0].mxu0 %v1971
        %v2301 = vpop.f32.mrb[0].mxu0
        %v2302 = vadd.f32 %v2033, %v2301
        %v2303 = vpop.f32.mrb[0].mxu0
        %v2304 = vpop.f32.mrb[0].mxu0
        %v2305 = vadd.f32 %v2033, %v2304
        %v2306 = vpop.f32.mrb[0].mxu0
        %2307 = vmatprep.mubr.bf16.mxu0 0
        %2308 = vmatmul.mubr.bf16.gmra.mrb[0].mxu0 %v1972
        %v2309 = vpop.f32.mrb[0].mxu0
        %v2310 = vadd.f32 %v2033, %v2309
        %v2311 = vpop.f32.mrb[0].mxu0
        %v2312 = vpop.f32.mrb[0].mxu0
        %v2313 = vadd.f32 %v2033, %v2312
        %v2314 = vpop.f32.mrb[0].mxu0
        %2315 = vmatprep.mubr.bf16.mxu0 0
        %2316 = vmatmul.mubr.bf16.gmra.mrb[0].mxu0 %v1973
        %v2317 = vpop.f32.mrb[0].mxu0
        %v2318 = vadd.f32 %v2033, %v2317
        %v2319 = vpop.f32.mrb[0].mxu0
        %v2320 = vpop.f32.mrb[0].mxu0
        %v2321 = vadd.f32 %v2033, %v2320
        %v2322 = vpop.f32.mrb[0].mxu0
        %2323 = vmatprep.mubr.bf16.mxu0 0
        %2324 = vmatmul.mubr.bf16.gmra.mrb[0].mxu0 %v1974
        %v2325 = vpop.f32.mrb[0].mxu0
        %v2326 = vadd.f32 %v2033, %v2325
        %v2327 = vpop.f32.mrb[0].mxu0
        %v2328 = vpop.f32.mrb[0].mxu0
        %v2329 = vadd.f32 %v2033, %v2328
        %v2330 = vpop.f32.mrb[0].mxu0
        %2331 = vmatprep.mubr.bf16.mxu0 0
        %2332 = vmatmul.mubr.bf16.gmra.mrb[0].mxu0 %v1975
        %v2333 = vpop.f32.mrb[0].mxu0
        %v2334 = vadd.f32 %v2033, %v2333
        %v2335 = vpop.f32.mrb[0].mxu0
        %v2336 = vpop.f32.mrb[0].mxu0
        %v2337 = vadd.f32 %v2033, %v2336
        %v2338 = vpop.f32.mrb[0].mxu0
        %2339 = vmatprep.mubr.bf16.mxu0 0
        %2340 = vmatmul.mubr.bf16.gmra.mrb[0].mxu0 %v1976
        %v2341 = vpop.f32.mrb[0].mxu0
        %v2342 = vadd.f32 %v2033, %v2341
        %v2343 = vpop.f32.mrb[0].mxu0
        %v2344 = vpop.f32.mrb[0].mxu0
        %v2345 = vadd.f32 %v2033, %v2344
        %v2346 = vpop.f32.mrb[0].mxu0
        %2347 = vmatprep.mubr.bf16.mxu0 0
        %2348 = vmatmul.mubr.bf16.gmra.mrb[0].mxu0 %v1977
        %v2349 = vpop.f32.mrb[0].mxu0
        %v2350 = vadd.f32 %v2033, %v2349
        %v2351 = vpop.f32.mrb[0].mxu0
        %v2352 = vpop.f32.mrb[0].mxu0
        %v2353 = vadd.f32 %v2033, %v2352
        %v2354 = vpop.f32.mrb[0].mxu0
        %2355 = vmatprep.mubr.bf16.mxu0 0
        %2356 = vmatmul.mubr.bf16.gmra.mrb[0].mxu0 %v1978
        %v2357 = vpop.f32.mrb[0].mxu0
        %v2358 = vadd.f32 %v2033, %v2357
        %v2359 = vpop.f32.mrb[0].mxu0
        %v2360 = vpop.f32.mrb[0].mxu0
        %v2361 = vadd.f32 %v2033, %v2360
        %v2362 = vpop.f32.mrb[0].mxu0
        %2363 = vmatprep.mubr.bf16.mxu0 0
        %2364 = vmatmul.mubr.bf16.gmra.mrb[0].mxu0 %v1979
        %v2365 = vpop.f32.mrb[0].mxu0
        %v2366 = vadd.f32 %v2033, %v2365
        %v2367 = vpop.f32.mrb[0].mxu0
        %v2368 = vpop.f32.mrb[0].mxu0
        %v2369 = vadd.f32 %v2033, %v2368
        %v2370 = vpop.f32.mrb[0].mxu0
        %2371 = vmatprep.mubr.bf16.mxu0 0
        %2372 = vmatmul.mubr.bf16.gmra.mrb[0].mxu0 %v1980
        %v2373 = vpop.f32.mrb[0].mxu0
        %v2374 = vadd.f32 %v2033, %v2373
        %v2375 = vpop.f32.mrb[0].mxu0
        %v2376 = vpop.f32.mrb[0].mxu0
        %v2377 = vadd.f32 %v2033, %v2376
        %v2378 = vpop.f32.mrb[0].mxu0
        %2379 = vmatprep.mubr.bf16.mxu0 0
        %2380 = vmatmul.mubr.bf16.gmra.mrb[0].mxu0 %v1981
        %v2381 = vpop.f32.mrb[0].mxu0
        %v2382 = vadd.f32 %v2033, %v2381
        %v2383 = vpop.f32.mrb[0].mxu0
        %v2384 = vpop.f32.mrb[0].mxu0
        %v2385 = vadd.f32 %v2033, %v2384
        %v2386 = vpop.f32.mrb[0].mxu0
        %2387 = vmatprep.mubr.bf16.mxu0 0
        %2388 = vmatmul.mubr.bf16.gmra.mrb[0].mxu0 %v1982
        %v2389 = vpop.f32.mrb[0].mxu0
        %v2390 = vadd.f32 %v2033, %v2389
        %v2391 = vpop.f32.mrb[0].mxu0
        %v2392 = vpop.f32.mrb[0].mxu0
        %v2393 = vadd.f32 %v2033, %v2392
        %v2394 = vpop.f32.mrb[0].mxu0
        %2395 = vmatprep.mubr.bf16.mxu0 0
        %2396 = vmatmul.mubr.bf16.gmra.mrb[0].mxu0 %v1983
        %v2397 = vpop.f32.mrb[0].mxu0
        %v2398 = vadd.f32 %v2033, %v2397
        %v2399 = vpop.f32.mrb[0].mxu0
        %v2400 = vpop.f32.mrb[0].mxu0
        %v2401 = vadd.f32 %v2033, %v2400
        %v2402 = vpop.f32.mrb[0].mxu0
        %2403 = vmatprep.mubr.bf16.mxu0 0
        %2404 = vmatmul.mubr.bf16.gmra.mrb[0].mxu0 %v1984
        %v2405 = vpop.f32.mrb[0].mxu0
        %v2406 = vadd.f32 %v2033, %v2405
        %v2407 = vpop.f32.mrb[0].mxu0
        %v2408 = vpop.f32.mrb[0].mxu0
        %v2409 = vadd.f32 %v2033, %v2408
        %v2410 = vpop.f32.mrb[0].mxu0
        %2411 = vmatprep.mubr.bf16.mxu0 0
        %2412 = vmatmul.mubr.bf16.gmra.mrb[0].mxu0 %v1985
        %v2413 = vpop.f32.mrb[0].mxu0
        %v2414 = vadd.f32 %v2033, %v2413
        %v2415 = vpop.f32.mrb[0].mxu0
        %v2416 = vpop.f32.mrb[0].mxu0
        %v2417 = vadd.f32 %v2033, %v2416
        %v2418 = vpop.f32.mrb[0].mxu0
        %2419 = vmatprep.mubr.bf16.mxu0 0
        %2420 = vmatmul.mubr.bf16.gmra.mrb[0].mxu0 %v1986
        %v2421 = vpop.f32.mrb[0].mxu0
        %v2422 = vadd.f32 %v2033, %v2421
        %v2423 = vpop.f32.mrb[0].mxu0
        %v2424 = vpop.f32.mrb[0].mxu0
        %v2425 = vadd.f32 %v2033, %v2424
        %v2426 = vpop.f32.mrb[0].mxu0
        %2427 = vmatprep.mubr.bf16.mxu0 0
        %2428 = vmatmul.mubr.bf16.gmra.mrb[0].mxu0 %v1987
        %v2429 = vpop.f32.mrb[0].mxu0
        %v2430 = vadd.f32 %v2033, %v2429
        %v2431 = vpop.f32.mrb[0].mxu0
        %v2432 = vpop.f32.mrb[0].mxu0
        %v2433 = vadd.f32 %v2033, %v2432
        %v2434 = vpop.f32.mrb[0].mxu0
        %2435 = vmatprep.mubr.bf16.mxu0 0
        %2436 = vmatmul.mubr.bf16.gmra.mrb[0].mxu0 %v1988
        %v2437 = vpop.f32.mrb[0].mxu0
        %v2438 = vadd.f32 %v2033, %v2437
        %v2439 = vpop.f32.mrb[0].mxu0
        %v2440 = vpop.f32.mrb[0].mxu0
        %v2441 = vadd.f32 %v2033, %v2440
        %v2442 = vpop.f32.mrb[0].mxu0
        %2443 = vmatprep.mubr.bf16.mxu0 0
        %2444 = vmatmul.mubr.bf16.gmra.mrb[0].mxu0 %v1989
        %v2445 = vpop.f32.mrb[0].mxu0
        %v2446 = vadd.f32 %v2033, %v2445
        %v2447 = vpop.f32.mrb[0].mxu0
        %v2448 = vpop.f32.mrb[0].mxu0
        %v2449 = vadd.f32 %v2033, %v2448
        %v2450 = vpop.f32.mrb[0].mxu0
        %2451 = vmatprep.mubr.bf16.mxu0 0
        %2452 = vmatmul.mubr.bf16.gmra.mrb[0].mxu0 %v1990
        %v2453 = vpop.f32.mrb[0].mxu0
        %v2454 = vadd.f32 %v2033, %v2453
        %v2455 = vpop.f32.mrb[0].mxu0
        %v2456 = vpop.f32.mrb[0].mxu0
        %v2457 = vadd.f32 %v2033, %v2456
        %v2458 = vpop.f32.mrb[0].mxu0
        %2459 = vmatprep.mubr.bf16.mxu0 0
        %2460 = vmatmul.mubr.bf16.gmra.mrb[0].mxu0 %v1991
        %v2461 = vpop.f32.mrb[0].mxu0
        %v2462 = vadd.f32 %v2033, %v2461
        %v2463 = vpop.f32.mrb[0].mxu0
        %v2464 = vpop.f32.mrb[0].mxu0
        %v2465 = vadd.f32 %v2033, %v2464
        %v2466 = vpop.f32.mrb[0].mxu0
        %2467 = vmatprep.mubr.bf16.mxu0 0
        %2468 = vmatmul.mubr.bf16.gmra.mrb[0].mxu0 %v1992
        %v2469 = vpop.f32.mrb[0].mxu0
        %v2470 = vadd.f32 %v2033, %v2469
        %v2471 = vpop.f32.mrb[0].mxu0
        %v2472 = vpop.f32.mrb[0].mxu0
        %v2473 = vadd.f32 %v2033, %v2472
        %v2474 = vpop.f32.mrb[0].mxu0
        %2475 = vmatprep.mubr.bf16.mxu0 0
        %2476 = vmatmul.mubr.bf16.gmra.mrb[0].mxu0 %v1993
        %v2477 = vpop.f32.mrb[0].mxu0
        %v2478 = vadd.f32 %v2033, %v2477
        %v2479 = vpop.f32.mrb[0].mxu0
        %v2480 = vpop.f32.mrb[0].mxu0
        %v2481 = vadd.f32 %v2033, %v2480
        %v2482 = vpop.f32.mrb[0].mxu0
        %2483 = vmatprep.mubr.bf16.mxu0 0
        %2484 = vmatmul.mubr.bf16.gmra.mrb[0].mxu0 %v1994
        %v2485 = vpop.f32.mrb[0].mxu0
        %v2486 = vadd.f32 %v2033, %v2485
        %v2487 = vpop.f32.mrb[0].mxu0
        %v2488 = vpop.f32.mrb[0].mxu0
        %v2489 = vadd.f32 %v2033, %v2488
        %v2490 = vpop.f32.mrb[0].mxu0
        %2491 = vmatprep.mubr.bf16.mxu0 0
        %2492 = vmatmul.mubr.bf16.gmra.mrb[0].mxu0 %v1995
        %v2493 = vpop.f32.mrb[0].mxu0
        %v2494 = vadd.f32 %v2033, %v2493
        %v2495 = vpop.f32.mrb[0].mxu0
        %v2496 = vpop.f32.mrb[0].mxu0
        %v2497 = vadd.f32 %v2033, %v2496
        %v2498 = vpop.f32.mrb[0].mxu0
        %2499 = vmatprep.mubr.bf16.mxu0 0
        %2500 = vmatmul.mubr.bf16.gmra.mrb[0].mxu0 %v1996
        %v2501 = vpop.f32.mrb[0].mxu0
        %v2502 = vadd.f32 %v2033, %v2501
        %v2503 = vpop.f32.mrb[0].mxu0
        %v2504 = vpop.f32.mrb[0].mxu0
        %v2505 = vadd.f32 %v2033, %v2504
        %v2506 = vpop.f32.mrb[0].mxu0
        %2507 = vmatprep.mubr.bf16.mxu0 0
        %2508 = vmatmul.mubr.bf16.gmra.mrb[0].mxu0 %v1997
        %v2509 = vpop.f32.mrb[0].mxu0
        %v2510 = vadd.f32 %v2033, %v2509
        %v2511 = vpop.f32.mrb[0].mxu0
        %v2512 = vpop.f32.mrb[0].mxu0
        %v2513 = vadd.f32 %v2033, %v2512
        %v2514 = vpop.f32.mrb[0].mxu0
        %2515 = vmatprep.mubr.bf16.mxu0 0
        %2516 = vmatmul.mubr.bf16.gmra.mrb[0].mxu0 %v1998
        %v2517 = vpop.f32.mrb[0].mxu0
        %v2518 = vadd.f32 %v2033, %v2517
        %v2519 = vpop.f32.mrb[0].mxu0
        %v2520 = vpop.f32.mrb[0].mxu0
        %v2521 = vadd.f32 %v2033, %v2520
        %v2522 = vpop.f32.mrb[0].mxu0
        %2523 = vmatprep.mubr.bf16.mxu0 0
        %2524 = vmatmul.mubr.bf16.gmra.mrb[0].mxu0 %v1999
        %v2525 = vpop.f32.mrb[0].mxu0
        %v2526 = vadd.f32 %v2033, %v2525
        %v2527 = vpop.f32.mrb[0].mxu0
        %v2528 = vpop.f32.mrb[0].mxu0
        %v2529 = vadd.f32 %v2033, %v2528
        %v2530 = vpop.f32.mrb[0].mxu0
        %2531 = vmatprep.mubr.bf16.mxu0 0
        %2532 = vmatmul.mubr.bf16.gmra.mrb[0].mxu0 %v2000
        %v2533 = vpop.f32.mrb[0].mxu0
        %v2534 = vadd.f32 %v2033, %v2533
        %v2535 = vpop.f32.mrb[0].mxu0
        %v2536 = vpop.f32.mrb[0].mxu0
        %v2537 = vadd.f32 %v2033, %v2536
        %v2538 = vpop.f32.mrb[0].mxu0
        %2539 = vmatprep.mubr.bf16.mxu0 0
        %2540 = vmatmul.mubr.bf16.gmra.mrb[0].mxu0 %v2001
        %v2541 = vpop.f32.mrb[0].mxu0
        %v2542 = vadd.f32 %v2033, %v2541
        %v2543 = vpop.f32.mrb[0].mxu0
        %v2544 = vpop.f32.mrb[0].mxu0
        %v2545 = vadd.f32 %v2033, %v2544
        %v2546 = vpop.f32.mrb[0].mxu0
        %2547 = vmatprep.mubr.bf16.mxu0 0
        %2548 = vmatmul.mubr.bf16.gmra.mrb[0].mxu0 %v2002
        %v2549 = vpop.f32.mrb[0].mxu0
        %v2550 = vadd.f32 %v2033, %v2549
        %v2551 = vpop.f32.mrb[0].mxu0
        %v2552 = vpop.f32.mrb[0].mxu0
        %v2553 = vadd.f32 %v2033, %v2552
        %v2554 = vpop.f32.mrb[0].mxu0
        %2555 = vmatprep.mubr.bf16.mxu0 0
        %2556 = vmatmul.mubr.bf16.gmra.mrb[0].mxu0 %v2003
        %v2557 = vpop.f32.mrb[0].mxu0
        %v2558 = vadd.f32 %v2033, %v2557
        %v2559 = vpop.f32.mrb[0].mxu0
        %v2560 = vpop.f32.mrb[0].mxu0
        %v2561 = vadd.f32 %v2033, %v2560
        %v2562 = vpop.f32.mrb[0].mxu0
        %2563 = vmatprep.mubr.bf16.mxu0 0
        %2564 = vmatmul.mubr.bf16.gmra.mrb[0].mxu0 %v2004
        %v2565 = vpop.f32.mrb[0].mxu0
        %v2566 = vadd.f32 %v2033, %v2565
        %v2567 = vpop.f32.mrb[0].mxu0
        %v2568 = vpop.f32.mrb[0].mxu0
        %v2569 = vadd.f32 %v2033, %v2568
        %v2570 = vpop.f32.mrb[0].mxu0
        %2571 = vmatprep.mubr.bf16.mxu0 0
        %2572 = vmatmul.mubr.bf16.gmra.mrb[0].mxu0 %v2005
        %v2573 = vpop.f32.mrb[0].mxu0
        %v2574 = vadd.f32 %v2033, %v2573
        %v2575 = vpop.f32.mrb[0].mxu0
        %v2576 = vpop.f32.mrb[0].mxu0
        %v2577 = vadd.f32 %v2033, %v2576
        %v2578 = vpop.f32.mrb[0].mxu0
        %2579 = vmatprep.mubr.bf16.mxu0 0
        %2580 = vmatmul.mubr.bf16.gmra.mrb[0].mxu0 %v2006
        %v2581 = vpop.f32.mrb[0].mxu0
        %v2582 = vadd.f32 %v2033, %v2581
        %v2583 = vpop.f32.mrb[0].mxu0
        %v2584 = vpop.f32.mrb[0].mxu0
        %v2585 = vadd.f32 %v2033, %v2584
        %v2586 = vpop.f32.mrb[0].mxu0
        %2587 = vmatprep.mubr.bf16.mxu0 0
        %2588 = vmatmul.mubr.bf16.gmra.mrb[0].mxu0 %v2007
        %v2589 = vpop.f32.mrb[0].mxu0
        %v2590 = vadd.f32 %v2033, %v2589
        %v2591 = vpop.f32.mrb[0].mxu0
        %v2592 = vpop.f32.mrb[0].mxu0
        %v2593 = vadd.f32 %v2033, %v2592
        %v2594 = vpop.f32.mrb[0].mxu0
        %2595 = vmatprep.mubr.bf16.mxu0 0
        %2596 = vmatmul.mubr.bf16.gmra.mrb[0].mxu0 %v2008
        %v2597 = vpop.f32.mrb[0].mxu0
        %v2598 = vadd.f32 %v2033, %v2597
        %v2599 = vpop.f32.mrb[0].mxu0
        %v2600 = vpop.f32.mrb[0].mxu0
        %v2601 = vadd.f32 %v2033, %v2600
        %v2602 = vpop.f32.mrb[0].mxu0
        %2603 = vmatprep.mubr.bf16.mxu0 0
        %2604 = vmatmul.mubr.bf16.gmra.mrb[0].mxu0 %v2009
        %v2605 = vpop.f32.mrb[0].mxu0
        %v2606 = vadd.f32 %v2033, %v2605
        %v2607 = vpop.f32.mrb[0].mxu0
        %v2608 = vpop.f32.mrb[0].mxu0
        %v2609 = vadd.f32 %v2033, %v2608
        %v2610 = vpop.f32.mrb[0].mxu0
        %2611 = vmatprep.mubr.bf16.mxu0 0
        %2612 = vmatmul.mubr.bf16.gmra.mrb[0].mxu0 %v2010
        %v2613 = vpop.f32.mrb[0].mxu0
        %v2614 = vadd.f32 %v2033, %v2613
        %v2615 = vpop.f32.mrb[0].mxu0
        %v2616 = vpop.f32.mrb[0].mxu0
        %v2617 = vadd.f32 %v2033, %v2616
        %v2618 = vpop.f32.mrb[0].mxu0
        %2619 = vmatprep.mubr.bf16.mxu0 0
        %2620 = vmatmul.mubr.bf16.gmra.mrb[0].mxu0 %v2011
        %v2621 = vpop.f32.mrb[0].mxu0
        %v2622 = vadd.f32 %v2033, %v2621
        %v2623 = vpop.f32.mrb[0].mxu0
        %v2624 = vpop.f32.mrb[0].mxu0
        %v2625 = vadd.f32 %v2033, %v2624
        %v2626 = vpop.f32.mrb[0].mxu0
        %2627 = vdwg.mxu0
        %v2628 = vmax.f32 %v2118, 0.0
        %v2629 = vmax.f32 %v2121, 0.0
        %v2630 = vmax.f32 %v2126, 0.0
        %v2631 = vmax.f32 %v2129, 0.0
        %v2632 = vmax.f32 %v2134, 0.0
        %v2633 = vmax.f32 %v2137, 0.0
        %v2634 = vmax.f32 %v2142, 0.0
        %v2635 = vmax.f32 %v2145, 0.0
        %v2636 = vmax.f32 %v2150, 0.0
        %v2637 = vmax.f32 %v2153, 0.0
        %v2638 = vmax.f32 %v2158, 0.0
        %v2639 = vmax.f32 %v2161, 0.0
        %v2640 = vmax.f32 %v2166, 0.0
        %v2641 = vmax.f32 %v2169, 0.0
        %v2642 = vmax.f32 %v2174, 0.0
        %v2643 = vmax.f32 %v2177, 0.0
        %v2644 = vmax.f32 %v2182, 0.0
        %v2645 = vmax.f32 %v2185, 0.0
        %v2646 = vmax.f32 %v2190, 0.0
        %v2647 = vmax.f32 %v2193, 0.0
        %v2648 = vmax.f32 %v2198, 0.0
        %v2649 = vmax.f32 %v2201, 0.0
        %v2650 = vmax.f32 %v2206, 0.0
        %v2651 = vmax.f32 %v2209, 0.0
        %v2652 = vmax.f32 %v2214, 0.0
        %v2653 = vmax.f32 %v2217, 0.0
        %v2654 = vmax.f32 %v2222, 0.0
        %v2655 = vmax.f32 %v2225, 0.0
        %v2656 = vmax.f32 %v2230, 0.0
        %v2657 = vmax.f32 %v2233, 0.0
        %v2658 = vmax.f32 %v2238, 0.0
        %v2659 = vmax.f32 %v2241, 0.0
        %v2660 = vmax.f32 %v2246, 0.0
        %v2661 = vmax.f32 %v2249, 0.0
        %v2662 = vmax.f32 %v2254, 0.0
        %v2663 = vmax.f32 %v2257, 0.0
        %v2664 = vmax.f32 %v2262, 0.0
        %v2665 = vmax.f32 %v2265, 0.0
        %v2666 = vmax.f32 %v2270, 0.0
        %v2667 = vmax.f32 %v2273, 0.0
        %v2668 = vmax.f32 %v2278, 0.0
        %v2669 = vmax.f32 %v2281, 0.0
        %v2670 = vmax.f32 %v2286, 0.0
        %v2671 = vmax.f32 %v2289, 0.0
        %v2672 = vmax.f32 %v2294, 0.0
        %v2673 = vmax.f32 %v2297, 0.0
        %v2674 = vmax.f32 %v2302, 0.0
        %v2675 = vmax.f32 %v2305, 0.0
        %v2676 = vmax.f32 %v2310, 0.0
        %v2677 = vmax.f32 %v2313, 0.0
        %v2678 = vmax.f32 %v2318, 0.0
        %v2679 = vmax.f32 %v2321, 0.0
        %v2680 = vmax.f32 %v2326, 0.0
        %v2681 = vmax.f32 %v2329, 0.0
        %v2682 = vmax.f32 %v2334, 0.0
        %v2683 = vmax.f32 %v2337, 0.0
        %v2684 = vmax.f32 %v2342, 0.0
        %v2685 = vmax.f32 %v2345, 0.0
        %v2686 = vmax.f32 %v2350, 0.0
        %v2687 = vmax.f32 %v2353, 0.0
        %v2688 = vmax.f32 %v2358, 0.0
        %v2689 = vmax.f32 %v2361, 0.0
        %v2690 = vmax.f32 %v2366, 0.0
        %v2691 = vmax.f32 %v2369, 0.0
        %v2692 = vmax.f32 %v2374, 0.0
        %v2693 = vmax.f32 %v2377, 0.0
        %v2694 = vmax.f32 %v2382, 0.0
        %v2695 = vmax.f32 %v2385, 0.0
        %v2696 = vmax.f32 %v2390, 0.0
        %v2697 = vmax.f32 %v2393, 0.0
        %v2698 = vmax.f32 %v2398, 0.0
        %v2699 = vmax.f32 %v2401, 0.0
        %v2700 = vmax.f32 %v2406, 0.0
        %v2701 = vmax.f32 %v2409, 0.0
        %v2702 = vmax.f32 %v2414, 0.0
        %v2703 = vmax.f32 %v2417, 0.0
        %v2704 = vmax.f32 %v2422, 0.0
        %v2705 = vmax.f32 %v2425, 0.0
        %v2706 = vmax.f32 %v2430, 0.0
        %v2707 = vmax.f32 %v2433, 0.0
        %v2708 = vmax.f32 %v2438, 0.0
        %v2709 = vmax.f32 %v2441, 0.0
        %v2710 = vmax.f32 %v2446, 0.0
        %v2711 = vmax.f32 %v2449, 0.0
        %v2712 = vmax.f32 %v2454, 0.0
        %v2713 = vmax.f32 %v2457, 0.0
        %v2714 = vmax.f32 %v2462, 0.0
        %v2715 = vmax.f32 %v2465, 0.0
        %v2716 = vmax.f32 %v2470, 0.0
        %v2717 = vmax.f32 %v2473, 0.0
        %v2718 = vmax.f32 %v2478, 0.0
        %v2719 = vmax.f32 %v2481, 0.0
        %v2720 = vmax.f32 %v2486, 0.0
        %v2721 = vmax.f32 %v2489, 0.0
        %v2722 = vmax.f32 %v2494, 0.0
        %v2723 = vmax.f32 %v2497, 0.0
        %v2724 = vmax.f32 %v2502, 0.0
        %v2725 = vmax.f32 %v2505, 0.0
        %v2726 = vmax.f32 %v2510, 0.0
        %v2727 = vmax.f32 %v2513, 0.0
        %v2728 = vmax.f32 %v2518, 0.0
        %v2729 = vmax.f32 %v2521, 0.0
        %v2730 = vmax.f32 %v2526, 0.0
        %v2731 = vmax.f32 %v2529, 0.0
        %v2732 = vmax.f32 %v2534, 0.0
        %v2733 = vmax.f32 %v2537, 0.0
        %v2734 = vmax.f32 %v2542, 0.0
        %v2735 = vmax.f32 %v2545, 0.0
        %v2736 = vmax.f32 %v2550, 0.0
        %v2737 = vmax.f32 %v2553, 0.0
        %v2738 = vmax.f32 %v2558, 0.0
        %v2739 = vmax.f32 %v2561, 0.0
        %v2740 = vmax.f32 %v2566, 0.0
        %v2741 = vmax.f32 %v2569, 0.0
        %v2742 = vmax.f32 %v2574, 0.0
        %v2743 = vmax.f32 %v2577, 0.0
        %v2744 = vmax.f32 %v2582, 0.0
        %v2745 = vmax.f32 %v2585, 0.0
        %v2746 = vmax.f32 %v2590, 0.0
        %v2747 = vmax.f32 %v2593, 0.0
        %v2748 = vmax.f32 %v2598, 0.0
        %v2749 = vmax.f32 %v2601, 0.0
        %v2750 = vmax.f32 %v2606, 0.0
        %v2751 = vmax.f32 %v2609, 0.0
        %v2752 = vmax.f32 %v2614, 0.0
        %v2753 = vmax.f32 %v2617, 0.0
        %v2754 = vmax.f32 %v2622, 0.0
        %v2755 = vmax.f32 %v2625, 0.0
        %v2756 = vpack.c.bf16 %v2629, %v2628
        %v2757 = vpack.c.bf16 %v2631, %v2630
        %v2758 = vpack.c.bf16 %v2633, %v2632
        %v2759 = vpack.c.bf16 %v2635, %v2634
        %v2760 = vpack.c.bf16 %v2637, %v2636
        %v2761 = vpack.c.bf16 %v2639, %v2638
        %v2762 = vpack.c.bf16 %v2641, %v2640
        %v2763 = vpack.c.bf16 %v2643, %v2642
        %v2764 = vpack.c.bf16 %v2645, %v2644
        %v2765 = vpack.c.bf16 %v2647, %v2646
        %v2766 = vpack.c.bf16 %v2649, %v2648
        %v2767 = vpack.c.bf16 %v2651, %v2650
        %v2768 = vpack.c.bf16 %v2653, %v2652
        %v2769 = vpack.c.bf16 %v2655, %v2654
        %v2770 = vpack.c.bf16 %v2657, %v2656
        %v2771 = vpack.c.bf16 %v2659, %v2658
        %v2772 = vpack.c.bf16 %v2661, %v2660
        %v2773 = vpack.c.bf16 %v2663, %v2662
        %v2774 = vpack.c.bf16 %v2665, %v2664
        %v2775 = vpack.c.bf16 %v2667, %v2666
        %v2776 = vpack.c.bf16 %v2669, %v2668
        %v2777 = vpack.c.bf16 %v2671, %v2670
        %v2778 = vpack.c.bf16 %v2673, %v2672
        %v2779 = vpack.c.bf16 %v2675, %v2674
        %v2780 = vpack.c.bf16 %v2677, %v2676
        %v2781 = vpack.c.bf16 %v2679, %v2678
        %v2782 = vpack.c.bf16 %v2681, %v2680
        %v2783 = vpack.c.bf16 %v2683, %v2682
        %v2784 = vpack.c.bf16 %v2685, %v2684
        %v2785 = vpack.c.bf16 %v2687, %v2686
        %v2786 = vpack.c.bf16 %v2689, %v2688
        %v2787 = vpack.c.bf16 %v2691, %v2690
        %v2788 = vpack.c.bf16 %v2693, %v2692
        %v2789 = vpack.c.bf16 %v2695, %v2694
        %v2790 = vpack.c.bf16 %v2697, %v2696
        %v2791 = vpack.c.bf16 %v2699, %v2698
        %v2792 = vpack.c.bf16 %v2701, %v2700
        %v2793 = vpack.c.bf16 %v2703, %v2702
        %v2794 = vpack.c.bf16 %v2705, %v2704
        %v2795 = vpack.c.bf16 %v2707, %v2706
        %v2796 = vpack.c.bf16 %v2709, %v2708
        %v2797 = vpack.c.bf16 %v2711, %v2710
        %v2798 = vpack.c.bf16 %v2713, %v2712
        %v2799 = vpack.c.bf16 %v2715, %v2714
        %v2800 = vpack.c.bf16 %v2717, %v2716
        %v2801 = vpack.c.bf16 %v2719, %v2718
        %v2802 = vpack.c.bf16 %v2721, %v2720
        %v2803 = vpack.c.bf16 %v2723, %v2722
        %v2804 = vpack.c.bf16 %v2725, %v2724
        %v2805 = vpack.c.bf16 %v2727, %v2726
        %v2806 = vpack.c.bf16 %v2729, %v2728
        %v2807 = vpack.c.bf16 %v2731, %v2730
        %v2808 = vpack.c.bf16 %v2733, %v2732
        %v2809 = vpack.c.bf16 %v2735, %v2734
        %v2810 = vpack.c.bf16 %v2737, %v2736
        %v2811 = vpack.c.bf16 %v2739, %v2738
        %v2812 = vpack.c.bf16 %v2741, %v2740
        %v2813 = vpack.c.bf16 %v2743, %v2742
        %v2814 = vpack.c.bf16 %v2745, %v2744
        %v2815 = vpack.c.bf16 %v2747, %v2746
        %v2816 = vpack.c.bf16 %v2749, %v2748
        %v2817 = vpack.c.bf16 %v2751, %v2750
        %v2818 = vpack.c.bf16 %v2753, %v2752
        %v2819 = vpack.c.bf16 %v2755, %v2754
        %2820 = vmatprep.subr.bf16.mxu0 0
        %2821 = vmatpush1.bf16.msra.mxu0 %v2756
        %2822 = vmatprep.subr.bf16.mxu0 0
        %2823 = vmatpush1.bf16.msra.mxu0 %v2757
        %2824 = vmatprep.subr.bf16.mxu0 0
        %2825 = vmatpush1.bf16.msra.mxu0 %v2758
        %2826 = vmatprep.subr.bf16.mxu0 0
        %2827 = vmatpush1.bf16.msra.mxu0 %v2759
        %2828 = vmatprep.subr.bf16.mxu0 0
        %2829 = vmatpush1.bf16.msra.mxu0 %v2760
        %2830 = vmatprep.subr.bf16.mxu0 0
        %2831 = vmatpush1.bf16.msra.mxu0 %v2761
        %2832 = vmatprep.subr.bf16.mxu0 0
        %2833 = vmatpush1.bf16.msra.mxu0 %v2762
        %2834 = vmatprep.subr.bf16.mxu0 0
        %2835 = vmatpush1.bf16.msra.mxu0 %v2763
        %2836 = vmatprep.subr.bf16.mxu0 0
        %2837 = vmatpush1.bf16.msra.mxu0 %v2764
        %2838 = vmatprep.subr.bf16.mxu0 0
        %2839 = vmatpush1.bf16.msra.mxu0 %v2765
        %2840 = vmatprep.subr.bf16.mxu0 0
        %2841 = vmatpush1.bf16.msra.mxu0 %v2766
        %2842 = vmatprep.subr.bf16.mxu0 0
        %2843 = vmatpush1.bf16.msra.mxu0 %v2767
        %2844 = vmatprep.subr.bf16.mxu0 0
        %2845 = vmatpush1.bf16.msra.mxu0 %v2768
        %2846 = vmatprep.subr.bf16.mxu0 0
        %2847 = vmatpush1.bf16.msra.mxu0 %v2769
        %2848 = vmatprep.subr.bf16.mxu0 0
        %2849 = vmatpush1.bf16.msra.mxu0 %v2770
        %2850 = vmatprep.subr.bf16.mxu0 0
        %2851 = vmatpush1.bf16.msra.mxu0 %v2771
        %2852 = vmatprep.mubr.bf16.mxu0 1065369472
        %2853 = vmatmul.mubr.bf16.gmra.mrb[0].mxu0 1065369472
        %v2854 = vpop.f32.mrb[0].mxu0
        %v2855 = vadd.f32 0.0, %v2854
        %v2856 = vpop.f32.mrb[0].mxu0
        %v2857 = vpop.f32.mrb[0].mxu0
        %v2858 = vpop.f32.mrb[0].mxu0
        %2859 = vdwg.mxu0
        %2860 = vmatprep.subr.bf16.mxu0 0
        %2861 = vmatpush1.bf16.msra.mxu0 %v2772
        %2862 = vmatprep.subr.bf16.mxu0 0
        %2863 = vmatpush1.bf16.msra.mxu0 %v2773
        %2864 = vmatprep.subr.bf16.mxu0 0
        %2865 = vmatpush1.bf16.msra.mxu0 %v2774
        %2866 = vmatprep.subr.bf16.mxu0 0
        %2867 = vmatpush1.bf16.msra.mxu0 %v2775
        %2868 = vmatprep.subr.bf16.mxu0 0
        %2869 = vmatpush1.bf16.msra.mxu0 %v2776
        %2870 = vmatprep.subr.bf16.mxu0 0
        %2871 = vmatpush1.bf16.msra.mxu0 %v2777
        %2872 = vmatprep.subr.bf16.mxu0 0
        %2873 = vmatpush1.bf16.msra.mxu0 %v2778
        %2874 = vmatprep.subr.bf16.mxu0 0
        %2875 = vmatpush1.bf16.msra.mxu0 %v2779
        %2876 = vmatprep.subr.bf16.mxu0 0
        %2877 = vmatpush1.bf16.msra.mxu0 %v2780
        %2878 = vmatprep.subr.bf16.mxu0 0
        %2879 = vmatpush1.bf16.msra.mxu0 %v2781
        %2880 = vmatprep.subr.bf16.mxu0 0
        %2881 = vmatpush1.bf16.msra.mxu0 %v2782
        %2882 = vmatprep.subr.bf16.mxu0 0
        %2883 = vmatpush1.bf16.msra.mxu0 %v2783
        %2884 = vmatprep.subr.bf16.mxu0 0
        %2885 = vmatpush1.bf16.msra.mxu0 %v2784
        %2886 = vmatprep.subr.bf16.mxu0 0
        %2887 = vmatpush1.bf16.msra.mxu0 %v2785
        %2888 = vmatprep.subr.bf16.mxu0 0
        %2889 = vmatpush1.bf16.msra.mxu0 %v2786
        %2890 = vmatprep.subr.bf16.mxu0 0
        %2891 = vmatpush1.bf16.msra.mxu0 %v2787
        %2892 = vmatprep.mubr.bf16.mxu0 1065369472
        %2893 = vmatmul.mubr.bf16.gmra.mrb[0].mxu0 1065369472
        %v2894 = vpop.f32.mrb[0].mxu0
        %v2895 = vadd.f32 %v2855, %v2894
        %v2896 = vpop.f32.mrb[0].mxu0
        %v2897 = vpop.f32.mrb[0].mxu0
        %v2898 = vpop.f32.mrb[0].mxu0
        %2899 = vdwg.mxu0
        %2900 = vmatprep.subr.bf16.mxu0 0
        %2901 = vmatpush1.bf16.msra.mxu0 %v2788
        %2902 = vmatprep.subr.bf16.mxu0 0
        %2903 = vmatpush1.bf16.msra.mxu0 %v2789
        %2904 = vmatprep.subr.bf16.mxu0 0
        %2905 = vmatpush1.bf16.msra.mxu0 %v2790
        %2906 = vmatprep.subr.bf16.mxu0 0
        %2907 = vmatpush1.bf16.msra.mxu0 %v2791
        %2908 = vmatprep.subr.bf16.mxu0 0
        %2909 = vmatpush1.bf16.msra.mxu0 %v2792
        %2910 = vmatprep.subr.bf16.mxu0 0
        %2911 = vmatpush1.bf16.msra.mxu0 %v2793
        %2912 = vmatprep.subr.bf16.mxu0 0
        %2913 = vmatpush1.bf16.msra.mxu0 %v2794
        %2914 = vmatprep.subr.bf16.mxu0 0
        %2915 = vmatpush1.bf16.msra.mxu0 %v2795
        %2916 = vmatprep.subr.bf16.mxu0 0
        %2917 = vmatpush1.bf16.msra.mxu0 %v2796
        %2918 = vmatprep.subr.bf16.mxu0 0
        %2919 = vmatpush1.bf16.msra.mxu0 %v2797
        %2920 = vmatprep.subr.bf16.mxu0 0
        %2921 = vmatpush1.bf16.msra.mxu0 %v2798
        %2922 = vmatprep.subr.bf16.mxu0 0
        %2923 = vmatpush1.bf16.msra.mxu0 %v2799
        %2924 = vmatprep.subr.bf16.mxu0 0
        %2925 = vmatpush1.bf16.msra.mxu0 %v2800
        %2926 = vmatprep.subr.bf16.mxu0 0
        %2927 = vmatpush1.bf16.msra.mxu0 %v2801
        %2928 = vmatprep.subr.bf16.mxu0 0
        %2929 = vmatpush1.bf16.msra.mxu0 %v2802
        %2930 = vmatprep.subr.bf16.mxu0 0
        %2931 = vmatpush1.bf16.msra.mxu0 %v2803
        %2932 = vmatprep.mubr.bf16.mxu0 1065369472
        %2933 = vmatmul.mubr.bf16.gmra.mrb[0].mxu0 1065369472
        %v2934 = vpop.f32.mrb[0].mxu0
        %v2935 = vadd.f32 %v2895, %v2934
        %v2936 = vpop.f32.mrb[0].mxu0
        %v2937 = vpop.f32.mrb[0].mxu0
        %v2938 = vpop.f32.mrb[0].mxu0
        %2939 = vdwg.mxu0
        %2940 = vmatprep.subr.bf16.mxu0 0
        %2941 = vmatpush1.bf16.msra.mxu0 %v2804
        %2942 = vmatprep.subr.bf16.mxu0 0
        %2943 = vmatpush1.bf16.msra.mxu0 %v2805
        %2944 = vmatprep.subr.bf16.mxu0 0
        %2945 = vmatpush1.bf16.msra.mxu0 %v2806
        %2946 = vmatprep.subr.bf16.mxu0 0
        %2947 = vmatpush1.bf16.msra.mxu0 %v2807
        %2948 = vmatprep.subr.bf16.mxu0 0
        %2949 = vmatpush1.bf16.msra.mxu0 %v2808
        %2950 = vmatprep.subr.bf16.mxu0 0
        %2951 = vmatpush1.bf16.msra.mxu0 %v2809
        %2952 = vmatprep.subr.bf16.mxu0 0
        %2953 = vmatpush1.bf16.msra.mxu0 %v2810
        %2954 = vmatprep.subr.bf16.mxu0 0
        %2955 = vmatpush1.bf16.msra.mxu0 %v2811
        %2956 = vmatprep.subr.bf16.mxu0 0
        %2957 = vmatpush1.bf16.msra.mxu0 %v2812
        %2958 = vmatprep.subr.bf16.mxu0 0
        %2959 = vmatpush1.bf16.msra.mxu0 %v2813
        %2960 = vmatprep.subr.bf16.mxu0 0
        %2961 = vmatpush1.bf16.msra.mxu0 %v2814
        %2962 = vmatprep.subr.bf16.mxu0 0
        %2963 = vmatpush1.bf16.msra.mxu0 %v2815
        %2964 = vmatprep.subr.bf16.mxu0 0
        %2965 = vmatpush1.bf16.msra.mxu0 %v2816
        %2966 = vmatprep.subr.bf16.mxu0 0
        %2967 = vmatpush1.bf16.msra.mxu0 %v2817
        %2968 = vmatprep.subr.bf16.mxu0 0
        %2969 = vmatpush1.bf16.msra.mxu0 %v2818
        %2970 = vmatprep.subr.bf16.mxu0 0
        %2971 = vmatpush1.bf16.msra.mxu0 %v2819
        %2972 = vmatprep.mubr.bf16.mxu0 1065369472
        %2973 = vmatmul.mubr.bf16.gmra.mrb[0].mxu0 1065369472
        %v2974 = vpop.f32.mrb[0].mxu0
        %v2975 = vadd.f32 %v2935, %v2974
        %v2976 = vpop.f32.mrb[0].mxu0
        %v2977 = vpop.f32.mrb[0].mxu0
        %v2978 = vpop.f32.mrb[0].mxu0
        %2979 = vdwg.mxu0
        %v2980 = vld [vmem:[%s362] sm:$0x1]
        %v2981 = vadd.f32 %v2980, %v2975
        %2982 = vst [vmem:[%s362] sm:$0x1] %v2981
        %s2983 = sand.u32 %s244, 1
        %s2984 = scalar_lea.sflag [#allocation4], %s2983
        %s2985 = sand.u32 %s244, 1
        %s2986 = scalar_lea.vmem [#allocation3], %s2985
        // Predicated region
        $region61: #{tpu_custom_call.1} parent=55 // pred_check
          %p2987 = pneg %p254
        $region62: #{tpu_custom_call.1} parent=55 // pred_check_branch
          %2989 = sbr.rel (%p2987) target = $region64
        $region63: #{tpu_custom_call.1} parent=55 // pred_region
          %s2991 = ssub.s32 16, 16
          %2992 = vsyncadd %s2984, %s2991
          %s2993 = smul.addr %s27, 16
          %s2994 = scalar_lea.hbm %s9, %s2993
          %s2996 = sshll.u32 %s2986, 4
          %s2997 = int_to_ptr.vmem [resolvable:$true] %s2996
          %2999 = dma.vmem_to_hbm [thread:$0]  %s2997, 16, %s2994, %s2984
        $region64: #{tpu_custom_call.1} parent=55 // pred_fallthru
          _
      $region56: #{tpu_custom_call.1} parent=5 // pred_fallthru
        _
      %p3000 = scmp.le.s32.totalorder 2, %s18
      // Predicated region
      $region65: #{tpu_custom_call.1} parent=5 // pred_check
        %p3001 = pneg %p3000
      $region66: #{tpu_custom_call.1} parent=5 // pred_check_branch
        %3003 = sbr.rel (%p3001) target = $region68
      $region67: #{tpu_custom_call.1} parent=5 // pred_region
        %s3004 = ssub.s32 %s18, 2
        // Predicated region
        $region69: #{tpu_custom_call.1} parent=67 // pred_check
          %p3005 = pneg %p260
        $region70: #{tpu_custom_call.1} parent=67 // pred_check_branch
          %3007 = sbr.rel (%p3005) target = $region72
        $region71: #{tpu_custom_call.1} parent=67 // pred_region
          %s3008 = sand.u32 %s245, 1
          %s3009 = scalar_lea.sflag [#allocation4], %s3008
          %s3010 = sand.u32 %s245, 1
          %s3011 = scalar_lea.vmem [#allocation3], %s3010
          %3012 = dma.done %s3009, 16
        $region72: #{tpu_custom_call.1} parent=67 // pred_fallthru
          _
      $region68: #{tpu_custom_call.1} parent=5 // pred_fallthru
        _
    $region6: #{tpu_custom_call.1} parent=1 // loop_footer
      %s22 = sadd.s32 1, %s18
    $region7: #{tpu_custom_call.1} parent=1 // loop_footer_branch
      %17 = sbr.rel target = $region3
    $region8: #{tpu_custom_call.1} parent=1 // loop_exit
      _
    %3013 = vsyncpa [#allocation4], 1
    %s3014 = scalar_lea.sflag [#allocation4], 1
    %3015 = vsyncpa %s3014, 1

</llo_original>
